<compile_context>
chip_gen: v6e
topology: v6e:2x2x1
jax: 0.10.0
libtpu: 0.0.40
codegen_flags: <defaults>
</compile_context>

<pallas_src>
import functools

import jax
import jax.numpy as jnp
from jax.experimental import pallas as pl
from jax.experimental.pallas import tpu as pltpu

EPS = 1e-5
# (fan_in, out_channels) per conv layer.  conv1's (1,3) kernel is folded into a
# 3-wide input-feature axis (equivalent contraction).
CHANNELS = [(3, 64), (64, 64), (64, 128), (128, 256), (256, 512), (512, 1024)]
C_OUT = 1024 + 512 + 256 + 128  # 1920


def _convlayer_kernel(B, N, x_ref, *refs):
    """refs = 18 parameter refs (w, gamma, beta per layer) + out_ref."""
    out_ref = refs[-1]
    p = refs[:-1]

    def bn_relu(y, g_ref, beta_ref):
        # Training-mode BatchNorm2d folded into a single per-element FMA.
        mean = jnp.mean(y, axis=0, keepdims=True)                       # (1, C)
        var = jnp.mean(y * y, axis=0, keepdims=True) - mean * mean      # one-pass
        var = jnp.maximum(var, 0.0)                                     # guard roundoff
        scale = g_ref[...] * jax.lax.rsqrt(var + EPS)                   # (1, C)
        shift = beta_ref[...] - mean * scale                            # (1, C)
        return jnp.maximum(y * scale + shift, 0.0)                      # ReLU

    def pool(h):
        # MaxPool2d((point_scales,1)): max over the N points of each batch elem.
        c = h.shape[-1]
        return jnp.max(h.reshape(B, N, c), axis=1)                      # (B, c)

    x = x_ref[...]  # (B*N, 3) float32

    # Layer 1: the (1,3) conv is a K=3 contraction -> three VPU broadcast FMAs
    # (MXU K-dim would be <3% utilized; keep the MXU free while warming up).
    w0 = p[0][...]                                                      # (3, 64) f32
    y = (x[:, 0:1] * w0[0:1, :] + x[:, 1:2] * w0[1:2, :]
         + x[:, 2:3] * w0[2:3, :])
    h = bn_relu(y, p[1], p[2])

    pooled = {}
    for layer in range(1, 6):
        w_ref, g_ref, beta_ref = p[3 * layer: 3 * layer + 3]
        y = jnp.dot(h.astype(jnp.bfloat16), w_ref[...],
                    preferred_element_type=jnp.float32)
        h = bn_relu(y, g_ref, beta_ref)
        if layer >= 2:                 # tapped layers: 128 / 256 / 512 / 1024
            pooled[h.shape[-1]] = pool(h)   # pool immediately -> tiny live state

    # cat([x_1024, x_512, x_256, x_128], dim=1); single lane-dense store.
    out_ref[...] = jnp.concatenate(
        [pooled[1024], pooled[512], pooled[256], pooled[128]], axis=1)


def _full_spec(shape):
    nd = len(shape)
    return pl.BlockSpec(shape, lambda *_: (0,) * nd)


def _vmem_limit_bytes(B, N):
    """Generous but bounded scoped-VMEM budget for the grid=(1,) kernel."""
    M = B * N
    acts = M * (512 + 1024 + 1024) * 4                     # largest live f32 activations + bf16 copies
    weights = sum(ci * co for ci, co in CHANNELS) * 4 * 2  # params, double-buffer upper bound
    io = (M * 3 + B * C_OUT) * 4 * 2
    est = 2 * (acts + weights + io) + (8 << 20)
    return int(min(max(est, 32 << 20), 64 << 20))


def convlayer_forward(x, params):
    """x: (B, N, 3) float32, N == point_scales. Returns (B, 1920, 1)."""
    B, N, _ = x.shape
    x_flat = x.reshape(B * N, 3).astype(jnp.float32)

    flat_params = []
    for i, (w, _b, g, be) in enumerate(params):
        # Conv bias `_b` is dropped on purpose: BN (training mode) subtracts the
        # per-channel mean immediately after the conv, cancelling it exactly.
        w = w.astype(jnp.float32) if i == 0 else w.astype(jnp.bfloat16)
        flat_params += [w,
                        g.reshape(1, -1).astype(jnp.float32),
                        be.reshape(1, -1).astype(jnp.float32)]

    in_specs = [_full_spec(x_flat.shape)] + [_full_spec(p.shape) for p in flat_params]

    out = pl.pallas_call(
        functools.partial(_convlayer_kernel, B, N),
        grid=(1,),
        in_specs=in_specs,
        out_specs=_full_spec((B, C_OUT)),
        out_shape=jax.ShapeDtypeStruct((B, C_OUT), jnp.float32),
        compiler_params=pltpu.CompilerParams(
            dimension_semantics=("arbitrary",),
            vmem_limit_bytes=_vmem_limit_bytes(B, N)),
    )(x_flat, *flat_params)

    # PyTorch returns (B, 1920, 1) after squeeze(dim=2) of the NCHW conv output.
    return out[:, :, None]


def init_params(key):
    """Deterministic synthetic parameters mirroring PyTorch default init shapes.

    Conv2d weight U(-1/sqrt(fan_in), 1/sqrt(fan_in)); BatchNorm gamma=1, beta=0.
    conv1's (64,1,1,3) weight is stored transposed/reshaped as (3, 64).
    (Biases are generated to mirror the module but are unused: they cancel
    exactly under training-mode BN.)
    """
    params = []
    for (fan_in, cout) in CHANNELS:
        key, kw, kb = jax.random.split(key, 3)
        bound = 1.0 / (fan_in ** 0.5)
        w = jax.random.uniform(kw, (fan_in, cout), jnp.float32, -bound, bound)
        b = jax.random.uniform(kb, (cout,), jnp.float32, -bound, bound)
        gamma = jnp.ones((cout,), jnp.float32)
        beta = jnp.zeros((cout,), jnp.float32)
        params.append((w, b, gamma, beta))
    return params


if __name__ == "__main__":
    B = 2
    point_scales = 16  # == N (number of points); MaxPool window is (point_scales, 1)

    key = jax.random.PRNGKey(0)
    kx, kp = jax.random.split(key)
    x = jax.random.normal(kx, (B, point_scales, 3), dtype=jnp.float32)
    params = init_params(kp)

    out = convlayer_forward(x, params)
    out = jax.block_until_ready(out)
    assert out.shape == (B, C_OUT, 1), out.shape
    assert bool(jnp.all(jnp.isfinite(out)))
    print("KERNEL_OK")
</pallas_src>

<mosaic_0001>
module attributes {stable_mosaic.version = 11 : i64} {
  func.func @_convlayer_kernel(%arg0: i32, %arg1: memref<32x3xf32, #tpu.memory_space<vmem>>, %arg2: memref<3x64xf32, #tpu.memory_space<vmem>>, %arg3: memref<1x64xf32, #tpu.memory_space<vmem>>, %arg4: memref<1x64xf32, #tpu.memory_space<vmem>>, %arg5: memref<64x64xbf16, #tpu.memory_space<vmem>>, %arg6: memref<1x64xf32, #tpu.memory_space<vmem>>, %arg7: memref<1x64xf32, #tpu.memory_space<vmem>>, %arg8: memref<64x128xbf16, #tpu.memory_space<vmem>>, %arg9: memref<1x128xf32, #tpu.memory_space<vmem>>, %arg10: memref<1x128xf32, #tpu.memory_space<vmem>>, %arg11: memref<128x256xbf16, #tpu.memory_space<vmem>>, %arg12: memref<1x256xf32, #tpu.memory_space<vmem>>, %arg13: memref<1x256xf32, #tpu.memory_space<vmem>>, %arg14: memref<256x512xbf16, #tpu.memory_space<vmem>>, %arg15: memref<1x512xf32, #tpu.memory_space<vmem>>, %arg16: memref<1x512xf32, #tpu.memory_space<vmem>>, %arg17: memref<512x1024xbf16, #tpu.memory_space<vmem>>, %arg18: memref<1x1024xf32, #tpu.memory_space<vmem>>, %arg19: memref<1x1024xf32, #tpu.memory_space<vmem>>, %arg20: memref<2x1920xf32, #tpu.memory_space<vmem>>) attributes {dimension_semantics = [#tpu.dimension_semantics<arbitrary>], iteration_bounds = array<i64: 1>, scalar_prefetch = 0 : i64, scratch_operands = 0 : i64, tpu.core_type = #tpu.core_type<tc>, window_params = [{pipeline_mode = #tpu.pipeline_mode<synchronous>, transform_indices = @transform_0, window_bounds = array<i64: 32, 3>}, {pipeline_mode = #tpu.pipeline_mode<synchronous>, transform_indices = @transform_1, window_bounds = array<i64: 3, 64>}, {pipeline_mode = #tpu.pipeline_mode<synchronous>, transform_indices = @transform_2, window_bounds = array<i64: 1, 64>}, {pipeline_mode = #tpu.pipeline_mode<synchronous>, transform_indices = @transform_3, window_bounds = array<i64: 1, 64>}, {pipeline_mode = #tpu.pipeline_mode<synchronous>, transform_indices = @transform_4, window_bounds = array<i64: 64, 64>}, {pipeline_mode = #tpu.pipeline_mode<synchronous>, transform_indices = @transform_5, window_bounds = array<i64: 1, 64>}, {pipeline_mode = #tpu.pipeline_mode<synchronous>, transform_indices = @transform_6, window_bounds = array<i64: 1, 64>}, {pipeline_mode = #tpu.pipeline_mode<synchronous>, transform_indices = @transform_7, window_bounds = array<i64: 64, 128>}, {pipeline_mode = #tpu.pipeline_mode<synchronous>, transform_indices = @transform_8, window_bounds = array<i64: 1, 128>}, {pipeline_mode = #tpu.pipeline_mode<synchronous>, transform_indices = @transform_9, window_bounds = array<i64: 1, 128>}, {pipeline_mode = #tpu.pipeline_mode<synchronous>, transform_indices = @transform_10, window_bounds = array<i64: 128, 256>}, {pipeline_mode = #tpu.pipeline_mode<synchronous>, transform_indices = @transform_11, window_bounds = array<i64: 1, 256>}, {pipeline_mode = #tpu.pipeline_mode<synchronous>, transform_indices = @transform_12, window_bounds = array<i64: 1, 256>}, {pipeline_mode = #tpu.pipeline_mode<synchronous>, transform_indices = @transform_13, window_bounds = array<i64: 256, 512>}, {pipeline_mode = #tpu.pipeline_mode<synchronous>, transform_indices = @transform_14, window_bounds = array<i64: 1, 512>}, {pipeline_mode = #tpu.pipeline_mode<synchronous>, transform_indices = @transform_15, window_bounds = array<i64: 1, 512>}, {pipeline_mode = #tpu.pipeline_mode<synchronous>, transform_indices = @transform_16, window_bounds = array<i64: 512, 1024>}, {pipeline_mode = #tpu.pipeline_mode<synchronous>, transform_indices = @transform_17, window_bounds = array<i64: 1, 1024>}, {pipeline_mode = #tpu.pipeline_mode<synchronous>, transform_indices = @transform_18, window_bounds = array<i64: 1, 1024>}, {pipeline_mode = #tpu.pipeline_mode<synchronous>, transform_indices = @transform_19, window_bounds = array<i64: 2, 1920>}]} {
    %c0 = arith.constant 0 : index
    %c0_0 = arith.constant 0 : index
    %0 = vector.load %arg1[%c0, %c0_0] : memref<32x3xf32, #tpu.memory_space<vmem>>, vector<32x3xf32>
    %c0_1 = arith.constant 0 : index
    %c0_2 = arith.constant 0 : index
    %1 = vector.load %arg2[%c0_1, %c0_2] : memref<3x64xf32, #tpu.memory_space<vmem>>, vector<3x64xf32>
    %2 = vector.extract_strided_slice %0 {offsets = [0, 0], sizes = [32, 1], strides = [1, 1]} : vector<32x3xf32> to vector<32x1xf32>
    %3 = vector.extract_strided_slice %1 {offsets = [0, 0], sizes = [1, 64], strides = [1, 1]} : vector<3x64xf32> to vector<1x64xf32>
    %4 = vector.broadcast %2 : vector<32x1xf32> to vector<32x64xf32>
    %5 = vector.broadcast %3 : vector<1x64xf32> to vector<32x64xf32>
    %6 = arith.mulf %4, %5 : vector<32x64xf32>
    %7 = vector.extract_strided_slice %0 {offsets = [0, 1], sizes = [32, 1], strides = [1, 1]} : vector<32x3xf32> to vector<32x1xf32>
    %8 = vector.extract_strided_slice %1 {offsets = [1, 0], sizes = [1, 64], strides = [1, 1]} : vector<3x64xf32> to vector<1x64xf32>
    %9 = vector.broadcast %7 : vector<32x1xf32> to vector<32x64xf32>
    %10 = vector.broadcast %8 : vector<1x64xf32> to vector<32x64xf32>
    %11 = arith.mulf %9, %10 : vector<32x64xf32>
    %12 = arith.addf %6, %11 : vector<32x64xf32>
    %13 = vector.extract_strided_slice %0 {offsets = [0, 2], sizes = [32, 1], strides = [1, 1]} : vector<32x3xf32> to vector<32x1xf32>
    %14 = vector.extract_strided_slice %1 {offsets = [2, 0], sizes = [1, 64], strides = [1, 1]} : vector<3x64xf32> to vector<1x64xf32>
    %15 = vector.broadcast %13 : vector<32x1xf32> to vector<32x64xf32>
    %16 = vector.broadcast %14 : vector<1x64xf32> to vector<32x64xf32>
    %17 = arith.mulf %15, %16 : vector<32x64xf32>
    %18 = arith.addf %12, %17 : vector<32x64xf32>
    %cst = arith.constant dense<0.000000e+00> : vector<64xf32>
    %19 = vector.multi_reduction <add>, %18, %cst [0] : vector<32x64xf32> to vector<64xf32>
    %20 = vector.shape_cast %19 : vector<64xf32> to vector<1x64xf32>
    %cst_3 = arith.constant 3.200000e+01 : f32
    %21 = vector.broadcast %cst_3 : f32 to vector<1x64xf32>
    %22 = arith.divf %20, %21 : vector<1x64xf32>
    %23 = arith.mulf %18, %18 : vector<32x64xf32>
    %cst_4 = arith.constant dense<0.000000e+00> : vector<64xf32>
    %24 = vector.multi_reduction <add>, %23, %cst_4 [0] : vector<32x64xf32> to vector<64xf32>
    %25 = vector.shape_cast %24 : vector<64xf32> to vector<1x64xf32>
    %cst_5 = arith.constant 3.200000e+01 : f32
    %26 = vector.broadcast %cst_5 : f32 to vector<1x64xf32>
    %27 = arith.divf %25, %26 : vector<1x64xf32>
    %28 = arith.mulf %22, %22 : vector<1x64xf32>
    %29 = arith.subf %27, %28 : vector<1x64xf32>
    %cst_6 = arith.constant 0.000000e+00 : f32
    %30 = vector.broadcast %cst_6 : f32 to vector<1x64xf32>
    %31 = arith.maximumf %29, %30 : vector<1x64xf32>
    %c0_7 = arith.constant 0 : index
    %c0_8 = arith.constant 0 : index
    %32 = vector.load %arg3[%c0_7, %c0_8] : memref<1x64xf32, #tpu.memory_space<vmem>>, vector<1x64xf32>
    %cst_9 = arith.constant 9.99999974E-6 : f32
    %33 = vector.broadcast %cst_9 : f32 to vector<1x64xf32>
    %34 = arith.addf %31, %33 : vector<1x64xf32>
    %35 = math.rsqrt %34 : vector<1x64xf32>
    %36 = arith.mulf %32, %35 : vector<1x64xf32>
    %c0_10 = arith.constant 0 : index
    %c0_11 = arith.constant 0 : index
    %37 = vector.load %arg4[%c0_10, %c0_11] : memref<1x64xf32, #tpu.memory_space<vmem>>, vector<1x64xf32>
    %38 = arith.mulf %22, %36 : vector<1x64xf32>
    %39 = arith.subf %37, %38 : vector<1x64xf32>
    %40 = vector.broadcast %36 : vector<1x64xf32> to vector<32x64xf32>
    %41 = arith.mulf %18, %40 : vector<32x64xf32>
    %42 = vector.broadcast %39 : vector<1x64xf32> to vector<32x64xf32>
    %43 = arith.addf %41, %42 : vector<32x64xf32>
    %cst_12 = arith.constant 0.000000e+00 : f32
    %44 = vector.broadcast %cst_12 : f32 to vector<32x64xf32>
    %45 = arith.maximumf %43, %44 : vector<32x64xf32>
    %46 = arith.truncf %45 : vector<32x64xf32> to vector<32x64xbf16>
    %c0_13 = arith.constant 0 : index
    %c0_14 = arith.constant 0 : index
    %47 = vector.load %arg5[%c0_13, %c0_14] : memref<64x64xbf16, #tpu.memory_space<vmem>>, vector<64x64xbf16>
    %cst_15 = arith.constant dense<0.000000e+00> : vector<32x64xf32>
    %48 = tpu.matmul %46, %47, %cst_15 {dimension_numbers = #tpu.dot_dimension_numbers<[1], [0], [0], [1], [0, 0, 1, 1], [], []>} : vector<32x64xbf16>, vector<64x64xbf16>, vector<32x64xf32> -> vector<32x64xf32>
    %cst_16 = arith.constant dense<0.000000e+00> : vector<64xf32>
    %49 = vector.multi_reduction <add>, %48, %cst_16 [0] : vector<32x64xf32> to vector<64xf32>
    %50 = vector.shape_cast %49 : vector<64xf32> to vector<1x64xf32>
    %cst_17 = arith.constant 3.200000e+01 : f32
    %51 = vector.broadcast %cst_17 : f32 to vector<1x64xf32>
    %52 = arith.divf %50, %51 : vector<1x64xf32>
    %53 = arith.mulf %48, %48 : vector<32x64xf32>
    %cst_18 = arith.constant dense<0.000000e+00> : vector<64xf32>
    %54 = vector.multi_reduction <add>, %53, %cst_18 [0] : vector<32x64xf32> to vector<64xf32>
    %55 = vector.shape_cast %54 : vector<64xf32> to vector<1x64xf32>
    %cst_19 = arith.constant 3.200000e+01 : f32
    %56 = vector.broadcast %cst_19 : f32 to vector<1x64xf32>
    %57 = arith.divf %55, %56 : vector<1x64xf32>
    %58 = arith.mulf %52, %52 : vector<1x64xf32>
    %59 = arith.subf %57, %58 : vector<1x64xf32>
    %cst_20 = arith.constant 0.000000e+00 : f32
    %60 = vector.broadcast %cst_20 : f32 to vector<1x64xf32>
    %61 = arith.maximumf %59, %60 : vector<1x64xf32>
    %c0_21 = arith.constant 0 : index
    %c0_22 = arith.constant 0 : index
    %62 = vector.load %arg6[%c0_21, %c0_22] : memref<1x64xf32, #tpu.memory_space<vmem>>, vector<1x64xf32>
    %cst_23 = arith.constant 9.99999974E-6 : f32
    %63 = vector.broadcast %cst_23 : f32 to vector<1x64xf32>
    %64 = arith.addf %61, %63 : vector<1x64xf32>
    %65 = math.rsqrt %64 : vector<1x64xf32>
    %66 = arith.mulf %62, %65 : vector<1x64xf32>
    %c0_24 = arith.constant 0 : index
    %c0_25 = arith.constant 0 : index
    %67 = vector.load %arg7[%c0_24, %c0_25] : memref<1x64xf32, #tpu.memory_space<vmem>>, vector<1x64xf32>
    %68 = arith.mulf %52, %66 : vector<1x64xf32>
    %69 = arith.subf %67, %68 : vector<1x64xf32>
    %70 = vector.broadcast %66 : vector<1x64xf32> to vector<32x64xf32>
    %71 = arith.mulf %48, %70 : vector<32x64xf32>
    %72 = vector.broadcast %69 : vector<1x64xf32> to vector<32x64xf32>
    %73 = arith.addf %71, %72 : vector<32x64xf32>
    %cst_26 = arith.constant 0.000000e+00 : f32
    %74 = vector.broadcast %cst_26 : f32 to vector<32x64xf32>
    %75 = arith.maximumf %73, %74 : vector<32x64xf32>
    %76 = arith.truncf %75 : vector<32x64xf32> to vector<32x64xbf16>
    %c0_27 = arith.constant 0 : index
    %c0_28 = arith.constant 0 : index
    %77 = vector.load %arg8[%c0_27, %c0_28] : memref<64x128xbf16, #tpu.memory_space<vmem>>, vector<64x128xbf16>
    %cst_29 = arith.constant dense<0.000000e+00> : vector<32x128xf32>
    %78 = tpu.matmul %76, %77, %cst_29 {dimension_numbers = #tpu.dot_dimension_numbers<[1], [0], [0], [1], [0, 0, 1, 1], [], []>} : vector<32x64xbf16>, vector<64x128xbf16>, vector<32x128xf32> -> vector<32x128xf32>
    %cst_30 = arith.constant dense<0.000000e+00> : vector<128xf32>
    %79 = vector.multi_reduction <add>, %78, %cst_30 [0] : vector<32x128xf32> to vector<128xf32>
    %80 = vector.shape_cast %79 : vector<128xf32> to vector<1x128xf32>
    %cst_31 = arith.constant 3.200000e+01 : f32
    %81 = vector.broadcast %cst_31 : f32 to vector<1x128xf32>
    %82 = arith.divf %80, %81 : vector<1x128xf32>
    %83 = arith.mulf %78, %78 : vector<32x128xf32>
    %cst_32 = arith.constant dense<0.000000e+00> : vector<128xf32>
    %84 = vector.multi_reduction <add>, %83, %cst_32 [0] : vector<32x128xf32> to vector<128xf32>
    %85 = vector.shape_cast %84 : vector<128xf32> to vector<1x128xf32>
    %cst_33 = arith.constant 3.200000e+01 : f32
    %86 = vector.broadcast %cst_33 : f32 to vector<1x128xf32>
    %87 = arith.divf %85, %86 : vector<1x128xf32>
    %88 = arith.mulf %82, %82 : vector<1x128xf32>
    %89 = arith.subf %87, %88 : vector<1x128xf32>
    %cst_34 = arith.constant 0.000000e+00 : f32
    %90 = vector.broadcast %cst_34 : f32 to vector<1x128xf32>
    %91 = arith.maximumf %89, %90 : vector<1x128xf32>
    %c0_35 = arith.constant 0 : index
    %c0_36 = arith.constant 0 : index
    %92 = vector.load %arg9[%c0_35, %c0_36] : memref<1x128xf32, #tpu.memory_space<vmem>>, vector<1x128xf32>
    %cst_37 = arith.constant 9.99999974E-6 : f32
    %93 = vector.broadcast %cst_37 : f32 to vector<1x128xf32>
    %94 = arith.addf %91, %93 : vector<1x128xf32>
    %95 = math.rsqrt %94 : vector<1x128xf32>
    %96 = arith.mulf %92, %95 : vector<1x128xf32>
    %c0_38 = arith.constant 0 : index
    %c0_39 = arith.constant 0 : index
    %97 = vector.load %arg10[%c0_38, %c0_39] : memref<1x128xf32, #tpu.memory_space<vmem>>, vector<1x128xf32>
    %98 = arith.mulf %82, %96 : vector<1x128xf32>
    %99 = arith.subf %97, %98 : vector<1x128xf32>
    %100 = vector.broadcast %96 : vector<1x128xf32> to vector<32x128xf32>
    %101 = arith.mulf %78, %100 : vector<32x128xf32>
    %102 = vector.broadcast %99 : vector<1x128xf32> to vector<32x128xf32>
    %103 = arith.addf %101, %102 : vector<32x128xf32>
    %cst_40 = arith.constant 0.000000e+00 : f32
    %104 = vector.broadcast %cst_40 : f32 to vector<32x128xf32>
    %105 = arith.maximumf %103, %104 : vector<32x128xf32>
    %106 = vector.shape_cast %105 : vector<32x128xf32> to vector<2x16x128xf32>
    %cst_41 = arith.constant dense<0xFF800000> : vector<2x128xf32>
    %107 = vector.multi_reduction <maximumf>, %106, %cst_41 [1] : vector<2x16x128xf32> to vector<2x128xf32>
    %108 = arith.truncf %105 : vector<32x128xf32> to vector<32x128xbf16>
    %c0_42 = arith.constant 0 : index
    %c0_43 = arith.constant 0 : index
    %109 = vector.load %arg11[%c0_42, %c0_43] : memref<128x256xbf16, #tpu.memory_space<vmem>>, vector<128x256xbf16>
    %cst_44 = arith.constant dense<0.000000e+00> : vector<32x256xf32>
    %110 = tpu.matmul %108, %109, %cst_44 {dimension_numbers = #tpu.dot_dimension_numbers<[1], [0], [0], [1], [0, 0, 1, 1], [], []>} : vector<32x128xbf16>, vector<128x256xbf16>, vector<32x256xf32> -> vector<32x256xf32>
    %cst_45 = arith.constant dense<0.000000e+00> : vector<256xf32>
    %111 = vector.multi_reduction <add>, %110, %cst_45 [0] : vector<32x256xf32> to vector<256xf32>
    %112 = vector.shape_cast %111 : vector<256xf32> to vector<1x256xf32>
    %cst_46 = arith.constant 3.200000e+01 : f32
    %113 = vector.broadcast %cst_46 : f32 to vector<1x256xf32>
    %114 = arith.divf %112, %113 : vector<1x256xf32>
    %115 = arith.mulf %110, %110 : vector<32x256xf32>
    %cst_47 = arith.constant dense<0.000000e+00> : vector<256xf32>
    %116 = vector.multi_reduction <add>, %115, %cst_47 [0] : vector<32x256xf32> to vector<256xf32>
    %117 = vector.shape_cast %116 : vector<256xf32> to vector<1x256xf32>
    %cst_48 = arith.constant 3.200000e+01 : f32
    %118 = vector.broadcast %cst_48 : f32 to vector<1x256xf32>
    %119 = arith.divf %117, %118 : vector<1x256xf32>
    %120 = arith.mulf %114, %114 : vector<1x256xf32>
    %121 = arith.subf %119, %120 : vector<1x256xf32>
    %cst_49 = arith.constant 0.000000e+00 : f32
    %122 = vector.broadcast %cst_49 : f32 to vector<1x256xf32>
    %123 = arith.maximumf %121, %122 : vector<1x256xf32>
    %c0_50 = arith.constant 0 : index
    %c0_51 = arith.constant 0 : index
    %124 = vector.load %arg12[%c0_50, %c0_51] : memref<1x256xf32, #tpu.memory_space<vmem>>, vector<1x256xf32>
    %cst_52 = arith.constant 9.99999974E-6 : f32
    %125 = vector.broadcast %cst_52 : f32 to vector<1x256xf32>
    %126 = arith.addf %123, %125 : vector<1x256xf32>
    %127 = math.rsqrt %126 : vector<1x256xf32>
    %128 = arith.mulf %124, %127 : vector<1x256xf32>
    %c0_53 = arith.constant 0 : index
    %c0_54 = arith.constant 0 : index
    %129 = vector.load %arg13[%c0_53, %c0_54] : memref<1x256xf32, #tpu.memory_space<vmem>>, vector<1x256xf32>
    %130 = arith.mulf %114, %128 : vector<1x256xf32>
    %131 = arith.subf %129, %130 : vector<1x256xf32>
    %132 = vector.broadcast %128 : vector<1x256xf32> to vector<32x256xf32>
    %133 = arith.mulf %110, %132 : vector<32x256xf32>
    %134 = vector.broadcast %131 : vector<1x256xf32> to vector<32x256xf32>
    %135 = arith.addf %133, %134 : vector<32x256xf32>
    %cst_55 = arith.constant 0.000000e+00 : f32
    %136 = vector.broadcast %cst_55 : f32 to vector<32x256xf32>
    %137 = arith.maximumf %135, %136 : vector<32x256xf32>
    %138 = vector.shape_cast %137 : vector<32x256xf32> to vector<2x16x256xf32>
    %cst_56 = arith.constant dense<0xFF800000> : vector<2x256xf32>
    %139 = vector.multi_reduction <maximumf>, %138, %cst_56 [1] : vector<2x16x256xf32> to vector<2x256xf32>
    %140 = arith.truncf %137 : vector<32x256xf32> to vector<32x256xbf16>
    %c0_57 = arith.constant 0 : index
    %c0_58 = arith.constant 0 : index
    %141 = vector.load %arg14[%c0_57, %c0_58] : memref<256x512xbf16, #tpu.memory_space<vmem>>, vector<256x512xbf16>
    %cst_59 = arith.constant dense<0.000000e+00> : vector<32x512xf32>
    %142 = tpu.matmul %140, %141, %cst_59 {dimension_numbers = #tpu.dot_dimension_numbers<[1], [0], [0], [1], [0, 0, 1, 1], [], []>} : vector<32x256xbf16>, vector<256x512xbf16>, vector<32x512xf32> -> vector<32x512xf32>
    %cst_60 = arith.constant dense<0.000000e+00> : vector<512xf32>
    %143 = vector.multi_reduction <add>, %142, %cst_60 [0] : vector<32x512xf32> to vector<512xf32>
    %144 = vector.shape_cast %143 : vector<512xf32> to vector<1x512xf32>
    %cst_61 = arith.constant 3.200000e+01 : f32
    %145 = vector.broadcast %cst_61 : f32 to vector<1x512xf32>
    %146 = arith.divf %144, %145 : vector<1x512xf32>
    %147 = arith.mulf %142, %142 : vector<32x512xf32>
    %cst_62 = arith.constant dense<0.000000e+00> : vector<512xf32>
    %148 = vector.multi_reduction <add>, %147, %cst_62 [0] : vector<32x512xf32> to vector<512xf32>
    %149 = vector.shape_cast %148 : vector<512xf32> to vector<1x512xf32>
    %cst_63 = arith.constant 3.200000e+01 : f32
    %150 = vector.broadcast %cst_63 : f32 to vector<1x512xf32>
    %151 = arith.divf %149, %150 : vector<1x512xf32>
    %152 = arith.mulf %146, %146 : vector<1x512xf32>
    %153 = arith.subf %151, %152 : vector<1x512xf32>
    %cst_64 = arith.constant 0.000000e+00 : f32
    %154 = vector.broadcast %cst_64 : f32 to vector<1x512xf32>
    %155 = arith.maximumf %153, %154 : vector<1x512xf32>
    %c0_65 = arith.constant 0 : index
    %c0_66 = arith.constant 0 : index
    %156 = vector.load %arg15[%c0_65, %c0_66] : memref<1x512xf32, #tpu.memory_space<vmem>>, vector<1x512xf32>
    %cst_67 = arith.constant 9.99999974E-6 : f32
    %157 = vector.broadcast %cst_67 : f32 to vector<1x512xf32>
    %158 = arith.addf %155, %157 : vector<1x512xf32>
    %159 = math.rsqrt %158 : vector<1x512xf32>
    %160 = arith.mulf %156, %159 : vector<1x512xf32>
    %c0_68 = arith.constant 0 : index
    %c0_69 = arith.constant 0 : index
    %161 = vector.load %arg16[%c0_68, %c0_69] : memref<1x512xf32, #tpu.memory_space<vmem>>, vector<1x512xf32>
    %162 = arith.mulf %146, %160 : vector<1x512xf32>
    %163 = arith.subf %161, %162 : vector<1x512xf32>
    %164 = vector.broadcast %160 : vector<1x512xf32> to vector<32x512xf32>
    %165 = arith.mulf %142, %164 : vector<32x512xf32>
    %166 = vector.broadcast %163 : vector<1x512xf32> to vector<32x512xf32>
    %167 = arith.addf %165, %166 : vector<32x512xf32>
    %cst_70 = arith.constant 0.000000e+00 : f32
    %168 = vector.broadcast %cst_70 : f32 to vector<32x512xf32>
    %169 = arith.maximumf %167, %168 : vector<32x512xf32>
    %170 = vector.shape_cast %169 : vector<32x512xf32> to vector<2x16x512xf32>
    %cst_71 = arith.constant dense<0xFF800000> : vector<2x512xf32>
    %171 = vector.multi_reduction <maximumf>, %170, %cst_71 [1] : vector<2x16x512xf32> to vector<2x512xf32>
    %172 = arith.truncf %169 : vector<32x512xf32> to vector<32x512xbf16>
    %c0_72 = arith.constant 0 : index
    %c0_73 = arith.constant 0 : index
    %173 = vector.load %arg17[%c0_72, %c0_73] : memref<512x1024xbf16, #tpu.memory_space<vmem>>, vector<512x1024xbf16>
    %cst_74 = arith.constant dense<0.000000e+00> : vector<32x1024xf32>
    %174 = tpu.matmul %172, %173, %cst_74 {dimension_numbers = #tpu.dot_dimension_numbers<[1], [0], [0], [1], [0, 0, 1, 1], [], []>} : vector<32x512xbf16>, vector<512x1024xbf16>, vector<32x1024xf32> -> vector<32x1024xf32>
    %cst_75 = arith.constant dense<0.000000e+00> : vector<1024xf32>
    %175 = vector.multi_reduction <add>, %174, %cst_75 [0] : vector<32x1024xf32> to vector<1024xf32>
    %176 = vector.shape_cast %175 : vector<1024xf32> to vector<1x1024xf32>
    %cst_76 = arith.constant 3.200000e+01 : f32
    %177 = vector.broadcast %cst_76 : f32 to vector<1x1024xf32>
    %178 = arith.divf %176, %177 : vector<1x1024xf32>
    %179 = arith.mulf %174, %174 : vector<32x1024xf32>
    %cst_77 = arith.constant dense<0.000000e+00> : vector<1024xf32>
    %180 = vector.multi_reduction <add>, %179, %cst_77 [0] : vector<32x1024xf32> to vector<1024xf32>
    %181 = vector.shape_cast %180 : vector<1024xf32> to vector<1x1024xf32>
    %cst_78 = arith.constant 3.200000e+01 : f32
    %182 = vector.broadcast %cst_78 : f32 to vector<1x1024xf32>
    %183 = arith.divf %181, %182 : vector<1x1024xf32>
    %184 = arith.mulf %178, %178 : vector<1x1024xf32>
    %185 = arith.subf %183, %184 : vector<1x1024xf32>
    %cst_79 = arith.constant 0.000000e+00 : f32
    %186 = vector.broadcast %cst_79 : f32 to vector<1x1024xf32>
    %187 = arith.maximumf %185, %186 : vector<1x1024xf32>
    %c0_80 = arith.constant 0 : index
    %c0_81 = arith.constant 0 : index
    %188 = vector.load %arg18[%c0_80, %c0_81] : memref<1x1024xf32, #tpu.memory_space<vmem>>, vector<1x1024xf32>
    %cst_82 = arith.constant 9.99999974E-6 : f32
    %189 = vector.broadcast %cst_82 : f32 to vector<1x1024xf32>
    %190 = arith.addf %187, %189 : vector<1x1024xf32>
    %191 = math.rsqrt %190 : vector<1x1024xf32>
    %192 = arith.mulf %188, %191 : vector<1x1024xf32>
    %c0_83 = arith.constant 0 : index
    %c0_84 = arith.constant 0 : index
    %193 = vector.load %arg19[%c0_83, %c0_84] : memref<1x1024xf32, #tpu.memory_space<vmem>>, vector<1x1024xf32>
    %194 = arith.mulf %178, %192 : vector<1x1024xf32>
    %195 = arith.subf %193, %194 : vector<1x1024xf32>
    %196 = vector.broadcast %192 : vector<1x1024xf32> to vector<32x1024xf32>
    %197 = arith.mulf %174, %196 : vector<32x1024xf32>
    %198 = vector.broadcast %195 : vector<1x1024xf32> to vector<32x1024xf32>
    %199 = arith.addf %197, %198 : vector<32x1024xf32>
    %cst_85 = arith.constant 0.000000e+00 : f32
    %200 = vector.broadcast %cst_85 : f32 to vector<32x1024xf32>
    %201 = arith.maximumf %199, %200 : vector<32x1024xf32>
    %202 = vector.shape_cast %201 : vector<32x1024xf32> to vector<2x16x1024xf32>
    %cst_86 = arith.constant dense<0xFF800000> : vector<2x1024xf32>
    %203 = vector.multi_reduction <maximumf>, %202, %cst_86 [1] : vector<2x16x1024xf32> to vector<2x1024xf32>
    %204 = tpu.concatenate %203, %171, %139, %107 in 1 : vector<2x1024xf32>, vector<2x512xf32>, vector<2x256xf32>, vector<2x128xf32> -> vector<2x1920xf32>
    %c0_87 = arith.constant 0 : index
    %c0_88 = arith.constant 0 : index
    %205 = vector.load %arg20[%c0_87, %c0_88] : memref<2x1920xf32, #tpu.memory_space<vmem>>, vector<2x1920xf32>
    tpu.vector_store %arg20[%c0_87, %c0_88], %204 {strides = array<i32>} : memref<2x1920xf32, #tpu.memory_space<vmem>>, vector<2x1920xf32>,
    return
  }
  func.func @transform_0(%arg0: i32) -> (i32, i32) {
    %c0_i32 = arith.constant 0 : i32
    %c0_i32_0 = arith.constant 0 : i32
    %c0_i32_1 = arith.constant 0 : i32
    return %c0_i32, %c0_i32_0 : i32, i32
  }
  func.func @transform_1(%arg0: i32) -> (i32, i32) {
    %c0_i32 = arith.constant 0 : i32
    %c0_i32_0 = arith.constant 0 : i32
    %c0_i32_1 = arith.constant 0 : i32
    return %c0_i32, %c0_i32_0 : i32, i32
  }
  func.func @transform_2(%arg0: i32) -> (i32, i32) {
    %c0_i32 = arith.constant 0 : i32
    %c0_i32_0 = arith.constant 0 : i32
    %c0_i32_1 = arith.constant 0 : i32
    return %c0_i32, %c0_i32_0 : i32, i32
  }
  func.func @transform_3(%arg0: i32) -> (i32, i32) {
    %c0_i32 = arith.constant 0 : i32
    %c0_i32_0 = arith.constant 0 : i32
    %c0_i32_1 = arith.constant 0 : i32
    return %c0_i32, %c0_i32_0 : i32, i32
  }
  func.func @transform_4(%arg0: i32) -> (i32, i32) {
    %c0_i32 = arith.constant 0 : i32
    %c0_i32_0 = arith.constant 0 : i32
    %c0_i32_1 = arith.constant 0 : i32
    return %c0_i32, %c0_i32_0 : i32, i32
  }
  func.func @transform_5(%arg0: i32) -> (i32, i32) {
    %c0_i32 = arith.constant 0 : i32
    %c0_i32_0 = arith.constant 0 : i32
    %c0_i32_1 = arith.constant 0 : i32
    return %c0_i32, %c0_i32_0 : i32, i32
  }
  func.func @transform_6(%arg0: i32) -> (i32, i32) {
    %c0_i32 = arith.constant 0 : i32
    %c0_i32_0 = arith.constant 0 : i32
    %c0_i32_1 = arith.constant 0 : i32
    return %c0_i32, %c0_i32_0 : i32, i32
  }
  func.func @transform_7(%arg0: i32) -> (i32, i32) {
    %c0_i32 = arith.constant 0 : i32
    %c0_i32_0 = arith.constant 0 : i32
    %c0_i32_1 = arith.constant 0 : i32
    return %c0_i32, %c0_i32_0 : i32, i32
  }
  func.func @transform_8(%arg0: i32) -> (i32, i32) {
    %c0_i32 = arith.constant 0 : i32
    %c0_i32_0 = arith.constant 0 : i32
    %c0_i32_1 = arith.constant 0 : i32
    return %c0_i32, %c0_i32_0 : i32, i32
  }
  func.func @transform_9(%arg0: i32) -> (i32, i32) {
    %c0_i32 = arith.constant 0 : i32
    %c0_i32_0 = arith.constant 0 : i32
    %c0_i32_1 = arith.constant 0 : i32
    return %c0_i32, %c0_i32_0 : i32, i32
  }
  func.func @transform_10(%arg0: i32) -> (i32, i32) {
    %c0_i32 = arith.constant 0 : i32
    %c0_i32_0 = arith.constant 0 : i32
    %c0_i32_1 = arith.constant 0 : i32
    return %c0_i32, %c0_i32_0 : i32, i32
  }
  func.func @transform_11(%arg0: i32) -> (i32, i32) {
    %c0_i32 = arith.constant 0 : i32
    %c0_i32_0 = arith.constant 0 : i32
    %c0_i32_1 = arith.constant 0 : i32
    return %c0_i32, %c0_i32_0 : i32, i32
  }
  func.func @transform_12(%arg0: i32) -> (i32, i32) {
    %c0_i32 = arith.constant 0 : i32
    %c0_i32_0 = arith.constant 0 : i32
    %c0_i32_1 = arith.constant 0 : i32
    return %c0_i32, %c0_i32_0 : i32, i32
  }
  func.func @transform_13(%arg0: i32) -> (i32, i32) {
    %c0_i32 = arith.constant 0 : i32
    %c0_i32_0 = arith.constant 0 : i32
    %c0_i32_1 = arith.constant 0 : i32
    return %c0_i32, %c0_i32_0 : i32, i32
  }
  func.func @transform_14(%arg0: i32) -> (i32, i32) {
    %c0_i32 = arith.constant 0 : i32
    %c0_i32_0 = arith.constant 0 : i32
    %c0_i32_1 = arith.constant 0 : i32
    return %c0_i32, %c0_i32_0 : i32, i32
  }
  func.func @transform_15(%arg0: i32) -> (i32, i32) {
    %c0_i32 = arith.constant 0 : i32
    %c0_i32_0 = arith.constant 0 : i32
    %c0_i32_1 = arith.constant 0 : i32
    return %c0_i32, %c0_i32_0 : i32, i32
  }
  func.func @transform_16(%arg0: i32) -> (i32, i32) {
    %c0_i32 = arith.constant 0 : i32
    %c0_i32_0 = arith.constant 0 : i32
    %c0_i32_1 = arith.constant 0 : i32
    return %c0_i32, %c0_i32_0 : i32, i32
  }
  func.func @transform_17(%arg0: i32) -> (i32, i32) {
    %c0_i32 = arith.constant 0 : i32
    %c0_i32_0 = arith.constant 0 : i32
    %c0_i32_1 = arith.constant 0 : i32
    return %c0_i32, %c0_i32_0 : i32, i32
  }
  func.func @transform_18(%arg0: i32) -> (i32, i32) {
    %c0_i32 = arith.constant 0 : i32
    %c0_i32_0 = arith.constant 0 : i32
    %c0_i32_1 = arith.constant 0 : i32
    return %c0_i32, %c0_i32_0 : i32, i32
  }
  func.func @transform_19(%arg0: i32) -> (i32, i32) {
    %c0_i32 = arith.constant 0 : i32
    %c0_i32_0 = arith.constant 0 : i32
    %c0_i32_1 = arith.constant 0 : i32
    return %c0_i32, %c0_i32_0 : i32, i32
  }
}

</mosaic_0001>

<llo_original>
// kernel: tpu_custom_call.1
$region0: #{tpu_custom_call.1}
  #allocation0 [shape = 'u32[]', space=smem, size = 0x4, offset = 0x4, fixed_abs, tag = 'smem constant byte address 0x4 - core index']
  #allocation1 [shape = 'u32[144,128]{1,0:T(1,128)}', space=vmem, size = 0x12000, scoped, tag = 'internal scratch']
  %s0 = inlined_call_operand.vmem [shape: f32[32,3], index: 0, kind: input, shape index: {}]
  %s1 = inlined_call_operand.hbm [shape: f32[3,64], index: 1, kind: input, shape index: {}]
  %s2 = inlined_call_operand.hbm [shape: f32[1,64], index: 2, kind: input, shape index: {}]
  %s3 = inlined_call_operand.hbm [shape: f32[1,64], index: 3, kind: input, shape index: {}]
  %s4 = inlined_call_operand.vmem [shape: bf16[64,64], index: 4, kind: input, shape index: {}]
  %s5 = inlined_call_operand.hbm [shape: f32[1,64], index: 5, kind: input, shape index: {}]
  %s6 = inlined_call_operand.hbm [shape: f32[1,64], index: 6, kind: input, shape index: {}]
  %s7 = inlined_call_operand.hbm [shape: bf16[64,128], index: 7, kind: input, shape index: {}]
  %s8 = inlined_call_operand.hbm [shape: f32[1,128], index: 8, kind: input, shape index: {}]
  %s9 = inlined_call_operand.hbm [shape: f32[1,128], index: 9, kind: input, shape index: {}]
  %s10 = inlined_call_operand.hbm [shape: bf16[128,256], index: 10, kind: input, shape index: {}]
  %s11 = inlined_call_operand.hbm [shape: f32[1,256], index: 11, kind: input, shape index: {}]
  %s12 = inlined_call_operand.hbm [shape: f32[1,256], index: 12, kind: input, shape index: {}]
  %s13 = inlined_call_operand.hbm [shape: bf16[256,512], index: 13, kind: input, shape index: {}]
  %s14 = inlined_call_operand.vmem [shape: f32[1,512], index: 14, kind: input, shape index: {}]
  %s15 = inlined_call_operand.vmem [shape: f32[1,512], index: 15, kind: input, shape index: {}]
  %s16 = inlined_call_operand.hbm [shape: bf16[512,1024], index: 16, kind: input, shape index: {}]
  %s17 = inlined_call_operand.vmem [shape: f32[1,1024], index: 17, kind: input, shape index: {}]
  %s18 = inlined_call_operand.vmem [shape: f32[1,1024], index: 18, kind: input, shape index: {}]
  %s19 = inlined_call_operand.hbm [shape: f32[2,1920], index: 19, kind: output, shape index: {}]
  %s20 = sld [smem:[#allocation0]]
  $region138: #{tpu_custom_call.1} parent=0
    _
  %s22 = ssub.s32 1, %s20
  %s23 = scalar_select 0, %s22, %s20
  $region1: #{tpu_custom_call.1} parent=0
    #allocation2 [shape = 'u8[2048]{0}', space=vmem, size = 0x800, scoped, tag = 'input window, operand 1, single buffered']
    #allocation3 [shape = 's32[1]{0}', space=sflag, size = 0x4, scoped, tag = 'scoped memory for tpu_custom_call.1']
    #allocation4 [shape = 's32[1]{0}', space=sflag, size = 0x4, scoped, tag = 'scoped memory for tpu_custom_call.1']
    #allocation5 [shape = 'u8[512]{0}', space=vmem, size = 0x400, scoped, tag = 'input window, operand 2, single buffered']
    #allocation6 [shape = 's32[1]{0}', space=sflag, size = 0x4, scoped, tag = 'scoped memory for tpu_custom_call.1']
    #allocation7 [shape = 'u8[512]{0}', space=vmem, size = 0x400, scoped, tag = 'input window, operand 3, single buffered']
    #allocation8 [shape = 'u8[512]{0}', space=vmem, size = 0x400, scoped, tag = 'input window, operand 5, single buffered']
    #allocation9 [shape = 's32[1]{0}', space=sflag, size = 0x4, scoped, tag = 'scoped memory for tpu_custom_call.1']
    #allocation10 [shape = 'u8[512]{0}', space=vmem, size = 0x400, scoped, tag = 'input window, operand 6, single buffered']
    #allocation11 [shape = 'u8[16384]{0}', space=vmem, size = 0x4000, scoped, tag = 'input window, operand 7, single buffered']
    #allocation12 [shape = 's32[1]{0}', space=sflag, size = 0x4, scoped, tag = 'scoped memory for tpu_custom_call.1']
    #allocation13 [shape = 'u8[512]{0}', space=vmem, size = 0x400, scoped, tag = 'input window, operand 8, single buffered']
    #allocation14 [shape = 'u8[512]{0}', space=vmem, size = 0x400, scoped, tag = 'input window, operand 9, single buffered']
    #allocation15 [shape = 's32[1]{0}', space=sflag, size = 0x4, scoped, tag = 'scoped memory for tpu_custom_call.1']
    #allocation16 [shape = 'u8[65536]{0}', space=vmem, size = 0x10000, scoped, tag = 'input window, operand 10, single buffered']
    #allocation17 [shape = 'u8[1024]{0}', space=vmem, size = 0x400, scoped, tag = 'input window, operand 11, single buffered']
    #allocation18 [shape = 's32[1]{0}', space=sflag, size = 0x4, scoped, tag = 'scoped memory for tpu_custom_call.1']
    #allocation19 [shape = 'u8[1024]{0}', space=vmem, size = 0x400, scoped, tag = 'input window, operand 12, single buffered']
    #allocation20 [shape = 'u8[262144]{0}', space=vmem, size = 0x40000, scoped, tag = 'input window, operand 13, single buffered']
    #allocation21 [shape = 's32[1]{0}', space=sflag, size = 0x4, scoped, tag = 'scoped memory for tpu_custom_call.1']
    #allocation22 [shape = 'u8[1048576]{0}', space=vmem, size = 0x100000, scoped, tag = 'input window, operand 16, single buffered']
    #allocation23 [shape = 'u8[15360]{0}', space=vmem, size = 0x3c00, scoped, tag = 'output window, operand 0, single buffered']
    %24 = vsyncpa [#allocation3], 0
    %25 = vsyncpa [#allocation6], 0
    %26 = vsyncpa [#allocation9], 0
    %27 = vsyncpa [#allocation12], 0
    %28 = vsyncpa [#allocation15], 0
    %29 = vsyncpa [#allocation18], 0
    %30 = vsyncpa [#allocation21], 0
    %31 = vsyncpa [#allocation4], 0
    // Predicated region
    $region2: #{tpu_custom_call.1} parent=1 // pred_check
      _
    $region3: #{tpu_custom_call.1} parent=1 // pred_check_branch
      %33 = sbr.rel (0) target = $region5
    $region4: #{tpu_custom_call.1} parent=1 // pred_region
      _
    $region5: #{tpu_custom_call.1} parent=1 // pred_fallthru
      _
    // Predicated region
    $region6: #{tpu_custom_call.1} parent=1 // pred_check
      _
    $region7: #{tpu_custom_call.1} parent=1 // pred_check_branch
      %35 = sbr.rel (0) target = $region9
    $region8: #{tpu_custom_call.1} parent=1 // pred_region
      %s37 = ssub.s32 64, 64
      %38 = vsyncadd [#allocation3], %s37
      %s40 = sshll.u32 [#allocation2], 4
      %s41 = int_to_ptr.vmem [resolvable:$true] %s40
      %43 = dma.hbm_to_vmem [thread:$0]  %s1, 64, %s41, [#allocation3]
    $region9: #{tpu_custom_call.1} parent=1 // pred_fallthru
      _
    // Predicated region
    $region10: #{tpu_custom_call.1} parent=1 // pred_check
      _
    $region11: #{tpu_custom_call.1} parent=1 // pred_check_branch
      %45 = sbr.rel (0) target = $region13
    $region12: #{tpu_custom_call.1} parent=1 // pred_region
      %s47 = ssub.s32 16, 16
      %48 = vsyncadd [#allocation6], %s47
      %s50 = sshll.u32 [#allocation5], 4
      %s51 = int_to_ptr.vmem [resolvable:$true] %s50
      %53 = dma.hbm_to_vmem [thread:$0]  %s2, 16, %s51, [#allocation6]
    $region13: #{tpu_custom_call.1} parent=1 // pred_fallthru
      _
    // Predicated region
    $region14: #{tpu_custom_call.1} parent=1 // pred_check
      _
    $region15: #{tpu_custom_call.1} parent=1 // pred_check_branch
      %55 = sbr.rel (0) target = $region17
    $region16: #{tpu_custom_call.1} parent=1 // pred_region
      %s57 = ssub.s32 16, 16
      %58 = vsyncadd [#allocation6], %s57
      %s60 = sshll.u32 [#allocation7], 4
      %s61 = int_to_ptr.vmem [resolvable:$true] %s60
      %63 = dma.hbm_to_vmem [thread:$0]  %s3, 16, %s61, [#allocation6]
    $region17: #{tpu_custom_call.1} parent=1 // pred_fallthru
      _
    // Predicated region
    $region18: #{tpu_custom_call.1} parent=1 // pred_check
      _
    $region19: #{tpu_custom_call.1} parent=1 // pred_check_branch
      %65 = sbr.rel (0) target = $region21
    $region20: #{tpu_custom_call.1} parent=1 // pred_region
      _
    $region21: #{tpu_custom_call.1} parent=1 // pred_fallthru
      _
    // Predicated region
    $region22: #{tpu_custom_call.1} parent=1 // pred_check
      _
    $region23: #{tpu_custom_call.1} parent=1 // pred_check_branch
      %67 = sbr.rel (0) target = $region25
    $region24: #{tpu_custom_call.1} parent=1 // pred_region
      %s69 = ssub.s32 16, 16
      %70 = vsyncadd [#allocation9], %s69
      %s72 = sshll.u32 [#allocation8], 4
      %s73 = int_to_ptr.vmem [resolvable:$true] %s72
      %75 = dma.hbm_to_vmem [thread:$0]  %s5, 16, %s73, [#allocation9]
    $region25: #{tpu_custom_call.1} parent=1 // pred_fallthru
      _
    // Predicated region
    $region26: #{tpu_custom_call.1} parent=1 // pred_check
      _
    $region27: #{tpu_custom_call.1} parent=1 // pred_check_branch
      %77 = sbr.rel (0) target = $region29
    $region28: #{tpu_custom_call.1} parent=1 // pred_region
      %s79 = ssub.s32 16, 16
      %80 = vsyncadd [#allocation9], %s79
      %s82 = sshll.u32 [#allocation10], 4
      %s83 = int_to_ptr.vmem [resolvable:$true] %s82
      %85 = dma.hbm_to_vmem [thread:$0]  %s6, 16, %s83, [#allocation9]
    $region29: #{tpu_custom_call.1} parent=1 // pred_fallthru
      _
    // Predicated region
    $region30: #{tpu_custom_call.1} parent=1 // pred_check
      _
    $region31: #{tpu_custom_call.1} parent=1 // pred_check_branch
      %87 = sbr.rel (0) target = $region33
    $region32: #{tpu_custom_call.1} parent=1 // pred_region
      %s89 = ssub.s32 512, 512
      %90 = vsyncadd [#allocation12], %s89
      %s91 = sshll.u32 [#allocation11], 4
      %s92 = int_to_ptr.vmem [resolvable:$true] %s91
      %97 = dma.hbm_to_vmem [thread:$0]  %s7, 512, %s92, [#allocation12], 64, 64, 4
    $region33: #{tpu_custom_call.1} parent=1 // pred_fallthru
      _
    // Predicated region
    $region34: #{tpu_custom_call.1} parent=1 // pred_check
      _
    $region35: #{tpu_custom_call.1} parent=1 // pred_check_branch
      %99 = sbr.rel (0) target = $region37
    $region36: #{tpu_custom_call.1} parent=1 // pred_region
      %s101 = ssub.s32 16, 16
      %102 = vsyncadd [#allocation12], %s101
      %s104 = sshll.u32 [#allocation13], 4
      %s105 = int_to_ptr.vmem [resolvable:$true] %s104
      %107 = dma.hbm_to_vmem [thread:$0]  %s8, 16, %s105, [#allocation12]
    $region37: #{tpu_custom_call.1} parent=1 // pred_fallthru
      _
    // Predicated region
    $region38: #{tpu_custom_call.1} parent=1 // pred_check
      _
    $region39: #{tpu_custom_call.1} parent=1 // pred_check_branch
      %109 = sbr.rel (0) target = $region41
    $region40: #{tpu_custom_call.1} parent=1 // pred_region
      %s111 = ssub.s32 16, 16
      %112 = vsyncadd [#allocation15], %s111
      %s114 = sshll.u32 [#allocation14], 4
      %s115 = int_to_ptr.vmem [resolvable:$true] %s114
      %117 = dma.hbm_to_vmem [thread:$0]  %s9, 16, %s115, [#allocation15]
    $region41: #{tpu_custom_call.1} parent=1 // pred_fallthru
      _
    // Predicated region
    $region42: #{tpu_custom_call.1} parent=1 // pred_check
      _
    $region43: #{tpu_custom_call.1} parent=1 // pred_check_branch
      %119 = sbr.rel (0) target = $region45
    $region44: #{tpu_custom_call.1} parent=1 // pred_region
      %s121 = ssub.s32 2048, 2048
      %122 = vsyncadd [#allocation15], %s121
      %s123 = sshll.u32 [#allocation16], 4
      %s124 = int_to_ptr.vmem [resolvable:$true] %s123
      %129 = dma.hbm_to_vmem [thread:$0]  %s10, 2048, %s124, [#allocation15], 128, 128, 8
    $region45: #{tpu_custom_call.1} parent=1 // pred_fallthru
      _
    // Predicated region
    $region46: #{tpu_custom_call.1} parent=1 // pred_check
      _
    $region47: #{tpu_custom_call.1} parent=1 // pred_check_branch
      %131 = sbr.rel (0) target = $region49
    $region48: #{tpu_custom_call.1} parent=1 // pred_region
      %s133 = ssub.s32 32, 32
      %134 = vsyncadd [#allocation18], %s133
      %s136 = sshll.u32 [#allocation17], 4
      %s137 = int_to_ptr.vmem [resolvable:$true] %s136
      %139 = dma.hbm_to_vmem [thread:$0]  %s11, 32, %s137, [#allocation18]
    $region49: #{tpu_custom_call.1} parent=1 // pred_fallthru
      _
    // Predicated region
    $region50: #{tpu_custom_call.1} parent=1 // pred_check
      _
    $region51: #{tpu_custom_call.1} parent=1 // pred_check_branch
      %141 = sbr.rel (0) target = $region53
    $region52: #{tpu_custom_call.1} parent=1 // pred_region
      %s143 = ssub.s32 32, 32
      %144 = vsyncadd [#allocation18], %s143
      %s146 = sshll.u32 [#allocation19], 4
      %s147 = int_to_ptr.vmem [resolvable:$true] %s146
      %149 = dma.hbm_to_vmem [thread:$0]  %s12, 32, %s147, [#allocation18]
    $region53: #{tpu_custom_call.1} parent=1 // pred_fallthru
      _
    // Predicated region
    $region54: #{tpu_custom_call.1} parent=1 // pred_check
      _
    $region55: #{tpu_custom_call.1} parent=1 // pred_check_branch
      %151 = sbr.rel (0) target = $region57
    $region56: #{tpu_custom_call.1} parent=1 // pred_region
      %s153 = ssub.s32 8192, 8192
      %154 = vsyncadd [#allocation21], %s153
      %s155 = sshll.u32 [#allocation20], 4
      %s156 = int_to_ptr.vmem [resolvable:$true] %s155
      %161 = dma.hbm_to_vmem [thread:$0]  %s13, 8192, %s156, [#allocation21], 256, 256, 16
    $region57: #{tpu_custom_call.1} parent=1 // pred_fallthru
      _
    // Predicated region
    $region58: #{tpu_custom_call.1} parent=1 // pred_check
      _
    $region59: #{tpu_custom_call.1} parent=1 // pred_check_branch
      %163 = sbr.rel (0) target = $region61
    $region60: #{tpu_custom_call.1} parent=1 // pred_region
      _
    $region61: #{tpu_custom_call.1} parent=1 // pred_fallthru
      _
    // Predicated region
    $region62: #{tpu_custom_call.1} parent=1 // pred_check
      _
    $region63: #{tpu_custom_call.1} parent=1 // pred_check_branch
      %165 = sbr.rel (0) target = $region65
    $region64: #{tpu_custom_call.1} parent=1 // pred_region
      _
    $region65: #{tpu_custom_call.1} parent=1 // pred_fallthru
      _
    // Predicated region
    $region66: #{tpu_custom_call.1} parent=1 // pred_check
      _
    $region67: #{tpu_custom_call.1} parent=1 // pred_check_branch
      %167 = sbr.rel (0) target = $region69
    $region68: #{tpu_custom_call.1} parent=1 // pred_region
      %s169 = ssub.s32 32768, 32768
      %170 = vsyncadd [#allocation21], %s169
      %s171 = sshll.u32 [#allocation22], 4
      %s172 = int_to_ptr.vmem [resolvable:$true] %s171
      %177 = dma.hbm_to_vmem [thread:$0]  %s16, 32768, %s172, [#allocation21], 512, 512, 32
    $region69: #{tpu_custom_call.1} parent=1 // pred_fallthru
      _
    // Predicated region
    $region70: #{tpu_custom_call.1} parent=1 // pred_check
      _
    $region71: #{tpu_custom_call.1} parent=1 // pred_check_branch
      %179 = sbr.rel (0) target = $region73
    $region72: #{tpu_custom_call.1} parent=1 // pred_region
      _
    $region73: #{tpu_custom_call.1} parent=1 // pred_fallthru
      _
    // Predicated region
    $region74: #{tpu_custom_call.1} parent=1 // pred_check
      _
    $region75: #{tpu_custom_call.1} parent=1 // pred_check_branch
      %181 = sbr.rel (0) target = $region77
    $region76: #{tpu_custom_call.1} parent=1 // pred_region
      _
    $region77: #{tpu_custom_call.1} parent=1 // pred_fallthru
      _
    // Predicated region
    $region78: #{tpu_custom_call.1} parent=1 // pred_check
      _
    $region79: #{tpu_custom_call.1} parent=1 // pred_check_branch
      %183 = sbr.rel (0) target = $region81
    $region80: #{tpu_custom_call.1} parent=1 // pred_region
      %184 = dma.done [#allocation3], 64
    $region81: #{tpu_custom_call.1} parent=1 // pred_fallthru
      _
    // Predicated region
    $region82: #{tpu_custom_call.1} parent=1 // pred_check
      _
    $region83: #{tpu_custom_call.1} parent=1 // pred_check_branch
      %186 = sbr.rel (0) target = $region85
    $region84: #{tpu_custom_call.1} parent=1 // pred_region
      %187 = dma.done [#allocation6], 16
    $region85: #{tpu_custom_call.1} parent=1 // pred_fallthru
      _
    // Predicated region
    $region86: #{tpu_custom_call.1} parent=1 // pred_check
      _
    $region87: #{tpu_custom_call.1} parent=1 // pred_check_branch
      %189 = sbr.rel (0) target = $region89
    $region88: #{tpu_custom_call.1} parent=1 // pred_region
      %190 = dma.done [#allocation6], 16
    $region89: #{tpu_custom_call.1} parent=1 // pred_fallthru
      _
    // Predicated region
    $region90: #{tpu_custom_call.1} parent=1 // pred_check
      _
    $region91: #{tpu_custom_call.1} parent=1 // pred_check_branch
      %192 = sbr.rel (0) target = $region93
    $region92: #{tpu_custom_call.1} parent=1 // pred_region
      %193 = dma.done [#allocation9], 16
    $region93: #{tpu_custom_call.1} parent=1 // pred_fallthru
      _
    // Predicated region
    $region94: #{tpu_custom_call.1} parent=1 // pred_check
      _
    $region95: #{tpu_custom_call.1} parent=1 // pred_check_branch
      %195 = sbr.rel (0) target = $region97
    $region96: #{tpu_custom_call.1} parent=1 // pred_region
      %196 = dma.done [#allocation9], 16
    $region97: #{tpu_custom_call.1} parent=1 // pred_fallthru
      _
    // Predicated region
    $region98: #{tpu_custom_call.1} parent=1 // pred_check
      _
    $region99: #{tpu_custom_call.1} parent=1 // pred_check_branch
      %198 = sbr.rel (0) target = $region101
    $region100: #{tpu_custom_call.1} parent=1 // pred_region
      %199 = dma.done [#allocation12], 512
    $region101: #{tpu_custom_call.1} parent=1 // pred_fallthru
      _
    // Predicated region
    $region102: #{tpu_custom_call.1} parent=1 // pred_check
      _
    $region103: #{tpu_custom_call.1} parent=1 // pred_check_branch
      %201 = sbr.rel (0) target = $region105
    $region104: #{tpu_custom_call.1} parent=1 // pred_region
      %202 = dma.done [#allocation12], 16
    $region105: #{tpu_custom_call.1} parent=1 // pred_fallthru
      _
    // Predicated region
    $region106: #{tpu_custom_call.1} parent=1 // pred_check
      _
    $region107: #{tpu_custom_call.1} parent=1 // pred_check_branch
      %204 = sbr.rel (0) target = $region109
    $region108: #{tpu_custom_call.1} parent=1 // pred_region
      %205 = dma.done [#allocation15], 16
    $region109: #{tpu_custom_call.1} parent=1 // pred_fallthru
      _
    // Predicated region
    $region110: #{tpu_custom_call.1} parent=1 // pred_check
      _
    $region111: #{tpu_custom_call.1} parent=1 // pred_check_branch
      %207 = sbr.rel (0) target = $region113
    $region112: #{tpu_custom_call.1} parent=1 // pred_region
      %208 = dma.done [#allocation15], 2048
    $region113: #{tpu_custom_call.1} parent=1 // pred_fallthru
      _
    // Predicated region
    $region114: #{tpu_custom_call.1} parent=1 // pred_check
      _
    $region115: #{tpu_custom_call.1} parent=1 // pred_check_branch
      %210 = sbr.rel (0) target = $region117
    $region116: #{tpu_custom_call.1} parent=1 // pred_region
      %211 = dma.done [#allocation18], 32
    $region117: #{tpu_custom_call.1} parent=1 // pred_fallthru
      _
    // Predicated region
    $region118: #{tpu_custom_call.1} parent=1 // pred_check
      _
    $region119: #{tpu_custom_call.1} parent=1 // pred_check_branch
      %213 = sbr.rel (0) target = $region121
    $region120: #{tpu_custom_call.1} parent=1 // pred_region
      %214 = dma.done [#allocation18], 32
    $region121: #{tpu_custom_call.1} parent=1 // pred_fallthru
      _
    // Predicated region
    $region122: #{tpu_custom_call.1} parent=1 // pred_check
      _
    $region123: #{tpu_custom_call.1} parent=1 // pred_check_branch
      %216 = sbr.rel (0) target = $region125
    $region124: #{tpu_custom_call.1} parent=1 // pred_region
      %217 = dma.done [#allocation21], 8192
    $region125: #{tpu_custom_call.1} parent=1 // pred_fallthru
      _
    // Predicated region
    $region126: #{tpu_custom_call.1} parent=1 // pred_check
      _
    $region127: #{tpu_custom_call.1} parent=1 // pred_check_branch
      %219 = sbr.rel (0) target = $region129
    $region128: #{tpu_custom_call.1} parent=1 // pred_region
      %220 = dma.done [#allocation21], 32768
    $region129: #{tpu_custom_call.1} parent=1 // pred_fallthru
      _
    %v222 = vld [vmem:[%s0] sm:$0xff]
    %v223 = vld [vmem:[%s0 + $0x8] sm:$0xff]
    %v224 = vld [vmem:[%s0 + $0x10] sm:$0xff]
    %v225 = vld [vmem:[%s0 + $0x18] sm:$0xff]
    %v226 = vld [vmem:[#allocation2] sm:$0x7]
    %228 = vset.pattern.permute.xlu0 0
    %229 = vperm.xlu0 %228, %v222
    %v230 = vpop.permute.xlu0 %229
    %233 = vset.pattern.permute.xlu0 0
    %234 = vperm.xlu0 %233, %v223
    %v235 = vpop.permute.xlu0 %234
    %238 = vset.pattern.permute.xlu0 0
    %239 = vperm.xlu0 %238, %v224
    %v240 = vpop.permute.xlu0 %239
    %243 = vset.pattern.permute.xlu0 0
    %244 = vperm.xlu0 %243, %v225
    %v245 = vpop.permute.xlu0 %244
    %v247 = vlaneseq
    %v248 = vshrl.u32 %v247, 7
    %v249 = vsub.s32 0, %v248
    %v250 = vrot.slane %v226, %v249
    %v251 = vmul.f32 %v230, %v250
    %v252 = vmul.f32 %v235, %v250
    %v253 = vmul.f32 %v240, %v250
    %v254 = vmul.f32 %v245, %v250
    %255 = vset.pattern.permute.xlu0 1
    %256 = vperm.xlu0 %255, %v222
    %v257 = vpop.permute.xlu0 %256
    %259 = vset.pattern.permute.xlu0 1
    %260 = vperm.xlu0 %259, %v223
    %v261 = vpop.permute.xlu0 %260
    %263 = vset.pattern.permute.xlu0 1
    %264 = vperm.xlu0 %263, %v224
    %v265 = vpop.permute.xlu0 %264
    %267 = vset.pattern.permute.xlu0 1
    %268 = vperm.xlu0 %267, %v225
    %v269 = vpop.permute.xlu0 %268
    %v271 = vlaneseq
    %v272 = vshrl.u32 %v271, 7
    %v273 = vsub.s32 1, %v272
    %v274 = vrot.slane %v226, %v273
    %v275 = vmul.f32 %v257, %v274
    %v276 = vmul.f32 %v261, %v274
    %v277 = vmul.f32 %v265, %v274
    %v278 = vmul.f32 %v269, %v274
    %v279 = vadd.f32 %v251, %v275
    %v280 = vadd.f32 %v252, %v276
    %v281 = vadd.f32 %v253, %v277
    %v282 = vadd.f32 %v254, %v278
    %283 = vset.pattern.permute.xlu0 2
    %284 = vperm.xlu0 %283, %v222
    %v285 = vpop.permute.xlu0 %284
    %287 = vset.pattern.permute.xlu0 2
    %288 = vperm.xlu0 %287, %v223
    %v289 = vpop.permute.xlu0 %288
    %291 = vset.pattern.permute.xlu0 2
    %292 = vperm.xlu0 %291, %v224
    %v293 = vpop.permute.xlu0 %292
    %295 = vset.pattern.permute.xlu0 2
    %296 = vperm.xlu0 %295, %v225
    %v297 = vpop.permute.xlu0 %296
    %v299 = vlaneseq
    %v300 = vshrl.u32 %v299, 7
    %v301 = vsub.s32 2, %v300
    %v302 = vrot.slane %v226, %v301
    %v303 = vmul.f32 %v285, %v302
    %v304 = vmul.f32 %v289, %v302
    %v305 = vmul.f32 %v293, %v302
    %v306 = vmul.f32 %v297, %v302
    %v307 = vadd.f32 %v279, %v303
    %v308 = vadd.f32 %v280, %v304
    %v309 = vadd.f32 %v281, %v305
    %v310 = vadd.f32 %v282, %v306
    %vm311 = vcmask 523264
    %v312 = vsel %vm311, %v307, 0.0
    %v313 = vsel %vm311, %v308, 0.0
    %v314 = vadd.f32 %v312, %v313
    %v315 = vsel %vm311, %v309, 0.0
    %v316 = vadd.f32 %v314, %v315
    %v317 = vsel %vm311, %v310, 0.0
    %v318 = vadd.f32 %v316, %v317
    %v319 = vrot.slane %v318, 4
    %v320 = vadd.f32 %v318, %v319
    %v321 = vrot.slane %v320, 2
    %v322 = vadd.f32 %v320, %v321
    %v323 = vrot.slane %v322, 1
    %v324 = vadd.f32 %v322, %v323
    %v325 = vrcp.pop 32.0
    %v326 = vmul.f32 %v324, %v325
    %v327 = vmul.f32 %v307, %v307
    %v328 = vmul.f32 %v308, %v308
    %v329 = vmul.f32 %v309, %v309
    %v330 = vmul.f32 %v310, %v310
    %v331 = vsel %vm311, %v327, 0.0
    %v332 = vsel %vm311, %v328, 0.0
    %v333 = vadd.f32 %v331, %v332
    %v334 = vsel %vm311, %v329, 0.0
    %v335 = vadd.f32 %v333, %v334
    %v336 = vsel %vm311, %v330, 0.0
    %v337 = vadd.f32 %v335, %v336
    %v338 = vrot.slane %v337, 4
    %v339 = vadd.f32 %v337, %v338
    %v340 = vrot.slane %v339, 2
    %v341 = vadd.f32 %v339, %v340
    %v342 = vrot.slane %v341, 1
    %v343 = vadd.f32 %v341, %v342
    %v344 = vmul.f32 %v343, %v325
    %v345 = vmul.f32 %v326, %v326
    %v346 = vsub.f32 %v344, %v345
    %v347 = vmax.f32 %v346, 0.0
    %v348 = vld [vmem:[#allocation5] sm:$0x1]
    %v349 = vadd.f32 %v347, 1e-05
    %v350 = vrsqrt.pop %v349
    %v351 = vmul.f32 %v348, %v350
    %v352 = vld [vmem:[#allocation7] sm:$0x1]
    %v353 = vmul.f32 %v326, %v351
    %v354 = vsub.f32 %v352, %v353
    %v356 = vlaneseq
    %v357 = vshrl.u32 %v356, 7
    %v358 = vsub.s32 0, %v357
    %v359 = vrot.slane %v351, %v358
    %v361 = vmul.f32 %v307, %v359
    %v362 = vmul.f32 %v308, %v359
    %v363 = vmul.f32 %v309, %v359
    %v364 = vmul.f32 %v310, %v359
    %v366 = vlaneseq
    %v367 = vshrl.u32 %v366, 7
    %v368 = vsub.s32 0, %v367
    %v369 = vrot.slane %v354, %v368
    %v371 = vadd.f32 %v361, %v369
    %v372 = vadd.f32 %v362, %v369
    %v373 = vadd.f32 %v363, %v369
    %v374 = vadd.f32 %v364, %v369
    %v375 = vmax.f32 %v371, 0.0
    %v376 = vmax.f32 %v372, 0.0
    %v377 = vmax.f32 %v373, 0.0
    %v378 = vmax.f32 %v374, 0.0
    %v379 = vpack.c.bf16 %v376, %v375
    %v380 = vpack.c.bf16 %v378, %v377
    %v381 = vld [vmem:[%s4] sm:$0xf]
    %v382 = vld [vmem:[%s4 + $0x4] sm:$0xf]
    %v383 = vld [vmem:[%s4 + $0x8] sm:$0xf]
    %v384 = vld [vmem:[%s4 + $0xc] sm:$0xf]
    %v385 = vld [vmem:[%s4 + $0x10] sm:$0xf]
    %v386 = vld [vmem:[%s4 + $0x14] sm:$0xf]
    %v387 = vld [vmem:[%s4 + $0x18] sm:$0xf]
    %v388 = vld [vmem:[%s4 + $0x1c] sm:$0xf]
    %v397 = vunpack.c.l.b16 %v381
    %v398 = vunpack.c.l.b16 %v382
    %v399 = vunpack.c.l.b16 %v383
    %v400 = vunpack.c.l.b16 %v384
    %v401 = vunpack.c.l.b16 %v385
    %v402 = vunpack.c.l.b16 %v386
    %v403 = vunpack.c.l.b16 %v387
    %v404 = vunpack.c.l.b16 %v388
    %v405 = vpack.c.b16 %v398, %v397
    %v406 = vpack.c.b16 %v400, %v399
    %v407 = vpack.c.b16 %v402, %v401
    %v408 = vpack.c.b16 %v404, %v403
    %v414 = vsel %vm311, %v379, 0
    %v417 = vsel %vm311, %v380, 0
    %419 = vmatprep.subr.bf16.mxu0 0
    %420 = vmatpush1.bf16.msra.mxu0 0
    %421 = vmatprep.subr.bf16.mxu0 0
    %422 = vmatpush1.bf16.msra.mxu0 0
    %423 = vmatprep.subr.bf16.mxu0 0
    %424 = vmatpush1.bf16.msra.mxu0 0
    %425 = vmatprep.subr.bf16.mxu0 0
    %426 = vmatpush1.bf16.msra.mxu0 0
    %427 = vmatprep.subr.bf16.mxu0 0
    %428 = vmatpush1.bf16.msra.mxu0 %v408
    %429 = vmatprep.subr.bf16.mxu0 0
    %430 = vmatpush1.bf16.msra.mxu0 %v407
    %431 = vmatprep.subr.bf16.mxu0 0
    %432 = vmatpush1.bf16.msra.mxu0 %v406
    %433 = vmatprep.subr.bf16.mxu0 0
    %434 = vmatpush1.bf16.msra.mxu0 %v405
    %435 = vmatprep.subr.bf16.mxu0 0
    %436 = vmatpush2.bf16.msra.mxu0 0
    %437 = vmatprep.subr.bf16.mxu0 0
    %438 = vmatpush2.bf16.msra.mxu0 0
    %439 = vmatprep.subr.bf16.mxu0 0
    %440 = vmatpush2.bf16.msra.mxu0 0
    %441 = vmatprep.subr.bf16.mxu0 0
    %442 = vmatpush2.bf16.msra.mxu0 0
    %443 = vmatprep.subr.bf16.mxu0 0
    %444 = vmatpush2.bf16.msra.mxu0 0
    %445 = vmatprep.subr.bf16.mxu0 0
    %446 = vmatpush2.bf16.msra.mxu0 0
    %447 = vmatprep.subr.bf16.mxu0 0
    %448 = vmatpush2.bf16.msra.mxu0 0
    %449 = vmatprep.subr.bf16.mxu0 0
    %450 = vmatpush2.bf16.msra.mxu0 0
    %451 = vmatprep.mubr.bf16.mxu0 0
    %452 = vmatmul.mubr.bf16.gmra.mxu0 %v414
    %v453 = vpop.f32.mrf.mxu0
    %v454 = vadd.f32 0.0, %v453
    %v455 = vpop.f32.mrf.mxu0
    %v456 = vpop.f32.mrf.mxu0
    %v457 = vadd.f32 0.0, %v456
    %v458 = vpop.f32.mrf.mxu0
    %459 = vmatprep.mubr.bf16.mxu0 0
    %460 = vmatmul.mubr.bf16.gmra.mxu0 %v417
    %v461 = vpop.f32.mrf.mxu0
    %v462 = vadd.f32 0.0, %v461
    %v463 = vpop.f32.mrf.mxu0
    %v464 = vpop.f32.mrf.mxu0
    %v465 = vadd.f32 0.0, %v464
    %v466 = vpop.f32.mrf.mxu0
    %467 = vdwg.mxu0
    %v468 = vsel %vm311, %v454, 0.0
    %v469 = vsel %vm311, %v457, 0.0
    %v470 = vadd.f32 %v468, %v469
    %v471 = vsel %vm311, %v462, 0.0
    %v472 = vadd.f32 %v470, %v471
    %v473 = vsel %vm311, %v465, 0.0
    %v474 = vadd.f32 %v472, %v473
    %v475 = vrot.slane %v474, 4
    %v476 = vadd.f32 %v474, %v475
    %v477 = vrot.slane %v476, 2
    %v478 = vadd.f32 %v476, %v477
    %v479 = vrot.slane %v478, 1
    %v480 = vadd.f32 %v478, %v479
    %v481 = vmul.f32 %v480, %v325
    %v482 = vmul.f32 %v454, %v454
    %v483 = vmul.f32 %v457, %v457
    %v484 = vmul.f32 %v462, %v462
    %v485 = vmul.f32 %v465, %v465
    %v486 = vsel %vm311, %v482, 0.0
    %v487 = vsel %vm311, %v483, 0.0
    %v488 = vadd.f32 %v486, %v487
    %v489 = vsel %vm311, %v484, 0.0
    %v490 = vadd.f32 %v488, %v489
    %v491 = vsel %vm311, %v485, 0.0
    %v492 = vadd.f32 %v490, %v491
    %v493 = vrot.slane %v492, 4
    %v494 = vadd.f32 %v492, %v493
    %v495 = vrot.slane %v494, 2
    %v496 = vadd.f32 %v494, %v495
    %v497 = vrot.slane %v496, 1
    %v498 = vadd.f32 %v496, %v497
    %v499 = vmul.f32 %v498, %v325
    %v500 = vmul.f32 %v481, %v481
    %v501 = vsub.f32 %v499, %v500
    %v502 = vmax.f32 %v501, 0.0
    %v503 = vld [vmem:[#allocation8] sm:$0x1]
    %v504 = vadd.f32 %v502, 1e-05
    %v505 = vrsqrt.pop %v504
    %v506 = vmul.f32 %v503, %v505
    %v507 = vld [vmem:[#allocation10] sm:$0x1]
    %v508 = vmul.f32 %v481, %v506
    %v509 = vsub.f32 %v507, %v508
    %v511 = vlaneseq
    %v512 = vshrl.u32 %v511, 7
    %v513 = vsub.s32 0, %v512
    %v514 = vrot.slane %v506, %v513
    %v516 = vmul.f32 %v454, %v514
    %v517 = vmul.f32 %v457, %v514
    %v518 = vmul.f32 %v462, %v514
    %v519 = vmul.f32 %v465, %v514
    %v521 = vlaneseq
    %v522 = vshrl.u32 %v521, 7
    %v523 = vsub.s32 0, %v522
    %v524 = vrot.slane %v509, %v523
    %v526 = vadd.f32 %v516, %v524
    %v527 = vadd.f32 %v517, %v524
    %v528 = vadd.f32 %v518, %v524
    %v529 = vadd.f32 %v519, %v524
    %v530 = vmax.f32 %v526, 0.0
    %v531 = vmax.f32 %v527, 0.0
    %v532 = vmax.f32 %v528, 0.0
    %v533 = vmax.f32 %v529, 0.0
    %v534 = vpack.c.bf16 %v531, %v530
    %v535 = vpack.c.bf16 %v533, %v532
    %v536 = vld [vmem:[#allocation11] sm:$0xf]
    %v537 = vld [vmem:[#allocation11 + $0x4] sm:$0xf]
    %v538 = vld [vmem:[#allocation11 + $0x8] sm:$0xf]
    %v539 = vld [vmem:[#allocation11 + $0xc] sm:$0xf]
    %v540 = vld [vmem:[#allocation11 + $0x10] sm:$0xf]
    %v541 = vld [vmem:[#allocation11 + $0x14] sm:$0xf]
    %v542 = vld [vmem:[#allocation11 + $0x18] sm:$0xf]
    %v543 = vld [vmem:[#allocation11 + $0x1c] sm:$0xf]
    %v552 = vunpack.c.l.b16 %v536
    %v553 = vunpack.c.l.b16 %v537
    %v554 = vunpack.c.l.b16 %v538
    %v555 = vunpack.c.l.b16 %v539
    %v556 = vunpack.c.l.b16 %v540
    %v557 = vunpack.c.l.b16 %v541
    %v558 = vunpack.c.l.b16 %v542
    %v559 = vunpack.c.l.b16 %v543
    %v560 = vpack.c.b16 %v553, %v552
    %v561 = vpack.c.b16 %v555, %v554
    %v562 = vpack.c.b16 %v557, %v556
    %v563 = vpack.c.b16 %v559, %v558
    %v569 = vsel %vm311, %v534, 0
    %v572 = vsel %vm311, %v535, 0
    %574 = vmatprep.subr.bf16.mxu0 0
    %575 = vmatpush1.bf16.msra.mxu0 0
    %576 = vmatprep.subr.bf16.mxu0 0
    %577 = vmatpush1.bf16.msra.mxu0 0
    %578 = vmatprep.subr.bf16.mxu0 0
    %579 = vmatpush1.bf16.msra.mxu0 0
    %580 = vmatprep.subr.bf16.mxu0 0
    %581 = vmatpush1.bf16.msra.mxu0 0
    %582 = vmatprep.subr.bf16.mxu0 0
    %583 = vmatpush1.bf16.msra.mxu0 %v563
    %584 = vmatprep.subr.bf16.mxu0 0
    %585 = vmatpush1.bf16.msra.mxu0 %v562
    %586 = vmatprep.subr.bf16.mxu0 0
    %587 = vmatpush1.bf16.msra.mxu0 %v561
    %588 = vmatprep.subr.bf16.mxu0 0
    %589 = vmatpush1.bf16.msra.mxu0 %v560
    %590 = vmatprep.subr.bf16.mxu0 0
    %591 = vmatpush2.bf16.msra.mxu0 0
    %592 = vmatprep.subr.bf16.mxu0 0
    %593 = vmatpush2.bf16.msra.mxu0 0
    %594 = vmatprep.subr.bf16.mxu0 0
    %595 = vmatpush2.bf16.msra.mxu0 0
    %596 = vmatprep.subr.bf16.mxu0 0
    %597 = vmatpush2.bf16.msra.mxu0 0
    %598 = vmatprep.subr.bf16.mxu0 0
    %599 = vmatpush2.bf16.msra.mxu0 0
    %600 = vmatprep.subr.bf16.mxu0 0
    %601 = vmatpush2.bf16.msra.mxu0 0
    %602 = vmatprep.subr.bf16.mxu0 0
    %603 = vmatpush2.bf16.msra.mxu0 0
    %604 = vmatprep.subr.bf16.mxu0 0
    %605 = vmatpush2.bf16.msra.mxu0 0
    %606 = vmatprep.mubr.bf16.mxu0 0
    %607 = vmatmul.mubr.bf16.gmra.mxu0 %v569
    %v608 = vpop.f32.mrf.mxu0
    %v609 = vadd.f32 0.0, %v608
    %v610 = vpop.f32.mrf.mxu0
    %v611 = vpop.f32.mrf.mxu0
    %v612 = vadd.f32 0.0, %v611
    %v613 = vpop.f32.mrf.mxu0
    %614 = vmatprep.mubr.bf16.mxu0 0
    %615 = vmatmul.mubr.bf16.gmra.mxu0 %v572
    %v616 = vpop.f32.mrf.mxu0
    %v617 = vadd.f32 0.0, %v616
    %v618 = vpop.f32.mrf.mxu0
    %v619 = vpop.f32.mrf.mxu0
    %v620 = vadd.f32 0.0, %v619
    %v621 = vpop.f32.mrf.mxu0
    %622 = vdwg.mxu0
    %v623 = vadd.f32 %v609, %v612
    %v624 = vadd.f32 %v623, %v617
    %v625 = vadd.f32 %v624, %v620
    %v626 = vrot.slane %v625, 4
    %v627 = vadd.f32 %v625, %v626
    %v628 = vrot.slane %v627, 2
    %v629 = vadd.f32 %v627, %v628
    %v630 = vrot.slane %v629, 1
    %v631 = vadd.f32 %v629, %v630
    %v632 = vmul.f32 %v631, %v325
    %v633 = vmul.f32 %v609, %v609
    %v634 = vmul.f32 %v612, %v612
    %v635 = vmul.f32 %v617, %v617
    %v636 = vmul.f32 %v620, %v620
    %v637 = vadd.f32 %v633, %v634
    %v638 = vadd.f32 %v637, %v635
    %v639 = vadd.f32 %v638, %v636
    %v640 = vrot.slane %v639, 4
    %v641 = vadd.f32 %v639, %v640
    %v642 = vrot.slane %v641, 2
    %v643 = vadd.f32 %v641, %v642
    %v644 = vrot.slane %v643, 1
    %v645 = vadd.f32 %v643, %v644
    %v646 = vmul.f32 %v645, %v325
    %v647 = vmul.f32 %v632, %v632
    %v648 = vsub.f32 %v646, %v647
    %v649 = vmax.f32 %v648, 0.0
    %v650 = vld [vmem:[#allocation13] sm:$0x1]
    %v651 = vadd.f32 %v649, 1e-05
    %v652 = vrsqrt.pop %v651
    %v653 = vmul.f32 %v650, %v652
    %v654 = vld [vmem:[#allocation14] sm:$0x1]
    %v655 = vmul.f32 %v632, %v653
    %v656 = vsub.f32 %v654, %v655
    %v658 = vlaneseq
    %v659 = vshrl.u32 %v658, 7
    %v660 = vsub.s32 0, %v659
    %v661 = vrot.slane %v653, %v660
    %v663 = vmul.f32 %v609, %v661
    %v664 = vmul.f32 %v612, %v661
    %v665 = vmul.f32 %v617, %v661
    %v666 = vmul.f32 %v620, %v661
    %v668 = vlaneseq
    %v669 = vshrl.u32 %v668, 7
    %v670 = vsub.s32 0, %v669
    %v671 = vrot.slane %v656, %v670
    %v673 = vadd.f32 %v663, %v671
    %v674 = vadd.f32 %v664, %v671
    %v675 = vadd.f32 %v665, %v671
    %v676 = vadd.f32 %v666, %v671
    %v677 = vmax.f32 %v673, 0.0
    %v678 = vmax.f32 %v674, 0.0
    %v679 = vmax.f32 %v675, 0.0
    %v680 = vmax.f32 %v676, 0.0
    %v681 = vmax.f32 %v677, %v678
    %v682 = vrot.slane %v681, 4
    %v683 = vmax.f32 %v681, %v682
    %v684 = vrot.slane %v683, 2
    %v685 = vmax.f32 %v683, %v684
    %v686 = vrot.slane %v685, 1
    %v687 = vmax.f32 %v685, %v686
    %v688 = vmax.f32 %v679, %v680
    %v689 = vrot.slane %v688, 4
    %v690 = vmax.f32 %v688, %v689
    %v691 = vrot.slane %v690, 2
    %v692 = vmax.f32 %v690, %v691
    %v693 = vrot.slane %v692, 1
    %v694 = vmax.f32 %v692, %v693
    %v695 = vpack.c.bf16 %v678, %v677
    %v696 = vpack.c.bf16 %v680, %v679
    %v697 = vld [vmem:[#allocation16] sm:$0xff]
    %v698 = vld [vmem:[#allocation16 + $0x8] sm:$0xff]
    %v699 = vld [vmem:[#allocation16 + $0x10] sm:$0xff]
    %v700 = vld [vmem:[#allocation16 + $0x18] sm:$0xff]
    %v701 = vld [vmem:[#allocation16 + $0x20] sm:$0xff]
    %v702 = vld [vmem:[#allocation16 + $0x28] sm:$0xff]
    %v703 = vld [vmem:[#allocation16 + $0x30] sm:$0xff]
    %v704 = vld [vmem:[#allocation16 + $0x38] sm:$0xff]
    %v705 = vld [vmem:[#allocation16 + $0x40] sm:$0xff]
    %v706 = vld [vmem:[#allocation16 + $0x48] sm:$0xff]
    %v707 = vld [vmem:[#allocation16 + $0x50] sm:$0xff]
    %v708 = vld [vmem:[#allocation16 + $0x58] sm:$0xff]
    %v709 = vld [vmem:[#allocation16 + $0x60] sm:$0xff]
    %v710 = vld [vmem:[#allocation16 + $0x68] sm:$0xff]
    %v711 = vld [vmem:[#allocation16 + $0x70] sm:$0xff]
    %v712 = vld [vmem:[#allocation16 + $0x78] sm:$0xff]
    %v729 = vunpack.c.l.b16 %v697
    %v730 = vunpack.c.h.b16 %v697
    %v731 = vunpack.c.l.b16 %v698
    %v732 = vunpack.c.h.b16 %v698
    %v733 = vunpack.c.l.b16 %v699
    %v734 = vunpack.c.h.b16 %v699
    %v735 = vunpack.c.l.b16 %v700
    %v736 = vunpack.c.h.b16 %v700
    %v737 = vunpack.c.l.b16 %v701
    %v738 = vunpack.c.h.b16 %v701
    %v739 = vunpack.c.l.b16 %v702
    %v740 = vunpack.c.h.b16 %v702
    %v741 = vunpack.c.l.b16 %v703
    %v742 = vunpack.c.h.b16 %v703
    %v743 = vunpack.c.l.b16 %v704
    %v744 = vunpack.c.h.b16 %v704
    %v745 = vunpack.c.l.b16 %v705
    %v746 = vunpack.c.h.b16 %v705
    %v747 = vunpack.c.l.b16 %v706
    %v748 = vunpack.c.h.b16 %v706
    %v749 = vunpack.c.l.b16 %v707
    %v750 = vunpack.c.h.b16 %v707
    %v751 = vunpack.c.l.b16 %v708
    %v752 = vunpack.c.h.b16 %v708
    %v753 = vunpack.c.l.b16 %v709
    %v754 = vunpack.c.h.b16 %v709
    %v755 = vunpack.c.l.b16 %v710
    %v756 = vunpack.c.h.b16 %v710
    %v757 = vunpack.c.l.b16 %v711
    %v758 = vunpack.c.h.b16 %v711
    %v759 = vunpack.c.l.b16 %v712
    %v760 = vunpack.c.h.b16 %v712
    %v761 = vpack.c.b16 %v731, %v729
    %v762 = vpack.c.b16 %v732, %v730
    %v763 = vpack.c.b16 %v735, %v733
    %v764 = vpack.c.b16 %v736, %v734
    %v765 = vpack.c.b16 %v739, %v737
    %v766 = vpack.c.b16 %v740, %v738
    %v767 = vpack.c.b16 %v743, %v741
    %v768 = vpack.c.b16 %v744, %v742
    %v769 = vpack.c.b16 %v747, %v745
    %v770 = vpack.c.b16 %v748, %v746
    %v771 = vpack.c.b16 %v751, %v749
    %v772 = vpack.c.b16 %v752, %v750
    %v773 = vpack.c.b16 %v755, %v753
    %v774 = vpack.c.b16 %v756, %v754
    %v775 = vpack.c.b16 %v759, %v757
    %v776 = vpack.c.b16 %v760, %v758
    %793 = vmatprep.subr.bf16.mxu0 %v776
    %794 = vmatpush1.bf16.msra.mxu0 %v775
    %795 = vmatprep.subr.bf16.mxu0 %v774
    %796 = vmatpush1.bf16.msra.mxu0 %v773
    %797 = vmatprep.subr.bf16.mxu0 %v772
    %798 = vmatpush1.bf16.msra.mxu0 %v771
    %799 = vmatprep.subr.bf16.mxu0 %v770
    %800 = vmatpush1.bf16.msra.mxu0 %v769
    %801 = vmatprep.subr.bf16.mxu0 %v768
    %802 = vmatpush1.bf16.msra.mxu0 %v767
    %803 = vmatprep.subr.bf16.mxu0 %v766
    %804 = vmatpush1.bf16.msra.mxu0 %v765
    %805 = vmatprep.subr.bf16.mxu0 %v764
    %806 = vmatpush1.bf16.msra.mxu0 %v763
    %807 = vmatprep.subr.bf16.mxu0 %v762
    %808 = vmatpush1.bf16.msra.mxu0 %v761
    %809 = vmatprep.subr.bf16.mxu0 0
    %810 = vmatpush2.bf16.msra.mxu0 0
    %811 = vmatprep.subr.bf16.mxu0 0
    %812 = vmatpush2.bf16.msra.mxu0 0
    %813 = vmatprep.subr.bf16.mxu0 0
    %814 = vmatpush2.bf16.msra.mxu0 0
    %815 = vmatprep.subr.bf16.mxu0 0
    %816 = vmatpush2.bf16.msra.mxu0 0
    %817 = vmatprep.subr.bf16.mxu0 0
    %818 = vmatpush2.bf16.msra.mxu0 0
    %819 = vmatprep.subr.bf16.mxu0 0
    %820 = vmatpush2.bf16.msra.mxu0 0
    %821 = vmatprep.subr.bf16.mxu0 0
    %822 = vmatpush2.bf16.msra.mxu0 0
    %823 = vmatprep.subr.bf16.mxu0 0
    %824 = vmatpush2.bf16.msra.mxu0 0
    %825 = vmatprep.mubr.bf16.mxu0 0
    %826 = vmatmul.mubr.bf16.gmra.mxu0 %v695
    %v827 = vpop.f32.mrf.mxu0
    %v828 = vadd.f32 0.0, %v827
    %v829 = vpop.f32.mrf.mxu0
    %v830 = vadd.f32 0.0, %v829
    %v831 = vpop.f32.mrf.mxu0
    %v832 = vadd.f32 0.0, %v831
    %v833 = vpop.f32.mrf.mxu0
    %v834 = vadd.f32 0.0, %v833
    %835 = vmatprep.mubr.bf16.mxu0 0
    %836 = vmatmul.mubr.bf16.gmra.mxu0 %v696
    %v837 = vpop.f32.mrf.mxu0
    %v838 = vadd.f32 0.0, %v837
    %v839 = vpop.f32.mrf.mxu0
    %v840 = vadd.f32 0.0, %v839
    %v841 = vpop.f32.mrf.mxu0
    %v842 = vadd.f32 0.0, %v841
    %v843 = vpop.f32.mrf.mxu0
    %v844 = vadd.f32 0.0, %v843
    %845 = vdwg.mxu0
    %v846 = vadd.f32 %v828, %v832
    %v847 = vadd.f32 %v846, %v838
    %v848 = vadd.f32 %v847, %v842
    %v849 = vrot.slane %v848, 4
    %v850 = vadd.f32 %v848, %v849
    %v851 = vrot.slane %v850, 2
    %v852 = vadd.f32 %v850, %v851
    %v853 = vrot.slane %v852, 1
    %v854 = vadd.f32 %v852, %v853
    %v855 = vadd.f32 %v830, %v834
    %v856 = vadd.f32 %v855, %v840
    %v857 = vadd.f32 %v856, %v844
    %v858 = vrot.slane %v857, 4
    %v859 = vadd.f32 %v857, %v858
    %v860 = vrot.slane %v859, 2
    %v861 = vadd.f32 %v859, %v860
    %v862 = vrot.slane %v861, 1
    %v863 = vadd.f32 %v861, %v862
    %v864 = vmul.f32 %v854, %v325
    %v865 = vmul.f32 %v863, %v325
    %v866 = vmul.f32 %v828, %v828
    %v867 = vmul.f32 %v830, %v830
    %v868 = vmul.f32 %v832, %v832
    %v869 = vmul.f32 %v834, %v834
    %v870 = vmul.f32 %v838, %v838
    %v871 = vmul.f32 %v840, %v840
    %v872 = vmul.f32 %v842, %v842
    %v873 = vmul.f32 %v844, %v844
    %v874 = vadd.f32 %v866, %v868
    %v875 = vadd.f32 %v874, %v870
    %v876 = vadd.f32 %v875, %v872
    %v877 = vrot.slane %v876, 4
    %v878 = vadd.f32 %v876, %v877
    %v879 = vrot.slane %v878, 2
    %v880 = vadd.f32 %v878, %v879
    %v881 = vrot.slane %v880, 1
    %v882 = vadd.f32 %v880, %v881
    %v883 = vadd.f32 %v867, %v869
    %v884 = vadd.f32 %v883, %v871
    %v885 = vadd.f32 %v884, %v873
    %v886 = vrot.slane %v885, 4
    %v887 = vadd.f32 %v885, %v886
    %v888 = vrot.slane %v887, 2
    %v889 = vadd.f32 %v887, %v888
    %v890 = vrot.slane %v889, 1
    %v891 = vadd.f32 %v889, %v890
    %v892 = vmul.f32 %v882, %v325
    %v893 = vmul.f32 %v891, %v325
    %v894 = vmul.f32 %v864, %v864
    %v895 = vmul.f32 %v865, %v865
    %v896 = vsub.f32 %v892, %v894
    %v897 = vsub.f32 %v893, %v895
    %v898 = vmax.f32 %v896, 0.0
    %v899 = vmax.f32 %v897, 0.0
    %v900 = vld [vmem:[#allocation17] sm:$0x3]
    %v901 = vadd.f32 %v898, 1e-05
    %v902 = vadd.f32 %v899, 1e-05
    %v903 = vrsqrt.pop %v901
    %v904 = vrsqrt.pop %v902
    %v907 = vcombine.low %v903, %v904
    %v909 = vunpack.c.l.s4 1966171168
    %v910 = vunpack.c.0.s8 %v909
    %v911 = vlaneseq
    %v912 = vshrl.u32 %v911, 7
    %v913 = vsub.s32 %v910, %v912
    %v914 = vrot.slane %v907, %v913
    %v916 = vunpack.c.l.s4 1966171168
    %v917 = vunpack.c.0.s8 %v916
    %v918 = vlaneseq
    %v919 = vshrl.u32 %v918, 7
    %v920 = vsub.s32 %v917, %v919
    %v921 = vrot.slane %v914, %v920
    %v923 = vmul.f32 %v900, %v921
    %v924 = vld [vmem:[#allocation19] sm:$0x3]
    %v926 = vlaneseq
    %v927 = vshrl.u32 %v926, 7
    %v928 = vsub.s32 0, %v927
    %v929 = vrot.slane %v923, %v928
    %v930 = vlaneseq
    %v931 = vshrl.u32 %v930, 7
    %v932 = vsub.s32 1, %v931
    %v933 = vrot.slane %v923, %v932
    %v936 = vmul.f32 %v864, %v929
    %v937 = vmul.f32 %v865, %v933
    %v940 = vcombine.low %v936, %v937
    %v942 = vunpack.c.l.s4 1966171168
    %v943 = vunpack.c.0.s8 %v942
    %v944 = vlaneseq
    %v945 = vshrl.u32 %v944, 7
    %v946 = vsub.s32 %v943, %v945
    %v947 = vrot.slane %v940, %v946
    %v949 = vunpack.c.l.s4 1966171168
    %v950 = vunpack.c.0.s8 %v949
    %v951 = vlaneseq
    %v952 = vshrl.u32 %v951, 7
    %v953 = vsub.s32 %v950, %v952
    %v954 = vrot.slane %v947, %v953
    %v956 = vsub.f32 %v924, %v954
    %v957 = vmul.f32 %v828, %v929
    %v958 = vmul.f32 %v830, %v933
    %v959 = vmul.f32 %v832, %v929
    %v960 = vmul.f32 %v834, %v933
    %v961 = vmul.f32 %v838, %v929
    %v962 = vmul.f32 %v840, %v933
    %v963 = vmul.f32 %v842, %v929
    %v964 = vmul.f32 %v844, %v933
    %v966 = vlaneseq
    %v967 = vshrl.u32 %v966, 7
    %v968 = vsub.s32 0, %v967
    %v969 = vrot.slane %v956, %v968
    %v970 = vlaneseq
    %v971 = vshrl.u32 %v970, 7
    %v972 = vsub.s32 1, %v971
    %v973 = vrot.slane %v956, %v972
    %v976 = vadd.f32 %v957, %v969
    %v977 = vadd.f32 %v958, %v973
    %v978 = vadd.f32 %v959, %v969
    %v979 = vadd.f32 %v960, %v973
    %v980 = vadd.f32 %v961, %v969
    %v981 = vadd.f32 %v962, %v973
    %v982 = vadd.f32 %v963, %v969
    %v983 = vadd.f32 %v964, %v973
    %v984 = vmax.f32 %v976, 0.0
    %v985 = vmax.f32 %v977, 0.0
    %v986 = vmax.f32 %v978, 0.0
    %v987 = vmax.f32 %v979, 0.0
    %v988 = vmax.f32 %v980, 0.0
    %v989 = vmax.f32 %v981, 0.0
    %v990 = vmax.f32 %v982, 0.0
    %v991 = vmax.f32 %v983, 0.0
    %v992 = vmax.f32 %v984, %v986
    %v993 = vrot.slane %v992, 4
    %v994 = vmax.f32 %v992, %v993
    %v995 = vrot.slane %v994, 2
    %v996 = vmax.f32 %v994, %v995
    %v997 = vrot.slane %v996, 1
    %v998 = vmax.f32 %v996, %v997
    %v999 = vmax.f32 %v985, %v987
    %v1000 = vrot.slane %v999, 4
    %v1001 = vmax.f32 %v999, %v1000
    %v1002 = vrot.slane %v1001, 2
    %v1003 = vmax.f32 %v1001, %v1002
    %v1004 = vrot.slane %v1003, 1
    %v1005 = vmax.f32 %v1003, %v1004
    %v1006 = vmax.f32 %v988, %v990
    %v1007 = vrot.slane %v1006, 4
    %v1008 = vmax.f32 %v1006, %v1007
    %v1009 = vrot.slane %v1008, 2
    %v1010 = vmax.f32 %v1008, %v1009
    %v1011 = vrot.slane %v1010, 1
    %v1012 = vmax.f32 %v1010, %v1011
    %v1013 = vmax.f32 %v989, %v991
    %v1014 = vrot.slane %v1013, 4
    %v1015 = vmax.f32 %v1013, %v1014
    %v1016 = vrot.slane %v1015, 2
    %v1017 = vmax.f32 %v1015, %v1016
    %v1018 = vrot.slane %v1017, 1
    %v1019 = vmax.f32 %v1017, %v1018
    %v1020 = vpack.c.bf16 %v986, %v984
    %v1021 = vpack.c.bf16 %v987, %v985
    %v1022 = vpack.c.bf16 %v990, %v988
    %v1023 = vpack.c.bf16 %v991, %v989
    %v1024 = vld [vmem:[#allocation20] sm:$0xff]
    %v1025 = vld [vmem:[#allocation20 + $0x8] sm:$0xff]
    %v1026 = vld [vmem:[#allocation20 + $0x10] sm:$0xff]
    %v1027 = vld [vmem:[#allocation20 + $0x18] sm:$0xff]
    %v1028 = vld [vmem:[#allocation20 + $0x20] sm:$0xff]
    %v1029 = vld [vmem:[#allocation20 + $0x28] sm:$0xff]
    %v1030 = vld [vmem:[#allocation20 + $0x30] sm:$0xff]
    %v1031 = vld [vmem:[#allocation20 + $0x38] sm:$0xff]
    %v1032 = vld [vmem:[#allocation20 + $0x40] sm:$0xff]
    %v1033 = vld [vmem:[#allocation20 + $0x48] sm:$0xff]
    %v1034 = vld [vmem:[#allocation20 + $0x50] sm:$0xff]
    %v1035 = vld [vmem:[#allocation20 + $0x58] sm:$0xff]
    %v1036 = vld [vmem:[#allocation20 + $0x60] sm:$0xff]
    %v1037 = vld [vmem:[#allocation20 + $0x68] sm:$0xff]
    %v1038 = vld [vmem:[#allocation20 + $0x70] sm:$0xff]
    %v1039 = vld [vmem:[#allocation20 + $0x78] sm:$0xff]
    %v1040 = vld [vmem:[#allocation20 + $0x80] sm:$0xff]
    %v1041 = vld [vmem:[#allocation20 + $0x88] sm:$0xff]
    %v1042 = vld [vmem:[#allocation20 + $0x90] sm:$0xff]
    %v1043 = vld [vmem:[#allocation20 + $0x98] sm:$0xff]
    %v1044 = vld [vmem:[#allocation20 + $0xa0] sm:$0xff]
    %v1045 = vld [vmem:[#allocation20 + $0xa8] sm:$0xff]
    %v1046 = vld [vmem:[#allocation20 + $0xb0] sm:$0xff]
    %v1047 = vld [vmem:[#allocation20 + $0xb8] sm:$0xff]
    %v1048 = vld [vmem:[#allocation20 + $0xc0] sm:$0xff]
    %v1049 = vld [vmem:[#allocation20 + $0xc8] sm:$0xff]
    %v1050 = vld [vmem:[#allocation20 + $0xd0] sm:$0xff]
    %v1051 = vld [vmem:[#allocation20 + $0xd8] sm:$0xff]
    %v1052 = vld [vmem:[#allocation20 + $0xe0] sm:$0xff]
    %v1053 = vld [vmem:[#allocation20 + $0xe8] sm:$0xff]
    %v1054 = vld [vmem:[#allocation20 + $0xf0] sm:$0xff]
    %v1055 = vld [vmem:[#allocation20 + $0xf8] sm:$0xff]
    %v1056 = vld [vmem:[#allocation20 + $0x100] sm:$0xff]
    %v1057 = vld [vmem:[#allocation20 + $0x108] sm:$0xff]
    %v1058 = vld [vmem:[#allocation20 + $0x110] sm:$0xff]
    %v1059 = vld [vmem:[#allocation20 + $0x118] sm:$0xff]
    %v1060 = vld [vmem:[#allocation20 + $0x120] sm:$0xff]
    %v1061 = vld [vmem:[#allocation20 + $0x128] sm:$0xff]
    %v1062 = vld [vmem:[#allocation20 + $0x130] sm:$0xff]
    %v1063 = vld [vmem:[#allocation20 + $0x138] sm:$0xff]
    %v1064 = vld [vmem:[#allocation20 + $0x140] sm:$0xff]
    %v1065 = vld [vmem:[#allocation20 + $0x148] sm:$0xff]
    %v1066 = vld [vmem:[#allocation20 + $0x150] sm:$0xff]
    %v1067 = vld [vmem:[#allocation20 + $0x158] sm:$0xff]
    %v1068 = vld [vmem:[#allocation20 + $0x160] sm:$0xff]
    %v1069 = vld [vmem:[#allocation20 + $0x168] sm:$0xff]
    %v1070 = vld [vmem:[#allocation20 + $0x170] sm:$0xff]
    %v1071 = vld [vmem:[#allocation20 + $0x178] sm:$0xff]
    %v1072 = vld [vmem:[#allocation20 + $0x180] sm:$0xff]
    %v1073 = vld [vmem:[#allocation20 + $0x188] sm:$0xff]
    %v1074 = vld [vmem:[#allocation20 + $0x190] sm:$0xff]
    %v1075 = vld [vmem:[#allocation20 + $0x198] sm:$0xff]
    %v1076 = vld [vmem:[#allocation20 + $0x1a0] sm:$0xff]
    %v1077 = vld [vmem:[#allocation20 + $0x1a8] sm:$0xff]
    %v1078 = vld [vmem:[#allocation20 + $0x1b0] sm:$0xff]
    %v1079 = vld [vmem:[#allocation20 + $0x1b8] sm:$0xff]
    %v1080 = vld [vmem:[#allocation20 + $0x1c0] sm:$0xff]
    %v1081 = vld [vmem:[#allocation20 + $0x1c8] sm:$0xff]
    %v1082 = vld [vmem:[#allocation20 + $0x1d0] sm:$0xff]
    %v1083 = vld [vmem:[#allocation20 + $0x1d8] sm:$0xff]
    %v1084 = vld [vmem:[#allocation20 + $0x1e0] sm:$0xff]
    %v1085 = vld [vmem:[#allocation20 + $0x1e8] sm:$0xff]
    %v1086 = vld [vmem:[#allocation20 + $0x1f0] sm:$0xff]
    %v1087 = vld [vmem:[#allocation20 + $0x1f8] sm:$0xff]
    %v1152 = vunpack.c.l.b16 %v1024
    %v1153 = vunpack.c.h.b16 %v1024
    %v1154 = vunpack.c.l.b16 %v1025
    %v1155 = vunpack.c.h.b16 %v1025
    %v1156 = vunpack.c.l.b16 %v1026
    %v1157 = vunpack.c.h.b16 %v1026
    %v1158 = vunpack.c.l.b16 %v1027
    %v1159 = vunpack.c.h.b16 %v1027
    %v1160 = vunpack.c.l.b16 %v1028
    %v1161 = vunpack.c.h.b16 %v1028
    %v1162 = vunpack.c.l.b16 %v1029
    %v1163 = vunpack.c.h.b16 %v1029
    %v1164 = vunpack.c.l.b16 %v1030
    %v1165 = vunpack.c.h.b16 %v1030
    %v1166 = vunpack.c.l.b16 %v1031
    %v1167 = vunpack.c.h.b16 %v1031
    %v1168 = vunpack.c.l.b16 %v1032
    %v1169 = vunpack.c.h.b16 %v1032
    %v1170 = vunpack.c.l.b16 %v1033
    %v1171 = vunpack.c.h.b16 %v1033
    %v1172 = vunpack.c.l.b16 %v1034
    %v1173 = vunpack.c.h.b16 %v1034
    %v1174 = vunpack.c.l.b16 %v1035
    %v1175 = vunpack.c.h.b16 %v1035
    %v1176 = vunpack.c.l.b16 %v1036
    %v1177 = vunpack.c.h.b16 %v1036
    %v1178 = vunpack.c.l.b16 %v1037
    %v1179 = vunpack.c.h.b16 %v1037
    %v1180 = vunpack.c.l.b16 %v1038
    %v1181 = vunpack.c.h.b16 %v1038
    %v1182 = vunpack.c.l.b16 %v1039
    %v1183 = vunpack.c.h.b16 %v1039
    %v1184 = vunpack.c.l.b16 %v1040
    %v1185 = vunpack.c.h.b16 %v1040
    %v1186 = vunpack.c.l.b16 %v1041
    %v1187 = vunpack.c.h.b16 %v1041
    %v1188 = vunpack.c.l.b16 %v1042
    %v1189 = vunpack.c.h.b16 %v1042
    %v1190 = vunpack.c.l.b16 %v1043
    %v1191 = vunpack.c.h.b16 %v1043
    %v1192 = vunpack.c.l.b16 %v1044
    %v1193 = vunpack.c.h.b16 %v1044
    %v1194 = vunpack.c.l.b16 %v1045
    %v1195 = vunpack.c.h.b16 %v1045
    %v1196 = vunpack.c.l.b16 %v1046
    %v1197 = vunpack.c.h.b16 %v1046
    %v1198 = vunpack.c.l.b16 %v1047
    %v1199 = vunpack.c.h.b16 %v1047
    %v1200 = vunpack.c.l.b16 %v1048
    %v1201 = vunpack.c.h.b16 %v1048
    %v1202 = vunpack.c.l.b16 %v1049
    %v1203 = vunpack.c.h.b16 %v1049
    %v1204 = vunpack.c.l.b16 %v1050
    %v1205 = vunpack.c.h.b16 %v1050
    %v1206 = vunpack.c.l.b16 %v1051
    %v1207 = vunpack.c.h.b16 %v1051
    %v1208 = vunpack.c.l.b16 %v1052
    %v1209 = vunpack.c.h.b16 %v1052
    %v1210 = vunpack.c.l.b16 %v1053
    %v1211 = vunpack.c.h.b16 %v1053
    %v1212 = vunpack.c.l.b16 %v1054
    %v1213 = vunpack.c.h.b16 %v1054
    %v1214 = vunpack.c.l.b16 %v1055
    %v1215 = vunpack.c.h.b16 %v1055
    %v1216 = vunpack.c.l.b16 %v1056
    %v1217 = vunpack.c.h.b16 %v1056
    %v1218 = vunpack.c.l.b16 %v1057
    %v1219 = vunpack.c.h.b16 %v1057
    %v1220 = vunpack.c.l.b16 %v1058
    %v1221 = vunpack.c.h.b16 %v1058
    %v1222 = vunpack.c.l.b16 %v1059
    %v1223 = vunpack.c.h.b16 %v1059
    %v1224 = vunpack.c.l.b16 %v1060
    %v1225 = vunpack.c.h.b16 %v1060
    %v1226 = vunpack.c.l.b16 %v1061
    %v1227 = vunpack.c.h.b16 %v1061
    %v1228 = vunpack.c.l.b16 %v1062
    %v1229 = vunpack.c.h.b16 %v1062
    %v1230 = vunpack.c.l.b16 %v1063
    %v1231 = vunpack.c.h.b16 %v1063
    %v1232 = vunpack.c.l.b16 %v1064
    %v1233 = vunpack.c.h.b16 %v1064
    %v1234 = vunpack.c.l.b16 %v1065
    %v1235 = vunpack.c.h.b16 %v1065
    %v1236 = vunpack.c.l.b16 %v1066
    %v1237 = vunpack.c.h.b16 %v1066
    %v1238 = vunpack.c.l.b16 %v1067
    %v1239 = vunpack.c.h.b16 %v1067
    %v1240 = vunpack.c.l.b16 %v1068
    %v1241 = vunpack.c.h.b16 %v1068
    %v1242 = vunpack.c.l.b16 %v1069
    %v1243 = vunpack.c.h.b16 %v1069
    %v1244 = vunpack.c.l.b16 %v1070
    %v1245 = vunpack.c.h.b16 %v1070
    %v1246 = vunpack.c.l.b16 %v1071
    %v1247 = vunpack.c.h.b16 %v1071
    %v1248 = vunpack.c.l.b16 %v1072
    %v1249 = vunpack.c.h.b16 %v1072
    %v1250 = vunpack.c.l.b16 %v1073
    %v1251 = vunpack.c.h.b16 %v1073
    %v1252 = vunpack.c.l.b16 %v1074
    %v1253 = vunpack.c.h.b16 %v1074
    %v1254 = vunpack.c.l.b16 %v1075
    %v1255 = vunpack.c.h.b16 %v1075
    %v1256 = vunpack.c.l.b16 %v1076
    %v1257 = vunpack.c.h.b16 %v1076
    %v1258 = vunpack.c.l.b16 %v1077
    %v1259 = vunpack.c.h.b16 %v1077
    %v1260 = vunpack.c.l.b16 %v1078
    %v1261 = vunpack.c.h.b16 %v1078
    %v1262 = vunpack.c.l.b16 %v1079
    %v1263 = vunpack.c.h.b16 %v1079
    %v1264 = vunpack.c.l.b16 %v1080
    %v1265 = vunpack.c.h.b16 %v1080
    %v1266 = vunpack.c.l.b16 %v1081
    %v1267 = vunpack.c.h.b16 %v1081
    %v1268 = vunpack.c.l.b16 %v1082
    %v1269 = vunpack.c.h.b16 %v1082
    %v1270 = vunpack.c.l.b16 %v1083
    %v1271 = vunpack.c.h.b16 %v1083
    %v1272 = vunpack.c.l.b16 %v1084
    %v1273 = vunpack.c.h.b16 %v1084
    %v1274 = vunpack.c.l.b16 %v1085
    %v1275 = vunpack.c.h.b16 %v1085
    %v1276 = vunpack.c.l.b16 %v1086
    %v1277 = vunpack.c.h.b16 %v1086
    %v1278 = vunpack.c.l.b16 %v1087
    %v1279 = vunpack.c.h.b16 %v1087
    %v1280 = vpack.c.b16 %v1156, %v1152
    %v1281 = vpack.c.b16 %v1157, %v1153
    %v1282 = vpack.c.b16 %v1158, %v1154
    %v1283 = vpack.c.b16 %v1159, %v1155
    %v1284 = vpack.c.b16 %v1164, %v1160
    %v1285 = vpack.c.b16 %v1165, %v1161
    %v1286 = vpack.c.b16 %v1166, %v1162
    %v1287 = vpack.c.b16 %v1167, %v1163
    %v1288 = vpack.c.b16 %v1172, %v1168
    %v1289 = vpack.c.b16 %v1173, %v1169
    %v1290 = vpack.c.b16 %v1174, %v1170
    %v1291 = vpack.c.b16 %v1175, %v1171
    %v1292 = vpack.c.b16 %v1180, %v1176
    %v1293 = vpack.c.b16 %v1181, %v1177
    %v1294 = vpack.c.b16 %v1182, %v1178
    %v1295 = vpack.c.b16 %v1183, %v1179
    %v1296 = vpack.c.b16 %v1188, %v1184
    %v1297 = vpack.c.b16 %v1189, %v1185
    %v1298 = vpack.c.b16 %v1190, %v1186
    %v1299 = vpack.c.b16 %v1191, %v1187
    %v1300 = vpack.c.b16 %v1196, %v1192
    %v1301 = vpack.c.b16 %v1197, %v1193
    %v1302 = vpack.c.b16 %v1198, %v1194
    %v1303 = vpack.c.b16 %v1199, %v1195
    %v1304 = vpack.c.b16 %v1204, %v1200
    %v1305 = vpack.c.b16 %v1205, %v1201
    %v1306 = vpack.c.b16 %v1206, %v1202
    %v1307 = vpack.c.b16 %v1207, %v1203
    %v1308 = vpack.c.b16 %v1212, %v1208
    %v1309 = vpack.c.b16 %v1213, %v1209
    %v1310 = vpack.c.b16 %v1214, %v1210
    %v1311 = vpack.c.b16 %v1215, %v1211
    %v1312 = vpack.c.b16 %v1220, %v1216
    %v1313 = vpack.c.b16 %v1221, %v1217
    %v1314 = vpack.c.b16 %v1222, %v1218
    %v1315 = vpack.c.b16 %v1223, %v1219
    %v1316 = vpack.c.b16 %v1228, %v1224
    %v1317 = vpack.c.b16 %v1229, %v1225
    %v1318 = vpack.c.b16 %v1230, %v1226
    %v1319 = vpack.c.b16 %v1231, %v1227
    %v1320 = vpack.c.b16 %v1236, %v1232
    %v1321 = vpack.c.b16 %v1237, %v1233
    %v1322 = vpack.c.b16 %v1238, %v1234
    %v1323 = vpack.c.b16 %v1239, %v1235
    %v1324 = vpack.c.b16 %v1244, %v1240
    %v1325 = vpack.c.b16 %v1245, %v1241
    %v1326 = vpack.c.b16 %v1246, %v1242
    %v1327 = vpack.c.b16 %v1247, %v1243
    %v1328 = vpack.c.b16 %v1252, %v1248
    %v1329 = vpack.c.b16 %v1253, %v1249
    %v1330 = vpack.c.b16 %v1254, %v1250
    %v1331 = vpack.c.b16 %v1255, %v1251
    %v1332 = vpack.c.b16 %v1260, %v1256
    %v1333 = vpack.c.b16 %v1261, %v1257
    %v1334 = vpack.c.b16 %v1262, %v1258
    %v1335 = vpack.c.b16 %v1263, %v1259
    %v1336 = vpack.c.b16 %v1268, %v1264
    %v1337 = vpack.c.b16 %v1269, %v1265
    %v1338 = vpack.c.b16 %v1270, %v1266
    %v1339 = vpack.c.b16 %v1271, %v1267
    %v1340 = vpack.c.b16 %v1276, %v1272
    %v1341 = vpack.c.b16 %v1277, %v1273
    %v1342 = vpack.c.b16 %v1278, %v1274
    %v1343 = vpack.c.b16 %v1279, %v1275
    %1408 = vmatprep.subr.bf16.mxu0 %v1309
    %1409 = vmatpush1.bf16.msra.mxu0 %v1308
    %1410 = vmatprep.subr.bf16.mxu0 %v1305
    %1411 = vmatpush1.bf16.msra.mxu0 %v1304
    %1412 = vmatprep.subr.bf16.mxu0 %v1301
    %1413 = vmatpush1.bf16.msra.mxu0 %v1300
    %1414 = vmatprep.subr.bf16.mxu0 %v1297
    %1415 = vmatpush1.bf16.msra.mxu0 %v1296
    %1416 = vmatprep.subr.bf16.mxu0 %v1293
    %1417 = vmatpush1.bf16.msra.mxu0 %v1292
    %1418 = vmatprep.subr.bf16.mxu0 %v1289
    %1419 = vmatpush1.bf16.msra.mxu0 %v1288
    %1420 = vmatprep.subr.bf16.mxu0 %v1285
    %1421 = vmatpush1.bf16.msra.mxu0 %v1284
    %1422 = vmatprep.subr.bf16.mxu0 %v1281
    %1423 = vmatpush1.bf16.msra.mxu0 %v1280
    %1424 = vmatprep.subr.bf16.mxu0 %v1341
    %1425 = vmatpush2.bf16.msra.mxu0 %v1340
    %1426 = vmatprep.subr.bf16.mxu0 %v1337
    %1427 = vmatpush2.bf16.msra.mxu0 %v1336
    %1428 = vmatprep.subr.bf16.mxu0 %v1333
    %1429 = vmatpush2.bf16.msra.mxu0 %v1332
    %1430 = vmatprep.subr.bf16.mxu0 %v1329
    %1431 = vmatpush2.bf16.msra.mxu0 %v1328
    %1432 = vmatprep.subr.bf16.mxu0 %v1325
    %1433 = vmatpush2.bf16.msra.mxu0 %v1324
    %1434 = vmatprep.subr.bf16.mxu0 %v1321
    %1435 = vmatpush2.bf16.msra.mxu0 %v1320
    %1436 = vmatprep.subr.bf16.mxu0 %v1317
    %1437 = vmatpush2.bf16.msra.mxu0 %v1316
    %1438 = vmatprep.subr.bf16.mxu0 %v1313
    %1439 = vmatpush2.bf16.msra.mxu0 %v1312
    %1440 = vmatprep.mubr.bf16.mxu0 %v1021
    %1441 = vmatmul.mubr.bf16.gmra.mxu0 %v1020
    %v1442 = vpop.f32.mrf.mxu0
    %v1443 = vadd.f32 0.0, %v1442
    %v1444 = vpop.f32.mrf.mxu0
    %v1445 = vadd.f32 0.0, %v1444
    %v1446 = vpop.f32.mrf.mxu0
    %v1447 = vadd.f32 0.0, %v1446
    %v1448 = vpop.f32.mrf.mxu0
    %v1449 = vadd.f32 0.0, %v1448
    %1450 = vmatprep.mubr.bf16.mxu0 %v1023
    %1451 = vmatmul.mubr.bf16.gmra.mxu0 %v1022
    %v1452 = vpop.f32.mrf.mxu0
    %v1453 = vadd.f32 0.0, %v1452
    %v1454 = vpop.f32.mrf.mxu0
    %v1455 = vadd.f32 0.0, %v1454
    %v1456 = vpop.f32.mrf.mxu0
    %v1457 = vadd.f32 0.0, %v1456
    %v1458 = vpop.f32.mrf.mxu0
    %v1459 = vadd.f32 0.0, %v1458
    %1460 = vdwg.mxu0
    %1461 = vmatprep.subr.bf16.mxu0 %v1311
    %1462 = vmatpush1.bf16.msra.mxu0 %v1310
    %1463 = vmatprep.subr.bf16.mxu0 %v1307
    %1464 = vmatpush1.bf16.msra.mxu0 %v1306
    %1465 = vmatprep.subr.bf16.mxu0 %v1303
    %1466 = vmatpush1.bf16.msra.mxu0 %v1302
    %1467 = vmatprep.subr.bf16.mxu0 %v1299
    %1468 = vmatpush1.bf16.msra.mxu0 %v1298
    %1469 = vmatprep.subr.bf16.mxu0 %v1295
    %1470 = vmatpush1.bf16.msra.mxu0 %v1294
    %1471 = vmatprep.subr.bf16.mxu0 %v1291
    %1472 = vmatpush1.bf16.msra.mxu0 %v1290
    %1473 = vmatprep.subr.bf16.mxu0 %v1287
    %1474 = vmatpush1.bf16.msra.mxu0 %v1286
    %1475 = vmatprep.subr.bf16.mxu0 %v1283
    %1476 = vmatpush1.bf16.msra.mxu0 %v1282
    %1477 = vmatprep.subr.bf16.mxu0 %v1343
    %1478 = vmatpush2.bf16.msra.mxu0 %v1342
    %1479 = vmatprep.subr.bf16.mxu0 %v1339
    %1480 = vmatpush2.bf16.msra.mxu0 %v1338
    %1481 = vmatprep.subr.bf16.mxu0 %v1335
    %1482 = vmatpush2.bf16.msra.mxu0 %v1334
    %1483 = vmatprep.subr.bf16.mxu0 %v1331
    %1484 = vmatpush2.bf16.msra.mxu0 %v1330
    %1485 = vmatprep.subr.bf16.mxu0 %v1327
    %1486 = vmatpush2.bf16.msra.mxu0 %v1326
    %1487 = vmatprep.subr.bf16.mxu0 %v1323
    %1488 = vmatpush2.bf16.msra.mxu0 %v1322
    %1489 = vmatprep.subr.bf16.mxu0 %v1319
    %1490 = vmatpush2.bf16.msra.mxu0 %v1318
    %1491 = vmatprep.subr.bf16.mxu0 %v1315
    %1492 = vmatpush2.bf16.msra.mxu0 %v1314
    %1493 = vmatprep.mubr.bf16.mxu0 %v1021
    %1494 = vmatmul.mubr.bf16.gmra.mxu0 %v1020
    %v1495 = vpop.f32.mrf.mxu0
    %v1496 = vadd.f32 0.0, %v1495
    %v1497 = vpop.f32.mrf.mxu0
    %v1498 = vadd.f32 0.0, %v1497
    %v1499 = vpop.f32.mrf.mxu0
    %v1500 = vadd.f32 0.0, %v1499
    %v1501 = vpop.f32.mrf.mxu0
    %v1502 = vadd.f32 0.0, %v1501
    %1503 = vmatprep.mubr.bf16.mxu0 %v1023
    %1504 = vmatmul.mubr.bf16.gmra.mxu0 %v1022
    %v1505 = vpop.f32.mrf.mxu0
    %v1506 = vadd.f32 0.0, %v1505
    %v1507 = vpop.f32.mrf.mxu0
    %v1508 = vadd.f32 0.0, %v1507
    %v1509 = vpop.f32.mrf.mxu0
    %v1510 = vadd.f32 0.0, %v1509
    %v1511 = vpop.f32.mrf.mxu0
    %v1512 = vadd.f32 0.0, %v1511
    %1513 = vdwg.mxu0
    %v1514 = vadd.f32 %v1443, %v1447
    %v1515 = vadd.f32 %v1514, %v1453
    %v1516 = vadd.f32 %v1515, %v1457
    %v1517 = vrot.slane %v1516, 4
    %v1518 = vadd.f32 %v1516, %v1517
    %v1519 = vrot.slane %v1518, 2
    %v1520 = vadd.f32 %v1518, %v1519
    %v1521 = vrot.slane %v1520, 1
    %v1522 = vadd.f32 %v1520, %v1521
    %v1523 = vadd.f32 %v1445, %v1449
    %v1524 = vadd.f32 %v1523, %v1455
    %v1525 = vadd.f32 %v1524, %v1459
    %v1526 = vrot.slane %v1525, 4
    %v1527 = vadd.f32 %v1525, %v1526
    %v1528 = vrot.slane %v1527, 2
    %v1529 = vadd.f32 %v1527, %v1528
    %v1530 = vrot.slane %v1529, 1
    %v1531 = vadd.f32 %v1529, %v1530
    %v1532 = vadd.f32 %v1496, %v1500
    %v1533 = vadd.f32 %v1532, %v1506
    %v1534 = vadd.f32 %v1533, %v1510
    %v1535 = vrot.slane %v1534, 4
    %v1536 = vadd.f32 %v1534, %v1535
    %v1537 = vrot.slane %v1536, 2
    %v1538 = vadd.f32 %v1536, %v1537
    %v1539 = vrot.slane %v1538, 1
    %v1540 = vadd.f32 %v1538, %v1539
    %v1541 = vadd.f32 %v1498, %v1502
    %v1542 = vadd.f32 %v1541, %v1508
    %v1543 = vadd.f32 %v1542, %v1512
    %v1544 = vrot.slane %v1543, 4
    %v1545 = vadd.f32 %v1543, %v1544
    %v1546 = vrot.slane %v1545, 2
    %v1547 = vadd.f32 %v1545, %v1546
    %v1548 = vrot.slane %v1547, 1
    %v1549 = vadd.f32 %v1547, %v1548
    %v1550 = vmul.f32 %v1522, %v325
    %v1551 = vmul.f32 %v1531, %v325
    %v1552 = vmul.f32 %v1540, %v325
    %v1553 = vmul.f32 %v1549, %v325
    %v1554 = vmul.f32 %v1443, %v1443
    %v1555 = vmul.f32 %v1445, %v1445
    %v1556 = vmul.f32 %v1496, %v1496
    %v1557 = vmul.f32 %v1498, %v1498
    %v1558 = vmul.f32 %v1447, %v1447
    %v1559 = vmul.f32 %v1449, %v1449
    %v1560 = vmul.f32 %v1500, %v1500
    %v1561 = vmul.f32 %v1502, %v1502
    %v1562 = vmul.f32 %v1453, %v1453
    %v1563 = vmul.f32 %v1455, %v1455
    %v1564 = vmul.f32 %v1506, %v1506
    %v1565 = vmul.f32 %v1508, %v1508
    %v1566 = vmul.f32 %v1457, %v1457
    %v1567 = vmul.f32 %v1459, %v1459
    %v1568 = vmul.f32 %v1510, %v1510
    %v1569 = vmul.f32 %v1512, %v1512
    %v1570 = vadd.f32 %v1554, %v1558
    %v1571 = vadd.f32 %v1570, %v1562
    %v1572 = vadd.f32 %v1571, %v1566
    %v1573 = vrot.slane %v1572, 4
    %v1574 = vadd.f32 %v1572, %v1573
    %v1575 = vrot.slane %v1574, 2
    %v1576 = vadd.f32 %v1574, %v1575
    %v1577 = vrot.slane %v1576, 1
    %v1578 = vadd.f32 %v1576, %v1577
    %v1579 = vadd.f32 %v1555, %v1559
    %v1580 = vadd.f32 %v1579, %v1563
    %v1581 = vadd.f32 %v1580, %v1567
    %v1582 = vrot.slane %v1581, 4
    %v1583 = vadd.f32 %v1581, %v1582
    %v1584 = vrot.slane %v1583, 2
    %v1585 = vadd.f32 %v1583, %v1584
    %v1586 = vrot.slane %v1585, 1
    %v1587 = vadd.f32 %v1585, %v1586
    %v1588 = vadd.f32 %v1556, %v1560
    %v1589 = vadd.f32 %v1588, %v1564
    %v1590 = vadd.f32 %v1589, %v1568
    %v1591 = vrot.slane %v1590, 4
    %v1592 = vadd.f32 %v1590, %v1591
    %v1593 = vrot.slane %v1592, 2
    %v1594 = vadd.f32 %v1592, %v1593
    %v1595 = vrot.slane %v1594, 1
    %v1596 = vadd.f32 %v1594, %v1595
    %v1597 = vadd.f32 %v1557, %v1561
    %v1598 = vadd.f32 %v1597, %v1565
    %v1599 = vadd.f32 %v1598, %v1569
    %v1600 = vrot.slane %v1599, 4
    %v1601 = vadd.f32 %v1599, %v1600
    %v1602 = vrot.slane %v1601, 2
    %v1603 = vadd.f32 %v1601, %v1602
    %v1604 = vrot.slane %v1603, 1
    %v1605 = vadd.f32 %v1603, %v1604
    %v1606 = vmul.f32 %v1578, %v325
    %v1607 = vmul.f32 %v1587, %v325
    %v1608 = vmul.f32 %v1596, %v325
    %v1609 = vmul.f32 %v1605, %v325
    %v1610 = vmul.f32 %v1550, %v1550
    %v1611 = vmul.f32 %v1551, %v1551
    %v1612 = vmul.f32 %v1552, %v1552
    %v1613 = vmul.f32 %v1553, %v1553
    %v1614 = vsub.f32 %v1606, %v1610
    %v1615 = vsub.f32 %v1607, %v1611
    %v1616 = vsub.f32 %v1608, %v1612
    %v1617 = vsub.f32 %v1609, %v1613
    %v1618 = vmax.f32 %v1614, 0.0
    %v1619 = vmax.f32 %v1615, 0.0
    %v1620 = vmax.f32 %v1616, 0.0
    %v1621 = vmax.f32 %v1617, 0.0
    %v1622 = vld [vmem:[%s14] sm:$0xf]
    %v1623 = vadd.f32 %v1618, 1e-05
    %v1624 = vadd.f32 %v1619, 1e-05
    %v1625 = vadd.f32 %v1620, 1e-05
    %v1626 = vadd.f32 %v1621, 1e-05
    %v1627 = vrsqrt.pop %v1623
    %v1628 = vrsqrt.pop %v1624
    %v1629 = vrsqrt.pop %v1625
    %v1630 = vrsqrt.pop %v1626
    %v1635 = vcombine.low %v1627, %v1628
    %v1636 = vcombine.low %v1629, %v1630
    %v1638 = vunpack.c.l.s4 1966171168
    %v1639 = vunpack.c.0.s8 %v1638
    %v1640 = vlaneseq
    %v1641 = vshrl.u32 %v1640, 7
    %v1642 = vsub.s32 %v1639, %v1641
    %v1643 = vrot.slane %v1635, %v1642
    %v1645 = vunpack.c.l.s4 1966171168
    %v1646 = vunpack.c.0.s8 %v1645
    %v1647 = vlaneseq
    %v1648 = vshrl.u32 %v1647, 7
    %v1649 = vsub.s32 %v1646, %v1648
    %v1650 = vrot.slane %v1636, %v1649
    %v1651 = vcombine.low %v1643, %v1650
    %v1653 = vunpack.c.l.s4 1966171168
    %v1654 = vunpack.c.0.s8 %v1653
    %v1655 = vlaneseq
    %v1656 = vshrl.u32 %v1655, 7
    %v1657 = vsub.s32 %v1654, %v1656
    %v1658 = vrot.slane %v1651, %v1657
    %v1660 = vmul.f32 %v1622, %v1658
    %v1661 = vld [vmem:[%s15] sm:$0xf]
    %v1663 = vlaneseq
    %v1664 = vshrl.u32 %v1663, 7
    %v1665 = vsub.s32 0, %v1664
    %v1666 = vrot.slane %v1660, %v1665
    %v1667 = vlaneseq
    %v1668 = vshrl.u32 %v1667, 7
    %v1669 = vsub.s32 1, %v1668
    %v1670 = vrot.slane %v1660, %v1669
    %v1671 = vlaneseq
    %v1672 = vshrl.u32 %v1671, 7
    %v1673 = vsub.s32 2, %v1672
    %v1674 = vrot.slane %v1660, %v1673
    %v1675 = vlaneseq
    %v1676 = vshrl.u32 %v1675, 7
    %v1677 = vsub.s32 3, %v1676
    %v1678 = vrot.slane %v1660, %v1677
    %v1683 = vmul.f32 %v1550, %v1666
    %v1684 = vmul.f32 %v1551, %v1670
    %v1685 = vmul.f32 %v1552, %v1674
    %v1686 = vmul.f32 %v1553, %v1678
    %v1691 = vcombine.low %v1683, %v1684
    %v1692 = vcombine.low %v1685, %v1686
    %v1694 = vunpack.c.l.s4 1966171168
    %v1695 = vunpack.c.0.s8 %v1694
    %v1696 = vlaneseq
    %v1697 = vshrl.u32 %v1696, 7
    %v1698 = vsub.s32 %v1695, %v1697
    %v1699 = vrot.slane %v1691, %v1698
    %v1701 = vunpack.c.l.s4 1966171168
    %v1702 = vunpack.c.0.s8 %v1701
    %v1703 = vlaneseq
    %v1704 = vshrl.u32 %v1703, 7
    %v1705 = vsub.s32 %v1702, %v1704
    %v1706 = vrot.slane %v1692, %v1705
    %v1707 = vcombine.low %v1699, %v1706
    %v1709 = vunpack.c.l.s4 1966171168
    %v1710 = vunpack.c.0.s8 %v1709
    %v1711 = vlaneseq
    %v1712 = vshrl.u32 %v1711, 7
    %v1713 = vsub.s32 %v1710, %v1712
    %v1714 = vrot.slane %v1707, %v1713
    %v1716 = vsub.f32 %v1661, %v1714
    %v1717 = vmul.f32 %v1443, %v1666
    %v1718 = vmul.f32 %v1445, %v1670
    %v1719 = vmul.f32 %v1496, %v1674
    %v1720 = vmul.f32 %v1498, %v1678
    %v1721 = vmul.f32 %v1447, %v1666
    %v1722 = vmul.f32 %v1449, %v1670
    %v1723 = vmul.f32 %v1500, %v1674
    %v1724 = vmul.f32 %v1502, %v1678
    %v1725 = vmul.f32 %v1453, %v1666
    %v1726 = vmul.f32 %v1455, %v1670
    %v1727 = vmul.f32 %v1506, %v1674
    %v1728 = vmul.f32 %v1508, %v1678
    %v1729 = vmul.f32 %v1457, %v1666
    %v1730 = vmul.f32 %v1459, %v1670
    %v1731 = vmul.f32 %v1510, %v1674
    %v1732 = vmul.f32 %v1512, %v1678
    %v1734 = vlaneseq
    %v1735 = vshrl.u32 %v1734, 7
    %v1736 = vsub.s32 0, %v1735
    %v1737 = vrot.slane %v1716, %v1736
    %v1738 = vlaneseq
    %v1739 = vshrl.u32 %v1738, 7
    %v1740 = vsub.s32 1, %v1739
    %v1741 = vrot.slane %v1716, %v1740
    %v1742 = vlaneseq
    %v1743 = vshrl.u32 %v1742, 7
    %v1744 = vsub.s32 2, %v1743
    %v1745 = vrot.slane %v1716, %v1744
    %v1746 = vlaneseq
    %v1747 = vshrl.u32 %v1746, 7
    %v1748 = vsub.s32 3, %v1747
    %v1749 = vrot.slane %v1716, %v1748
    %v1754 = vadd.f32 %v1717, %v1737
    %v1755 = vadd.f32 %v1718, %v1741
    %v1756 = vadd.f32 %v1719, %v1745
    %v1757 = vadd.f32 %v1720, %v1749
    %v1758 = vadd.f32 %v1721, %v1737
    %v1759 = vadd.f32 %v1722, %v1741
    %v1760 = vadd.f32 %v1723, %v1745
    %v1761 = vadd.f32 %v1724, %v1749
    %v1762 = vadd.f32 %v1725, %v1737
    %v1763 = vadd.f32 %v1726, %v1741
    %v1764 = vadd.f32 %v1727, %v1745
    %v1765 = vadd.f32 %v1728, %v1749
    %v1766 = vadd.f32 %v1729, %v1737
    %v1767 = vadd.f32 %v1730, %v1741
    %v1768 = vadd.f32 %v1731, %v1745
    %v1769 = vadd.f32 %v1732, %v1749
    %v1770 = vmax.f32 %v1754, 0.0
    %v1771 = vmax.f32 %v1755, 0.0
    %v1772 = vmax.f32 %v1756, 0.0
    %v1773 = vmax.f32 %v1757, 0.0
    %v1774 = vmax.f32 %v1758, 0.0
    %v1775 = vmax.f32 %v1759, 0.0
    %v1776 = vmax.f32 %v1760, 0.0
    %v1777 = vmax.f32 %v1761, 0.0
    %v1778 = vmax.f32 %v1762, 0.0
    %v1779 = vmax.f32 %v1763, 0.0
    %v1780 = vmax.f32 %v1764, 0.0
    %v1781 = vmax.f32 %v1765, 0.0
    %v1782 = vmax.f32 %v1766, 0.0
    %v1783 = vmax.f32 %v1767, 0.0
    %v1784 = vmax.f32 %v1768, 0.0
    %v1785 = vmax.f32 %v1769, 0.0
    %v1786 = vmax.f32 %v1770, %v1774
    %v1787 = vrot.slane %v1786, 4
    %v1788 = vmax.f32 %v1786, %v1787
    %v1789 = vrot.slane %v1788, 2
    %v1790 = vmax.f32 %v1788, %v1789
    %v1791 = vrot.slane %v1790, 1
    %v1792 = vmax.f32 %v1790, %v1791
    %v1793 = vmax.f32 %v1771, %v1775
    %v1794 = vrot.slane %v1793, 4
    %v1795 = vmax.f32 %v1793, %v1794
    %v1796 = vrot.slane %v1795, 2
    %v1797 = vmax.f32 %v1795, %v1796
    %v1798 = vrot.slane %v1797, 1
    %v1799 = vmax.f32 %v1797, %v1798
    %v1800 = vmax.f32 %v1772, %v1776
    %v1801 = vrot.slane %v1800, 4
    %v1802 = vmax.f32 %v1800, %v1801
    %v1803 = vrot.slane %v1802, 2
    %v1804 = vmax.f32 %v1802, %v1803
    %v1805 = vrot.slane %v1804, 1
    %v1806 = vmax.f32 %v1804, %v1805
    %v1807 = vmax.f32 %v1773, %v1777
    %v1808 = vrot.slane %v1807, 4
    %v1809 = vmax.f32 %v1807, %v1808
    %v1810 = vrot.slane %v1809, 2
    %v1811 = vmax.f32 %v1809, %v1810
    %v1812 = vrot.slane %v1811, 1
    %v1813 = vmax.f32 %v1811, %v1812
    %v1814 = vmax.f32 %v1778, %v1782
    %v1815 = vrot.slane %v1814, 4
    %v1816 = vmax.f32 %v1814, %v1815
    %v1817 = vrot.slane %v1816, 2
    %v1818 = vmax.f32 %v1816, %v1817
    %v1819 = vrot.slane %v1818, 1
    %v1820 = vmax.f32 %v1818, %v1819
    %v1821 = vmax.f32 %v1779, %v1783
    %v1822 = vrot.slane %v1821, 4
    %v1823 = vmax.f32 %v1821, %v1822
    %v1824 = vrot.slane %v1823, 2
    %v1825 = vmax.f32 %v1823, %v1824
    %v1826 = vrot.slane %v1825, 1
    %v1827 = vmax.f32 %v1825, %v1826
    %v1828 = vmax.f32 %v1780, %v1784
    %v1829 = vrot.slane %v1828, 4
    %v1830 = vmax.f32 %v1828, %v1829
    %v1831 = vrot.slane %v1830, 2
    %v1832 = vmax.f32 %v1830, %v1831
    %v1833 = vrot.slane %v1832, 1
    %v1834 = vmax.f32 %v1832, %v1833
    %v1835 = vmax.f32 %v1781, %v1785
    %v1836 = vrot.slane %v1835, 4
    %v1837 = vmax.f32 %v1835, %v1836
    %v1838 = vrot.slane %v1837, 2
    %v1839 = vmax.f32 %v1837, %v1838
    %v1840 = vrot.slane %v1839, 1
    %v1841 = vmax.f32 %v1839, %v1840
    %v1842 = vpack.c.bf16 %v1774, %v1770
    %v1843 = vpack.c.bf16 %v1775, %v1771
    %v1844 = vpack.c.bf16 %v1776, %v1772
    %v1845 = vpack.c.bf16 %v1777, %v1773
    %v1846 = vpack.c.bf16 %v1782, %v1778
    %v1847 = vpack.c.bf16 %v1783, %v1779
    %v1848 = vpack.c.bf16 %v1784, %v1780
    %v1849 = vpack.c.bf16 %v1785, %v1781
    %v1850 = vld [vmem:[#allocation22] sm:$0xff]
    %v1851 = vld [vmem:[#allocation22 + $0x8] sm:$0xff]
    %v1852 = vld [vmem:[#allocation22 + $0x10] sm:$0xff]
    %v1853 = vld [vmem:[#allocation22 + $0x18] sm:$0xff]
    %v1854 = vld [vmem:[#allocation22 + $0x20] sm:$0xff]
    %v1855 = vld [vmem:[#allocation22 + $0x28] sm:$0xff]
    %v1856 = vld [vmem:[#allocation22 + $0x30] sm:$0xff]
    %v1857 = vld [vmem:[#allocation22 + $0x38] sm:$0xff]
    %v1858 = vld [vmem:[#allocation22 + $0x40] sm:$0xff]
    %v1859 = vld [vmem:[#allocation22 + $0x48] sm:$0xff]
    %v1860 = vld [vmem:[#allocation22 + $0x50] sm:$0xff]
    %v1861 = vld [vmem:[#allocation22 + $0x58] sm:$0xff]
    %v1862 = vld [vmem:[#allocation22 + $0x60] sm:$0xff]
    %v1863 = vld [vmem:[#allocation22 + $0x68] sm:$0xff]
    %v1864 = vld [vmem:[#allocation22 + $0x70] sm:$0xff]
    %v1865 = vld [vmem:[#allocation22 + $0x78] sm:$0xff]
    %v1866 = vld [vmem:[#allocation22 + $0x80] sm:$0xff]
    %v1867 = vld [vmem:[#allocation22 + $0x88] sm:$0xff]
    %v1868 = vld [vmem:[#allocation22 + $0x90] sm:$0xff]
    %v1869 = vld [vmem:[#allocation22 + $0x98] sm:$0xff]
    %v1870 = vld [vmem:[#allocation22 + $0xa0] sm:$0xff]
    %v1871 = vld [vmem:[#allocation22 + $0xa8] sm:$0xff]
    %v1872 = vld [vmem:[#allocation22 + $0xb0] sm:$0xff]
    %v1873 = vld [vmem:[#allocation22 + $0xb8] sm:$0xff]
    %v1874 = vld [vmem:[#allocation22 + $0xc0] sm:$0xff]
    %v1875 = vld [vmem:[#allocation22 + $0xc8] sm:$0xff]
    %v1876 = vld [vmem:[#allocation22 + $0xd0] sm:$0xff]
    %v1877 = vld [vmem:[#allocation22 + $0xd8] sm:$0xff]
    %v1878 = vld [vmem:[#allocation22 + $0xe0] sm:$0xff]
    %v1879 = vld [vmem:[#allocation22 + $0xe8] sm:$0xff]
    %v1880 = vld [vmem:[#allocation22 + $0xf0] sm:$0xff]
    %v1881 = vld [vmem:[#allocation22 + $0xf8] sm:$0xff]
    %v1882 = vld [vmem:[#allocation22 + $0x100] sm:$0xff]
    %v1883 = vld [vmem:[#allocation22 + $0x108] sm:$0xff]
    %v1884 = vld [vmem:[#allocation22 + $0x110] sm:$0xff]
    %v1885 = vld [vmem:[#allocation22 + $0x118] sm:$0xff]
    %v1886 = vld [vmem:[#allocation22 + $0x120] sm:$0xff]
    %v1887 = vld [vmem:[#allocation22 + $0x128] sm:$0xff]
    %v1888 = vld [vmem:[#allocation22 + $0x130] sm:$0xff]
    %v1889 = vld [vmem:[#allocation22 + $0x138] sm:$0xff]
    %v1890 = vld [vmem:[#allocation22 + $0x140] sm:$0xff]
    %v1891 = vld [vmem:[#allocation22 + $0x148] sm:$0xff]
    %v1892 = vld [vmem:[#allocation22 + $0x150] sm:$0xff]
    %v1893 = vld [vmem:[#allocation22 + $0x158] sm:$0xff]
    %v1894 = vld [vmem:[#allocation22 + $0x160] sm:$0xff]
    %v1895 = vld [vmem:[#allocation22 + $0x168] sm:$0xff]
    %v1896 = vld [vmem:[#allocation22 + $0x170] sm:$0xff]
    %v1897 = vld [vmem:[#allocation22 + $0x178] sm:$0xff]
    %v1898 = vld [vmem:[#allocation22 + $0x180] sm:$0xff]
    %v1899 = vld [vmem:[#allocation22 + $0x188] sm:$0xff]
    %v1900 = vld [vmem:[#allocation22 + $0x190] sm:$0xff]
    %v1901 = vld [vmem:[#allocation22 + $0x198] sm:$0xff]
    %v1902 = vld [vmem:[#allocation22 + $0x1a0] sm:$0xff]
    %v1903 = vld [vmem:[#allocation22 + $0x1a8] sm:$0xff]
    %v1904 = vld [vmem:[#allocation22 + $0x1b0] sm:$0xff]
    %v1905 = vld [vmem:[#allocation22 + $0x1b8] sm:$0xff]
    %v1906 = vld [vmem:[#allocation22 + $0x1c0] sm:$0xff]
    %v1907 = vld [vmem:[#allocation22 + $0x1c8] sm:$0xff]
    %v1908 = vld [vmem:[#allocation22 + $0x1d0] sm:$0xff]
    %v1909 = vld [vmem:[#allocation22 + $0x1d8] sm:$0xff]
    %v1910 = vld [vmem:[#allocation22 + $0x1e0] sm:$0xff]
    %v1911 = vld [vmem:[#allocation22 + $0x1e8] sm:$0xff]
    %v1912 = vld [vmem:[#allocation22 + $0x1f0] sm:$0xff]
    %v1913 = vld [vmem:[#allocation22 + $0x1f8] sm:$0xff]
    %v1914 = vld [vmem:[#allocation22 + $0x200] sm:$0xff]
    %v1915 = vld [vmem:[#allocation22 + $0x208] sm:$0xff]
    %v1916 = vld [vmem:[#allocation22 + $0x210] sm:$0xff]
    %v1917 = vld [vmem:[#allocation22 + $0x218] sm:$0xff]
    %v1918 = vld [vmem:[#allocation22 + $0x220] sm:$0xff]
    %v1919 = vld [vmem:[#allocation22 + $0x228] sm:$0xff]
    %v1920 = vld [vmem:[#allocation22 + $0x230] sm:$0xff]
    %v1921 = vld [vmem:[#allocation22 + $0x238] sm:$0xff]
    %v1922 = vld [vmem:[#allocation22 + $0x240] sm:$0xff]
    %v1923 = vld [vmem:[#allocation22 + $0x248] sm:$0xff]
    %v1924 = vld [vmem:[#allocation22 + $0x250] sm:$0xff]
    %v1925 = vld [vmem:[#allocation22 + $0x258] sm:$0xff]
    %v1926 = vld [vmem:[#allocation22 + $0x260] sm:$0xff]
    %v1927 = vld [vmem:[#allocation22 + $0x268] sm:$0xff]
    %v1928 = vld [vmem:[#allocation22 + $0x270] sm:$0xff]
    %v1929 = vld [vmem:[#allocation22 + $0x278] sm:$0xff]
    %v1930 = vld [vmem:[#allocation22 + $0x280] sm:$0xff]
    %v1931 = vld [vmem:[#allocation22 + $0x288] sm:$0xff]
    %v1932 = vld [vmem:[#allocation22 + $0x290] sm:$0xff]
    %v1933 = vld [vmem:[#allocation22 + $0x298] sm:$0xff]
    %v1934 = vld [vmem:[#allocation22 + $0x2a0] sm:$0xff]
    %v1935 = vld [vmem:[#allocation22 + $0x2a8] sm:$0xff]
    %v1936 = vld [vmem:[#allocation22 + $0x2b0] sm:$0xff]
    %v1937 = vld [vmem:[#allocation22 + $0x2b8] sm:$0xff]
    %v1938 = vld [vmem:[#allocation22 + $0x2c0] sm:$0xff]
    %v1939 = vld [vmem:[#allocation22 + $0x2c8] sm:$0xff]
    %v1940 = vld [vmem:[#allocation22 + $0x2d0] sm:$0xff]
    %v1941 = vld [vmem:[#allocation22 + $0x2d8] sm:$0xff]
    %v1942 = vld [vmem:[#allocation22 + $0x2e0] sm:$0xff]
    %v1943 = vld [vmem:[#allocation22 + $0x2e8] sm:$0xff]
    %v1944 = vld [vmem:[#allocation22 + $0x2f0] sm:$0xff]
    %v1945 = vld [vmem:[#allocation22 + $0x2f8] sm:$0xff]
    %v1946 = vld [vmem:[#allocation22 + $0x300] sm:$0xff]
    %v1947 = vld [vmem:[#allocation22 + $0x308] sm:$0xff]
    %v1948 = vld [vmem:[#allocation22 + $0x310] sm:$0xff]
    %v1949 = vld [vmem:[#allocation22 + $0x318] sm:$0xff]
    %v1950 = vld [vmem:[#allocation22 + $0x320] sm:$0xff]
    %v1951 = vld [vmem:[#allocation22 + $0x328] sm:$0xff]
    %v1952 = vld [vmem:[#allocation22 + $0x330] sm:$0xff]
    %v1953 = vld [vmem:[#allocation22 + $0x338] sm:$0xff]
    %v1954 = vld [vmem:[#allocation22 + $0x340] sm:$0xff]
    %v1955 = vld [vmem:[#allocation22 + $0x348] sm:$0xff]
    %v1956 = vld [vmem:[#allocation22 + $0x350] sm:$0xff]
    %v1957 = vld [vmem:[#allocation22 + $0x358] sm:$0xff]
    %v1958 = vld [vmem:[#allocation22 + $0x360] sm:$0xff]
    %v1959 = vld [vmem:[#allocation22 + $0x368] sm:$0xff]
    %v1960 = vld [vmem:[#allocation22 + $0x370] sm:$0xff]
    %v1961 = vld [vmem:[#allocation22 + $0x378] sm:$0xff]
    %v1962 = vld [vmem:[#allocation22 + $0x380] sm:$0xff]
    %v1963 = vld [vmem:[#allocation22 + $0x388] sm:$0xff]
    %v1964 = vld [vmem:[#allocation22 + $0x390] sm:$0xff]
    %v1965 = vld [vmem:[#allocation22 + $0x398] sm:$0xff]
    %v1966 = vld [vmem:[#allocation22 + $0x3a0] sm:$0xff]
    %v1967 = vld [vmem:[#allocation22 + $0x3a8] sm:$0xff]
    %v1968 = vld [vmem:[#allocation22 + $0x3b0] sm:$0xff]
    %v1969 = vld [vmem:[#allocation22 + $0x3b8] sm:$0xff]
    %v1970 = vld [vmem:[#allocation22 + $0x3c0] sm:$0xff]
    %v1971 = vld [vmem:[#allocation22 + $0x3c8] sm:$0xff]
    %v1972 = vld [vmem:[#allocation22 + $0x3d0] sm:$0xff]
    %v1973 = vld [vmem:[#allocation22 + $0x3d8] sm:$0xff]
    %v1974 = vld [vmem:[#allocation22 + $0x3e0] sm:$0xff]
    %v1975 = vld [vmem:[#allocation22 + $0x3e8] sm:$0xff]
    %v1976 = vld [vmem:[#allocation22 + $0x3f0] sm:$0xff]
    %v1977 = vld [vmem:[#allocation22 + $0x3f8] sm:$0xff]
    %v1978 = vld [vmem:[#allocation22 + $0x400] sm:$0xff]
    %v1979 = vld [vmem:[#allocation22 + $0x408] sm:$0xff]
    %v1980 = vld [vmem:[#allocation22 + $0x410] sm:$0xff]
    %v1981 = vld [vmem:[#allocation22 + $0x418] sm:$0xff]
    %v1982 = vld [vmem:[#allocation22 + $0x420] sm:$0xff]
    %v1983 = vld [vmem:[#allocation22 + $0x428] sm:$0xff]
    %v1984 = vld [vmem:[#allocation22 + $0x430] sm:$0xff]
    %v1985 = vld [vmem:[#allocation22 + $0x438] sm:$0xff]
    %v1986 = vld [vmem:[#allocation22 + $0x440] sm:$0xff]
    %v1987 = vld [vmem:[#allocation22 + $0x448] sm:$0xff]
    %v1988 = vld [vmem:[#allocation22 + $0x450] sm:$0xff]
    %v1989 = vld [vmem:[#allocation22 + $0x458] sm:$0xff]
    %v1990 = vld [vmem:[#allocation22 + $0x460] sm:$0xff]
    %v1991 = vld [vmem:[#allocation22 + $0x468] sm:$0xff]
    %v1992 = vld [vmem:[#allocation22 + $0x470] sm:$0xff]
    %v1993 = vld [vmem:[#allocation22 + $0x478] sm:$0xff]
    %v1994 = vld [vmem:[#allocation22 + $0x480] sm:$0xff]
    %v1995 = vld [vmem:[#allocation22 + $0x488] sm:$0xff]
    %v1996 = vld [vmem:[#allocation22 + $0x490] sm:$0xff]
    %v1997 = vld [vmem:[#allocation22 + $0x498] sm:$0xff]
    %v1998 = vld [vmem:[#allocation22 + $0x4a0] sm:$0xff]
    %v1999 = vld [vmem:[#allocation22 + $0x4a8] sm:$0xff]
    %v2000 = vld [vmem:[#allocation22 + $0x4b0] sm:$0xff]
    %v2001 = vld [vmem:[#allocation22 + $0x4b8] sm:$0xff]
    %v2002 = vld [vmem:[#allocation22 + $0x4c0] sm:$0xff]
    %v2003 = vld [vmem:[#allocation22 + $0x4c8] sm:$0xff]
    %v2004 = vld [vmem:[#allocation22 + $0x4d0] sm:$0xff]
    %v2005 = vld [vmem:[#allocation22 + $0x4d8] sm:$0xff]
    %v2006 = vld [vmem:[#allocation22 + $0x4e0] sm:$0xff]
    %v2007 = vld [vmem:[#allocation22 + $0x4e8] sm:$0xff]
    %v2008 = vld [vmem:[#allocation22 + $0x4f0] sm:$0xff]
    %v2009 = vld [vmem:[#allocation22 + $0x4f8] sm:$0xff]
    %v2010 = vld [vmem:[#allocation22 + $0x500] sm:$0xff]
    %v2011 = vld [vmem:[#allocation22 + $0x508] sm:$0xff]
    %v2012 = vld [vmem:[#allocation22 + $0x510] sm:$0xff]
    %v2013 = vld [vmem:[#allocation22 + $0x518] sm:$0xff]
    %v2014 = vld [vmem:[#allocation22 + $0x520] sm:$0xff]
    %v2015 = vld [vmem:[#allocation22 + $0x528] sm:$0xff]
    %v2016 = vld [vmem:[#allocation22 + $0x530] sm:$0xff]
    %v2017 = vld [vmem:[#allocation22 + $0x538] sm:$0xff]
    %v2018 = vld [vmem:[#allocation22 + $0x540] sm:$0xff]
    %v2019 = vld [vmem:[#allocation22 + $0x548] sm:$0xff]
    %v2020 = vld [vmem:[#allocation22 + $0x550] sm:$0xff]
    %v2021 = vld [vmem:[#allocation22 + $0x558] sm:$0xff]
    %v2022 = vld [vmem:[#allocation22 + $0x560] sm:$0xff]
    %v2023 = vld [vmem:[#allocation22 + $0x568] sm:$0xff]
    %v2024 = vld [vmem:[#allocation22 + $0x570] sm:$0xff]
    %v2025 = vld [vmem:[#allocation22 + $0x578] sm:$0xff]
    %v2026 = vld [vmem:[#allocation22 + $0x580] sm:$0xff]
    %v2027 = vld [vmem:[#allocation22 + $0x588] sm:$0xff]
    %v2028 = vld [vmem:[#allocation22 + $0x590] sm:$0xff]
    %v2029 = vld [vmem:[#allocation22 + $0x598] sm:$0xff]
    %v2030 = vld [vmem:[#allocation22 + $0x5a0] sm:$0xff]
    %v2031 = vld [vmem:[#allocation22 + $0x5a8] sm:$0xff]
    %v2032 = vld [vmem:[#allocation22 + $0x5b0] sm:$0xff]
    %v2033 = vld [vmem:[#allocation22 + $0x5b8] sm:$0xff]
    %v2034 = vld [vmem:[#allocation22 + $0x5c0] sm:$0xff]
    %v2035 = vld [vmem:[#allocation22 + $0x5c8] sm:$0xff]
    %v2036 = vld [vmem:[#allocation22 + $0x5d0] sm:$0xff]
    %v2037 = vld [vmem:[#allocation22 + $0x5d8] sm:$0xff]
    %v2038 = vld [vmem:[#allocation22 + $0x5e0] sm:$0xff]
    %v2039 = vld [vmem:[#allocation22 + $0x5e8] sm:$0xff]
    %v2040 = vld [vmem:[#allocation22 + $0x5f0] sm:$0xff]
    %v2041 = vld [vmem:[#allocation22 + $0x5f8] sm:$0xff]
    %v2042 = vld [vmem:[#allocation22 + $0x600] sm:$0xff]
    %v2043 = vld [vmem:[#allocation22 + $0x608] sm:$0xff]
    %v2044 = vld [vmem:[#allocation22 + $0x610] sm:$0xff]
    %v2045 = vld [vmem:[#allocation22 + $0x618] sm:$0xff]
    %v2046 = vld [vmem:[#allocation22 + $0x620] sm:$0xff]
    %v2047 = vld [vmem:[#allocation22 + $0x628] sm:$0xff]
    %v2048 = vld [vmem:[#allocation22 + $0x630] sm:$0xff]
    %v2049 = vld [vmem:[#allocation22 + $0x638] sm:$0xff]
    %v2050 = vld [vmem:[#allocation22 + $0x640] sm:$0xff]
    %v2051 = vld [vmem:[#allocation22 + $0x648] sm:$0xff]
    %v2052 = vld [vmem:[#allocation22 + $0x650] sm:$0xff]
    %v2053 = vld [vmem:[#allocation22 + $0x658] sm:$0xff]
    %v2054 = vld [vmem:[#allocation22 + $0x660] sm:$0xff]
    %v2055 = vld [vmem:[#allocation22 + $0x668] sm:$0xff]
    %v2056 = vld [vmem:[#allocation22 + $0x670] sm:$0xff]
    %v2057 = vld [vmem:[#allocation22 + $0x678] sm:$0xff]
    %v2058 = vld [vmem:[#allocation22 + $0x680] sm:$0xff]
    %v2059 = vld [vmem:[#allocation22 + $0x688] sm:$0xff]
    %v2060 = vld [vmem:[#allocation22 + $0x690] sm:$0xff]
    %v2061 = vld [vmem:[#allocation22 + $0x698] sm:$0xff]
    %v2062 = vld [vmem:[#allocation22 + $0x6a0] sm:$0xff]
    %v2063 = vld [vmem:[#allocation22 + $0x6a8] sm:$0xff]
    %v2064 = vld [vmem:[#allocation22 + $0x6b0] sm:$0xff]
    %v2065 = vld [vmem:[#allocation22 + $0x6b8] sm:$0xff]
    %v2066 = vld [vmem:[#allocation22 + $0x6c0] sm:$0xff]
    %v2067 = vld [vmem:[#allocation22 + $0x6c8] sm:$0xff]
    %v2068 = vld [vmem:[#allocation22 + $0x6d0] sm:$0xff]
    %v2069 = vld [vmem:[#allocation22 + $0x6d8] sm:$0xff]
    %v2070 = vld [vmem:[#allocation22 + $0x6e0] sm:$0xff]
    %v2071 = vld [vmem:[#allocation22 + $0x6e8] sm:$0xff]
    %v2072 = vld [vmem:[#allocation22 + $0x6f0] sm:$0xff]
    %v2073 = vld [vmem:[#allocation22 + $0x6f8] sm:$0xff]
    %v2074 = vld [vmem:[#allocation22 + $0x700] sm:$0xff]
    %v2075 = vld [vmem:[#allocation22 + $0x708] sm:$0xff]
    %v2076 = vld [vmem:[#allocation22 + $0x710] sm:$0xff]
    %v2077 = vld [vmem:[#allocation22 + $0x718] sm:$0xff]
    %v2078 = vld [vmem:[#allocation22 + $0x720] sm:$0xff]
    %v2079 = vld [vmem:[#allocation22 + $0x728] sm:$0xff]
    %v2080 = vld [vmem:[#allocation22 + $0x730] sm:$0xff]
    %v2081 = vld [vmem:[#allocation22 + $0x738] sm:$0xff]
    %v2082 = vld [vmem:[#allocation22 + $0x740] sm:$0xff]
    %v2083 = vld [vmem:[#allocation22 + $0x748] sm:$0xff]
    %v2084 = vld [vmem:[#allocation22 + $0x750] sm:$0xff]
    %v2085 = vld [vmem:[#allocation22 + $0x758] sm:$0xff]
    %v2086 = vld [vmem:[#allocation22 + $0x760] sm:$0xff]
    %v2087 = vld [vmem:[#allocation22 + $0x768] sm:$0xff]
    %v2088 = vld [vmem:[#allocation22 + $0x770] sm:$0xff]
    %v2089 = vld [vmem:[#allocation22 + $0x778] sm:$0xff]
    %v2090 = vld [vmem:[#allocation22 + $0x780] sm:$0xff]
    %v2091 = vld [vmem:[#allocation22 + $0x788] sm:$0xff]
    %v2092 = vld [vmem:[#allocation22 + $0x790] sm:$0xff]
    %v2093 = vld [vmem:[#allocation22 + $0x798] sm:$0xff]
    %v2094 = vld [vmem:[#allocation22 + $0x7a0] sm:$0xff]
    %v2095 = vld [vmem:[#allocation22 + $0x7a8] sm:$0xff]
    %v2096 = vld [vmem:[#allocation22 + $0x7b0] sm:$0xff]
    %v2097 = vld [vmem:[#allocation22 + $0x7b8] sm:$0xff]
    %v2098 = vld [vmem:[#allocation22 + $0x7c0] sm:$0xff]
    %v2099 = vld [vmem:[#allocation22 + $0x7c8] sm:$0xff]
    %v2100 = vld [vmem:[#allocation22 + $0x7d0] sm:$0xff]
    %v2101 = vld [vmem:[#allocation22 + $0x7d8] sm:$0xff]
    %v2102 = vld [vmem:[#allocation22 + $0x7e0] sm:$0xff]
    %v2103 = vld [vmem:[#allocation22 + $0x7e8] sm:$0xff]
    %v2104 = vld [vmem:[#allocation22 + $0x7f0] sm:$0xff]
    %v2105 = vld [vmem:[#allocation22 + $0x7f8] sm:$0xff]
    %v2362 = vunpack.c.l.b16 %v1850
    %v2363 = vunpack.c.h.b16 %v1850
    %v2364 = vunpack.c.l.b16 %v1851
    %v2365 = vunpack.c.h.b16 %v1851
    %v2366 = vunpack.c.l.b16 %v1852
    %v2367 = vunpack.c.h.b16 %v1852
    %v2368 = vunpack.c.l.b16 %v1853
    %v2369 = vunpack.c.h.b16 %v1853
    %v2370 = vunpack.c.l.b16 %v1854
    %v2371 = vunpack.c.h.b16 %v1854
    %v2372 = vunpack.c.l.b16 %v1855
    %v2373 = vunpack.c.h.b16 %v1855
    %v2374 = vunpack.c.l.b16 %v1856
    %v2375 = vunpack.c.h.b16 %v1856
    %v2376 = vunpack.c.l.b16 %v1857
    %v2377 = vunpack.c.h.b16 %v1857
    %v2378 = vunpack.c.l.b16 %v1858
    %v2379 = vunpack.c.h.b16 %v1858
    %v2380 = vunpack.c.l.b16 %v1859
    %v2381 = vunpack.c.h.b16 %v1859
    %v2382 = vunpack.c.l.b16 %v1860
    %v2383 = vunpack.c.h.b16 %v1860
    %v2384 = vunpack.c.l.b16 %v1861
    %v2385 = vunpack.c.h.b16 %v1861
    %v2386 = vunpack.c.l.b16 %v1862
    %v2387 = vunpack.c.h.b16 %v1862
    %v2388 = vunpack.c.l.b16 %v1863
    %v2389 = vunpack.c.h.b16 %v1863
    %v2390 = vunpack.c.l.b16 %v1864
    %v2391 = vunpack.c.h.b16 %v1864
    %v2392 = vunpack.c.l.b16 %v1865
    %v2393 = vunpack.c.h.b16 %v1865
    %v2394 = vunpack.c.l.b16 %v1866
    %v2395 = vunpack.c.h.b16 %v1866
    %v2396 = vunpack.c.l.b16 %v1867
    %v2397 = vunpack.c.h.b16 %v1867
    %v2398 = vunpack.c.l.b16 %v1868
    %v2399 = vunpack.c.h.b16 %v1868
    %v2400 = vunpack.c.l.b16 %v1869
    %v2401 = vunpack.c.h.b16 %v1869
    %v2402 = vunpack.c.l.b16 %v1870
    %v2403 = vunpack.c.h.b16 %v1870
    %v2404 = vunpack.c.l.b16 %v1871
    %v2405 = vunpack.c.h.b16 %v1871
    %v2406 = vunpack.c.l.b16 %v1872
    %v2407 = vunpack.c.h.b16 %v1872
    %v2408 = vunpack.c.l.b16 %v1873
    %v2409 = vunpack.c.h.b16 %v1873
    %v2410 = vunpack.c.l.b16 %v1874
    %v2411 = vunpack.c.h.b16 %v1874
    %v2412 = vunpack.c.l.b16 %v1875
    %v2413 = vunpack.c.h.b16 %v1875
    %v2414 = vunpack.c.l.b16 %v1876
    %v2415 = vunpack.c.h.b16 %v1876
    %v2416 = vunpack.c.l.b16 %v1877
    %v2417 = vunpack.c.h.b16 %v1877
    %v2418 = vunpack.c.l.b16 %v1878
    %v2419 = vunpack.c.h.b16 %v1878
    %v2420 = vunpack.c.l.b16 %v1879
    %v2421 = vunpack.c.h.b16 %v1879
    %v2422 = vunpack.c.l.b16 %v1880
    %v2423 = vunpack.c.h.b16 %v1880
    %v2424 = vunpack.c.l.b16 %v1881
    %v2425 = vunpack.c.h.b16 %v1881
    %v2426 = vunpack.c.l.b16 %v1882
    %v2427 = vunpack.c.h.b16 %v1882
    %v2428 = vunpack.c.l.b16 %v1883
    %v2429 = vunpack.c.h.b16 %v1883
    %v2430 = vunpack.c.l.b16 %v1884
    %v2431 = vunpack.c.h.b16 %v1884
    %v2432 = vunpack.c.l.b16 %v1885
    %v2433 = vunpack.c.h.b16 %v1885
    %v2434 = vunpack.c.l.b16 %v1886
    %v2435 = vunpack.c.h.b16 %v1886
    %v2436 = vunpack.c.l.b16 %v1887
    %v2437 = vunpack.c.h.b16 %v1887
    %v2438 = vunpack.c.l.b16 %v1888
    %v2439 = vunpack.c.h.b16 %v1888
    %v2440 = vunpack.c.l.b16 %v1889
    %v2441 = vunpack.c.h.b16 %v1889
    %v2442 = vunpack.c.l.b16 %v1890
    %v2443 = vunpack.c.h.b16 %v1890
    %v2444 = vunpack.c.l.b16 %v1891
    %v2445 = vunpack.c.h.b16 %v1891
    %v2446 = vunpack.c.l.b16 %v1892
    %v2447 = vunpack.c.h.b16 %v1892
    %v2448 = vunpack.c.l.b16 %v1893
    %v2449 = vunpack.c.h.b16 %v1893
    %v2450 = vunpack.c.l.b16 %v1894
    %v2451 = vunpack.c.h.b16 %v1894
    %v2452 = vunpack.c.l.b16 %v1895
    %v2453 = vunpack.c.h.b16 %v1895
    %v2454 = vunpack.c.l.b16 %v1896
    %v2455 = vunpack.c.h.b16 %v1896
    %v2456 = vunpack.c.l.b16 %v1897
    %v2457 = vunpack.c.h.b16 %v1897
    %v2458 = vunpack.c.l.b16 %v1898
    %v2459 = vunpack.c.h.b16 %v1898
    %v2460 = vunpack.c.l.b16 %v1899
    %v2461 = vunpack.c.h.b16 %v1899
    %v2462 = vunpack.c.l.b16 %v1900
    %v2463 = vunpack.c.h.b16 %v1900
    %v2464 = vunpack.c.l.b16 %v1901
    %v2465 = vunpack.c.h.b16 %v1901
    %v2466 = vunpack.c.l.b16 %v1902
    %v2467 = vunpack.c.h.b16 %v1902
    %v2468 = vunpack.c.l.b16 %v1903
    %v2469 = vunpack.c.h.b16 %v1903
    %v2470 = vunpack.c.l.b16 %v1904
    %v2471 = vunpack.c.h.b16 %v1904
    %v2472 = vunpack.c.l.b16 %v1905
    %v2473 = vunpack.c.h.b16 %v1905
    %v2474 = vunpack.c.l.b16 %v1906
    %v2475 = vunpack.c.h.b16 %v1906
    %v2476 = vunpack.c.l.b16 %v1907
    %v2477 = vunpack.c.h.b16 %v1907
    %v2478 = vunpack.c.l.b16 %v1908
    %v2479 = vunpack.c.h.b16 %v1908
    %v2480 = vunpack.c.l.b16 %v1909
    %v2481 = vunpack.c.h.b16 %v1909
    %v2482 = vunpack.c.l.b16 %v1910
    %v2483 = vunpack.c.h.b16 %v1910
    %v2484 = vunpack.c.l.b16 %v1911
    %v2485 = vunpack.c.h.b16 %v1911
    %v2486 = vunpack.c.l.b16 %v1912
    %v2487 = vunpack.c.h.b16 %v1912
    %v2488 = vunpack.c.l.b16 %v1913
    %v2489 = vunpack.c.h.b16 %v1913
    %v2490 = vunpack.c.l.b16 %v1914
    %v2491 = vunpack.c.h.b16 %v1914
    %v2492 = vunpack.c.l.b16 %v1915
    %v2493 = vunpack.c.h.b16 %v1915
    %v2494 = vunpack.c.l.b16 %v1916
    %v2495 = vunpack.c.h.b16 %v1916
    %v2496 = vunpack.c.l.b16 %v1917
    %v2497 = vunpack.c.h.b16 %v1917
    %v2498 = vunpack.c.l.b16 %v1918
    %v2499 = vunpack.c.h.b16 %v1918
    %v2500 = vunpack.c.l.b16 %v1919
    %v2501 = vunpack.c.h.b16 %v1919
    %v2502 = vunpack.c.l.b16 %v1920
    %v2503 = vunpack.c.h.b16 %v1920
    %v2504 = vunpack.c.l.b16 %v1921
    %v2505 = vunpack.c.h.b16 %v1921
    %v2506 = vunpack.c.l.b16 %v1922
    %v2507 = vunpack.c.h.b16 %v1922
    %v2508 = vunpack.c.l.b16 %v1923
    %v2509 = vunpack.c.h.b16 %v1923
    %v2510 = vunpack.c.l.b16 %v1924
    %v2511 = vunpack.c.h.b16 %v1924
    %v2512 = vunpack.c.l.b16 %v1925
    %v2513 = vunpack.c.h.b16 %v1925
    %v2514 = vunpack.c.l.b16 %v1926
    %v2515 = vunpack.c.h.b16 %v1926
    %v2516 = vunpack.c.l.b16 %v1927
    %v2517 = vunpack.c.h.b16 %v1927
    %v2518 = vunpack.c.l.b16 %v1928
    %v2519 = vunpack.c.h.b16 %v1928
    %v2520 = vunpack.c.l.b16 %v1929
    %v2521 = vunpack.c.h.b16 %v1929
    %v2522 = vunpack.c.l.b16 %v1930
    %v2523 = vunpack.c.h.b16 %v1930
    %v2524 = vunpack.c.l.b16 %v1931
    %v2525 = vunpack.c.h.b16 %v1931
    %v2526 = vunpack.c.l.b16 %v1932
    %v2527 = vunpack.c.h.b16 %v1932
    %v2528 = vunpack.c.l.b16 %v1933
    %v2529 = vunpack.c.h.b16 %v1933
    %v2530 = vunpack.c.l.b16 %v1934
    %v2531 = vunpack.c.h.b16 %v1934
    %v2532 = vunpack.c.l.b16 %v1935
    %v2533 = vunpack.c.h.b16 %v1935
    %v2534 = vunpack.c.l.b16 %v1936
    %v2535 = vunpack.c.h.b16 %v1936
    %v2536 = vunpack.c.l.b16 %v1937
    %v2537 = vunpack.c.h.b16 %v1937
    %v2538 = vunpack.c.l.b16 %v1938
    %v2539 = vunpack.c.h.b16 %v1938
    %v2540 = vunpack.c.l.b16 %v1939
    %v2541 = vunpack.c.h.b16 %v1939
    %v2542 = vunpack.c.l.b16 %v1940
    %v2543 = vunpack.c.h.b16 %v1940
    %v2544 = vunpack.c.l.b16 %v1941
    %v2545 = vunpack.c.h.b16 %v1941
    %v2546 = vunpack.c.l.b16 %v1942
    %v2547 = vunpack.c.h.b16 %v1942
    %v2548 = vunpack.c.l.b16 %v1943
    %v2549 = vunpack.c.h.b16 %v1943
    %v2550 = vunpack.c.l.b16 %v1944
    %v2551 = vunpack.c.h.b16 %v1944
    %v2552 = vunpack.c.l.b16 %v1945
    %v2553 = vunpack.c.h.b16 %v1945
    %v2554 = vunpack.c.l.b16 %v1946
    %v2555 = vunpack.c.h.b16 %v1946
    %v2556 = vunpack.c.l.b16 %v1947
    %v2557 = vunpack.c.h.b16 %v1947
    %v2558 = vunpack.c.l.b16 %v1948
    %v2559 = vunpack.c.h.b16 %v1948
    %v2560 = vunpack.c.l.b16 %v1949
    %v2561 = vunpack.c.h.b16 %v1949
    %v2562 = vunpack.c.l.b16 %v1950
    %v2563 = vunpack.c.h.b16 %v1950
    %v2564 = vunpack.c.l.b16 %v1951
    %v2565 = vunpack.c.h.b16 %v1951
    %v2566 = vunpack.c.l.b16 %v1952
    %v2567 = vunpack.c.h.b16 %v1952
    %v2568 = vunpack.c.l.b16 %v1953
    %v2569 = vunpack.c.h.b16 %v1953
    %v2570 = vunpack.c.l.b16 %v1954
    %v2571 = vunpack.c.h.b16 %v1954
    %v2572 = vunpack.c.l.b16 %v1955
    %v2573 = vunpack.c.h.b16 %v1955
    %v2574 = vunpack.c.l.b16 %v1956
    %v2575 = vunpack.c.h.b16 %v1956
    %v2576 = vunpack.c.l.b16 %v1957
    %v2577 = vunpack.c.h.b16 %v1957
    %v2578 = vunpack.c.l.b16 %v1958
    %v2579 = vunpack.c.h.b16 %v1958
    %v2580 = vunpack.c.l.b16 %v1959
    %v2581 = vunpack.c.h.b16 %v1959
    %v2582 = vunpack.c.l.b16 %v1960
    %v2583 = vunpack.c.h.b16 %v1960
    %v2584 = vunpack.c.l.b16 %v1961
    %v2585 = vunpack.c.h.b16 %v1961
    %v2586 = vunpack.c.l.b16 %v1962
    %v2587 = vunpack.c.h.b16 %v1962
    %v2588 = vunpack.c.l.b16 %v1963
    %v2589 = vunpack.c.h.b16 %v1963
    %v2590 = vunpack.c.l.b16 %v1964
    %v2591 = vunpack.c.h.b16 %v1964
    %v2592 = vunpack.c.l.b16 %v1965
    %v2593 = vunpack.c.h.b16 %v1965
    %v2594 = vunpack.c.l.b16 %v1966
    %v2595 = vunpack.c.h.b16 %v1966
    %v2596 = vunpack.c.l.b16 %v1967
    %v2597 = vunpack.c.h.b16 %v1967
    %v2598 = vunpack.c.l.b16 %v1968
    %v2599 = vunpack.c.h.b16 %v1968
    %v2600 = vunpack.c.l.b16 %v1969
    %v2601 = vunpack.c.h.b16 %v1969
    %v2602 = vunpack.c.l.b16 %v1970
    %v2603 = vunpack.c.h.b16 %v1970
    %v2604 = vunpack.c.l.b16 %v1971
    %v2605 = vunpack.c.h.b16 %v1971
    %v2606 = vunpack.c.l.b16 %v1972
    %v2607 = vunpack.c.h.b16 %v1972
    %v2608 = vunpack.c.l.b16 %v1973
    %v2609 = vunpack.c.h.b16 %v1973
    %v2610 = vunpack.c.l.b16 %v1974
    %v2611 = vunpack.c.h.b16 %v1974
    %v2612 = vunpack.c.l.b16 %v1975
    %v2613 = vunpack.c.h.b16 %v1975
    %v2614 = vunpack.c.l.b16 %v1976
    %v2615 = vunpack.c.h.b16 %v1976
    %v2616 = vunpack.c.l.b16 %v1977
    %v2617 = vunpack.c.h.b16 %v1977
    %v2618 = vunpack.c.l.b16 %v1978
    %v2619 = vunpack.c.h.b16 %v1978
    %v2620 = vunpack.c.l.b16 %v1979
    %v2621 = vunpack.c.h.b16 %v1979
    %v2622 = vunpack.c.l.b16 %v1980
    %v2623 = vunpack.c.h.b16 %v1980
    %v2624 = vunpack.c.l.b16 %v1981
    %v2625 = vunpack.c.h.b16 %v1981
    %v2626 = vunpack.c.l.b16 %v1982
    %v2627 = vunpack.c.h.b16 %v1982
    %v2628 = vunpack.c.l.b16 %v1983
    %v2629 = vunpack.c.h.b16 %v1983
    %v2630 = vunpack.c.l.b16 %v1984
    %v2631 = vunpack.c.h.b16 %v1984
    %v2632 = vunpack.c.l.b16 %v1985
    %v2633 = vunpack.c.h.b16 %v1985
    %v2634 = vunpack.c.l.b16 %v1986
    %v2635 = vunpack.c.h.b16 %v1986
    %v2636 = vunpack.c.l.b16 %v1987
    %v2637 = vunpack.c.h.b16 %v1987
    %v2638 = vunpack.c.l.b16 %v1988
    %v2639 = vunpack.c.h.b16 %v1988
    %v2640 = vunpack.c.l.b16 %v1989
    %v2641 = vunpack.c.h.b16 %v1989
    %v2642 = vunpack.c.l.b16 %v1990
    %v2643 = vunpack.c.h.b16 %v1990
    %v2644 = vunpack.c.l.b16 %v1991
    %v2645 = vunpack.c.h.b16 %v1991
    %v2646 = vunpack.c.l.b16 %v1992
    %v2647 = vunpack.c.h.b16 %v1992
    %v2648 = vunpack.c.l.b16 %v1993
    %v2649 = vunpack.c.h.b16 %v1993
    %v2650 = vunpack.c.l.b16 %v1994
    %v2651 = vunpack.c.h.b16 %v1994
    %v2652 = vunpack.c.l.b16 %v1995
    %v2653 = vunpack.c.h.b16 %v1995
    %v2654 = vunpack.c.l.b16 %v1996
    %v2655 = vunpack.c.h.b16 %v1996
    %v2656 = vunpack.c.l.b16 %v1997
    %v2657 = vunpack.c.h.b16 %v1997
    %v2658 = vunpack.c.l.b16 %v1998
    %v2659 = vunpack.c.h.b16 %v1998
    %v2660 = vunpack.c.l.b16 %v1999
    %v2661 = vunpack.c.h.b16 %v1999
    %v2662 = vunpack.c.l.b16 %v2000
    %v2663 = vunpack.c.h.b16 %v2000
    %v2664 = vunpack.c.l.b16 %v2001
    %v2665 = vunpack.c.h.b16 %v2001
    %v2666 = vunpack.c.l.b16 %v2002
    %v2667 = vunpack.c.h.b16 %v2002
    %v2668 = vunpack.c.l.b16 %v2003
    %v2669 = vunpack.c.h.b16 %v2003
    %v2670 = vunpack.c.l.b16 %v2004
    %v2671 = vunpack.c.h.b16 %v2004
    %v2672 = vunpack.c.l.b16 %v2005
    %v2673 = vunpack.c.h.b16 %v2005
    %v2674 = vunpack.c.l.b16 %v2006
    %v2675 = vunpack.c.h.b16 %v2006
    %v2676 = vunpack.c.l.b16 %v2007
    %v2677 = vunpack.c.h.b16 %v2007
    %v2678 = vunpack.c.l.b16 %v2008
    %v2679 = vunpack.c.h.b16 %v2008
    %v2680 = vunpack.c.l.b16 %v2009
    %v2681 = vunpack.c.h.b16 %v2009
    %v2682 = vunpack.c.l.b16 %v2010
    %v2683 = vunpack.c.h.b16 %v2010
    %v2684 = vunpack.c.l.b16 %v2011
    %v2685 = vunpack.c.h.b16 %v2011
    %v2686 = vunpack.c.l.b16 %v2012
    %v2687 = vunpack.c.h.b16 %v2012
    %v2688 = vunpack.c.l.b16 %v2013
    %v2689 = vunpack.c.h.b16 %v2013
    %v2690 = vunpack.c.l.b16 %v2014
    %v2691 = vunpack.c.h.b16 %v2014
    %v2692 = vunpack.c.l.b16 %v2015
    %v2693 = vunpack.c.h.b16 %v2015
    %v2694 = vunpack.c.l.b16 %v2016
    %v2695 = vunpack.c.h.b16 %v2016
    %v2696 = vunpack.c.l.b16 %v2017
    %v2697 = vunpack.c.h.b16 %v2017
    %v2698 = vunpack.c.l.b16 %v2018
    %v2699 = vunpack.c.h.b16 %v2018
    %v2700 = vunpack.c.l.b16 %v2019
    %v2701 = vunpack.c.h.b16 %v2019
    %v2702 = vunpack.c.l.b16 %v2020
    %v2703 = vunpack.c.h.b16 %v2020
    %v2704 = vunpack.c.l.b16 %v2021
    %v2705 = vunpack.c.h.b16 %v2021
    %v2706 = vunpack.c.l.b16 %v2022
    %v2707 = vunpack.c.h.b16 %v2022
    %v2708 = vunpack.c.l.b16 %v2023
    %v2709 = vunpack.c.h.b16 %v2023
    %v2710 = vunpack.c.l.b16 %v2024
    %v2711 = vunpack.c.h.b16 %v2024
    %v2712 = vunpack.c.l.b16 %v2025
    %v2713 = vunpack.c.h.b16 %v2025
    %v2714 = vunpack.c.l.b16 %v2026
    %v2715 = vunpack.c.h.b16 %v2026
    %v2716 = vunpack.c.l.b16 %v2027
    %v2717 = vunpack.c.h.b16 %v2027
    %v2718 = vunpack.c.l.b16 %v2028
    %v2719 = vunpack.c.h.b16 %v2028
    %v2720 = vunpack.c.l.b16 %v2029
    %v2721 = vunpack.c.h.b16 %v2029
    %v2722 = vunpack.c.l.b16 %v2030
    %v2723 = vunpack.c.h.b16 %v2030
    %v2724 = vunpack.c.l.b16 %v2031
    %v2725 = vunpack.c.h.b16 %v2031
    %v2726 = vunpack.c.l.b16 %v2032
    %v2727 = vunpack.c.h.b16 %v2032
    %v2728 = vunpack.c.l.b16 %v2033
    %v2729 = vunpack.c.h.b16 %v2033
    %v2730 = vunpack.c.l.b16 %v2034
    %v2731 = vunpack.c.h.b16 %v2034
    %v2732 = vunpack.c.l.b16 %v2035
    %v2733 = vunpack.c.h.b16 %v2035
    %v2734 = vunpack.c.l.b16 %v2036
    %v2735 = vunpack.c.h.b16 %v2036
    %v2736 = vunpack.c.l.b16 %v2037
    %v2737 = vunpack.c.h.b16 %v2037
    %v2738 = vunpack.c.l.b16 %v2038
    %v2739 = vunpack.c.h.b16 %v2038
    %v2740 = vunpack.c.l.b16 %v2039
    %v2741 = vunpack.c.h.b16 %v2039
    %v2742 = vunpack.c.l.b16 %v2040
    %v2743 = vunpack.c.h.b16 %v2040
    %v2744 = vunpack.c.l.b16 %v2041
    %v2745 = vunpack.c.h.b16 %v2041
    %v2746 = vunpack.c.l.b16 %v2042
    %v2747 = vunpack.c.h.b16 %v2042
    %v2748 = vunpack.c.l.b16 %v2043
    %v2749 = vunpack.c.h.b16 %v2043
    %v2750 = vunpack.c.l.b16 %v2044
    %v2751 = vunpack.c.h.b16 %v2044
    %v2752 = vunpack.c.l.b16 %v2045
    %v2753 = vunpack.c.h.b16 %v2045
    %v2754 = vunpack.c.l.b16 %v2046
    %v2755 = vunpack.c.h.b16 %v2046
    %v2756 = vunpack.c.l.b16 %v2047
    %v2757 = vunpack.c.h.b16 %v2047
    %v2758 = vunpack.c.l.b16 %v2048
    %v2759 = vunpack.c.h.b16 %v2048
    %v2760 = vunpack.c.l.b16 %v2049
    %v2761 = vunpack.c.h.b16 %v2049
    %v2762 = vunpack.c.l.b16 %v2050
    %v2763 = vunpack.c.h.b16 %v2050
    %v2764 = vunpack.c.l.b16 %v2051
    %v2765 = vunpack.c.h.b16 %v2051
    %v2766 = vunpack.c.l.b16 %v2052
    %v2767 = vunpack.c.h.b16 %v2052
    %v2768 = vunpack.c.l.b16 %v2053
    %v2769 = vunpack.c.h.b16 %v2053
    %v2770 = vunpack.c.l.b16 %v2054
    %v2771 = vunpack.c.h.b16 %v2054
    %v2772 = vunpack.c.l.b16 %v2055
    %v2773 = vunpack.c.h.b16 %v2055
    %v2774 = vunpack.c.l.b16 %v2056
    %v2775 = vunpack.c.h.b16 %v2056
    %v2776 = vunpack.c.l.b16 %v2057
    %v2777 = vunpack.c.h.b16 %v2057
    %v2778 = vunpack.c.l.b16 %v2058
    %v2779 = vunpack.c.h.b16 %v2058
    %v2780 = vunpack.c.l.b16 %v2059
    %v2781 = vunpack.c.h.b16 %v2059
    %v2782 = vunpack.c.l.b16 %v2060
    %v2783 = vunpack.c.h.b16 %v2060
    %v2784 = vunpack.c.l.b16 %v2061
    %v2785 = vunpack.c.h.b16 %v2061
    %v2786 = vunpack.c.l.b16 %v2062
    %v2787 = vunpack.c.h.b16 %v2062
    %v2788 = vunpack.c.l.b16 %v2063
    %v2789 = vunpack.c.h.b16 %v2063
    %v2790 = vunpack.c.l.b16 %v2064
    %v2791 = vunpack.c.h.b16 %v2064
    %v2792 = vunpack.c.l.b16 %v2065
    %v2793 = vunpack.c.h.b16 %v2065
    %v2794 = vunpack.c.l.b16 %v2066
    %v2795 = vunpack.c.h.b16 %v2066
    %v2796 = vunpack.c.l.b16 %v2067
    %v2797 = vunpack.c.h.b16 %v2067
    %v2798 = vunpack.c.l.b16 %v2068
    %v2799 = vunpack.c.h.b16 %v2068
    %v2800 = vunpack.c.l.b16 %v2069
    %v2801 = vunpack.c.h.b16 %v2069
    %v2802 = vunpack.c.l.b16 %v2070
    %v2803 = vunpack.c.h.b16 %v2070
    %v2804 = vunpack.c.l.b16 %v2071
    %v2805 = vunpack.c.h.b16 %v2071
    %v2806 = vunpack.c.l.b16 %v2072
    %v2807 = vunpack.c.h.b16 %v2072
    %v2808 = vunpack.c.l.b16 %v2073
    %v2809 = vunpack.c.h.b16 %v2073
    %v2810 = vunpack.c.l.b16 %v2074
    %v2811 = vunpack.c.h.b16 %v2074
    %v2812 = vunpack.c.l.b16 %v2075
    %v2813 = vunpack.c.h.b16 %v2075
    %v2814 = vunpack.c.l.b16 %v2076
    %v2815 = vunpack.c.h.b16 %v2076
    %v2816 = vunpack.c.l.b16 %v2077
    %v2817 = vunpack.c.h.b16 %v2077
    %v2818 = vunpack.c.l.b16 %v2078
    %v2819 = vunpack.c.h.b16 %v2078
    %v2820 = vunpack.c.l.b16 %v2079
    %v2821 = vunpack.c.h.b16 %v2079
    %v2822 = vunpack.c.l.b16 %v2080
    %v2823 = vunpack.c.h.b16 %v2080
    %v2824 = vunpack.c.l.b16 %v2081
    %v2825 = vunpack.c.h.b16 %v2081
    %v2826 = vunpack.c.l.b16 %v2082
    %v2827 = vunpack.c.h.b16 %v2082
    %v2828 = vunpack.c.l.b16 %v2083
    %v2829 = vunpack.c.h.b16 %v2083
    %v2830 = vunpack.c.l.b16 %v2084
    %v2831 = vunpack.c.h.b16 %v2084
    %v2832 = vunpack.c.l.b16 %v2085
    %v2833 = vunpack.c.h.b16 %v2085
    %v2834 = vunpack.c.l.b16 %v2086
    %v2835 = vunpack.c.h.b16 %v2086
    %v2836 = vunpack.c.l.b16 %v2087
    %v2837 = vunpack.c.h.b16 %v2087
    %v2838 = vunpack.c.l.b16 %v2088
    %v2839 = vunpack.c.h.b16 %v2088
    %v2840 = vunpack.c.l.b16 %v2089
    %v2841 = vunpack.c.h.b16 %v2089
    %v2842 = vunpack.c.l.b16 %v2090
    %v2843 = vunpack.c.h.b16 %v2090
    %v2844 = vunpack.c.l.b16 %v2091
    %v2845 = vunpack.c.h.b16 %v2091
    %v2846 = vunpack.c.l.b16 %v2092
    %v2847 = vunpack.c.h.b16 %v2092
    %v2848 = vunpack.c.l.b16 %v2093
    %v2849 = vunpack.c.h.b16 %v2093
    %v2850 = vunpack.c.l.b16 %v2094
    %v2851 = vunpack.c.h.b16 %v2094
    %v2852 = vunpack.c.l.b16 %v2095
    %v2853 = vunpack.c.h.b16 %v2095
    %v2854 = vunpack.c.l.b16 %v2096
    %v2855 = vunpack.c.h.b16 %v2096
    %v2856 = vunpack.c.l.b16 %v2097
    %v2857 = vunpack.c.h.b16 %v2097
    %v2858 = vunpack.c.l.b16 %v2098
    %v2859 = vunpack.c.h.b16 %v2098
    %v2860 = vunpack.c.l.b16 %v2099
    %v2861 = vunpack.c.h.b16 %v2099
    %v2862 = vunpack.c.l.b16 %v2100
    %v2863 = vunpack.c.h.b16 %v2100
    %v2864 = vunpack.c.l.b16 %v2101
    %v2865 = vunpack.c.h.b16 %v2101
    %v2866 = vunpack.c.l.b16 %v2102
    %v2867 = vunpack.c.h.b16 %v2102
    %v2868 = vunpack.c.l.b16 %v2103
    %v2869 = vunpack.c.h.b16 %v2103
    %v2870 = vunpack.c.l.b16 %v2104
    %v2871 = vunpack.c.h.b16 %v2104
    %v2872 = vunpack.c.l.b16 %v2105
    %v2873 = vunpack.c.h.b16 %v2105
    %v2874 = vpack.c.b16 %v2370, %v2362
    %v2875 = vpack.c.b16 %v2371, %v2363
    %v2876 = vpack.c.b16 %v2372, %v2364
    %v2877 = vpack.c.b16 %v2373, %v2365
    %v2878 = vpack.c.b16 %v2374, %v2366
    %v2879 = vpack.c.b16 %v2375, %v2367
    %v2880 = vpack.c.b16 %v2376, %v2368
    %v2881 = vpack.c.b16 %v2377, %v2369
    %v2882 = vpack.c.b16 %v2386, %v2378
    %v2883 = vpack.c.b16 %v2387, %v2379
    %v2884 = vpack.c.b16 %v2388, %v2380
    %v2885 = vpack.c.b16 %v2389, %v2381
    %v2886 = vpack.c.b16 %v2390, %v2382
    %v2887 = vpack.c.b16 %v2391, %v2383
    %v2888 = vpack.c.b16 %v2392, %v2384
    %v2889 = vpack.c.b16 %v2393, %v2385
    %v2890 = vpack.c.b16 %v2402, %v2394
    %v2891 = vpack.c.b16 %v2403, %v2395
    %v2892 = vpack.c.b16 %v2404, %v2396
    %v2893 = vpack.c.b16 %v2405, %v2397
    %v2894 = vpack.c.b16 %v2406, %v2398
    %v2895 = vpack.c.b16 %v2407, %v2399
    %v2896 = vpack.c.b16 %v2408, %v2400
    %v2897 = vpack.c.b16 %v2409, %v2401
    %v2898 = vpack.c.b16 %v2418, %v2410
    %v2899 = vpack.c.b16 %v2419, %v2411
    %v2900 = vpack.c.b16 %v2420, %v2412
    %v2901 = vpack.c.b16 %v2421, %v2413
    %v2902 = vpack.c.b16 %v2422, %v2414
    %v2903 = vpack.c.b16 %v2423, %v2415
    %v2904 = vpack.c.b16 %v2424, %v2416
    %v2905 = vpack.c.b16 %v2425, %v2417
    %v2906 = vpack.c.b16 %v2434, %v2426
    %v2907 = vpack.c.b16 %v2435, %v2427
    %v2908 = vpack.c.b16 %v2436, %v2428
    %v2909 = vpack.c.b16 %v2437, %v2429
    %v2910 = vpack.c.b16 %v2438, %v2430
    %v2911 = vpack.c.b16 %v2439, %v2431
    %v2912 = vpack.c.b16 %v2440, %v2432
    %v2913 = vpack.c.b16 %v2441, %v2433
    %v2914 = vpack.c.b16 %v2450, %v2442
    %v2915 = vpack.c.b16 %v2451, %v2443
    %v2916 = vpack.c.b16 %v2452, %v2444
    %v2917 = vpack.c.b16 %v2453, %v2445
    %v2918 = vpack.c.b16 %v2454, %v2446
    %v2919 = vpack.c.b16 %v2455, %v2447
    %v2920 = vpack.c.b16 %v2456, %v2448
    %v2921 = vpack.c.b16 %v2457, %v2449
    %v2922 = vpack.c.b16 %v2466, %v2458
    %v2923 = vpack.c.b16 %v2467, %v2459
    %v2924 = vpack.c.b16 %v2468, %v2460
    %v2925 = vpack.c.b16 %v2469, %v2461
    %v2926 = vpack.c.b16 %v2470, %v2462
    %v2927 = vpack.c.b16 %v2471, %v2463
    %v2928 = vpack.c.b16 %v2472, %v2464
    %v2929 = vpack.c.b16 %v2473, %v2465
    %v2930 = vpack.c.b16 %v2482, %v2474
    %v2931 = vpack.c.b16 %v2483, %v2475
    %v2932 = vpack.c.b16 %v2484, %v2476
    %v2933 = vpack.c.b16 %v2485, %v2477
    %v2934 = vpack.c.b16 %v2486, %v2478
    %v2935 = vpack.c.b16 %v2487, %v2479
    %v2936 = vpack.c.b16 %v2488, %v2480
    %v2937 = vpack.c.b16 %v2489, %v2481
    %v2938 = vpack.c.b16 %v2498, %v2490
    %v2939 = vpack.c.b16 %v2499, %v2491
    %v2940 = vpack.c.b16 %v2500, %v2492
    %v2941 = vpack.c.b16 %v2501, %v2493
    %v2942 = vpack.c.b16 %v2502, %v2494
    %v2943 = vpack.c.b16 %v2503, %v2495
    %v2944 = vpack.c.b16 %v2504, %v2496
    %v2945 = vpack.c.b16 %v2505, %v2497
    %v2946 = vpack.c.b16 %v2514, %v2506
    %v2947 = vpack.c.b16 %v2515, %v2507
    %v2948 = vpack.c.b16 %v2516, %v2508
    %v2949 = vpack.c.b16 %v2517, %v2509
    %v2950 = vpack.c.b16 %v2518, %v2510
    %v2951 = vpack.c.b16 %v2519, %v2511
    %v2952 = vpack.c.b16 %v2520, %v2512
    %v2953 = vpack.c.b16 %v2521, %v2513
    %v2954 = vpack.c.b16 %v2530, %v2522
    %v2955 = vpack.c.b16 %v2531, %v2523
    %v2956 = vpack.c.b16 %v2532, %v2524
    %v2957 = vpack.c.b16 %v2533, %v2525
    %v2958 = vpack.c.b16 %v2534, %v2526
    %v2959 = vpack.c.b16 %v2535, %v2527
    %v2960 = vpack.c.b16 %v2536, %v2528
    %v2961 = vpack.c.b16 %v2537, %v2529
    %v2962 = vpack.c.b16 %v2546, %v2538
    %v2963 = vpack.c.b16 %v2547, %v2539
    %v2964 = vpack.c.b16 %v2548, %v2540
    %v2965 = vpack.c.b16 %v2549, %v2541
    %v2966 = vpack.c.b16 %v2550, %v2542
    %v2967 = vpack.c.b16 %v2551, %v2543
    %v2968 = vpack.c.b16 %v2552, %v2544
    %v2969 = vpack.c.b16 %v2553, %v2545
    %v2970 = vpack.c.b16 %v2562, %v2554
    %v2971 = vpack.c.b16 %v2563, %v2555
    %v2972 = vpack.c.b16 %v2564, %v2556
    %v2973 = vpack.c.b16 %v2565, %v2557
    %v2974 = vpack.c.b16 %v2566, %v2558
    %v2975 = vpack.c.b16 %v2567, %v2559
    %v2976 = vpack.c.b16 %v2568, %v2560
    %v2977 = vpack.c.b16 %v2569, %v2561
    %v2978 = vpack.c.b16 %v2578, %v2570
    %v2979 = vpack.c.b16 %v2579, %v2571
    %v2980 = vpack.c.b16 %v2580, %v2572
    %v2981 = vpack.c.b16 %v2581, %v2573
    %v2982 = vpack.c.b16 %v2582, %v2574
    %v2983 = vpack.c.b16 %v2583, %v2575
    %v2984 = vpack.c.b16 %v2584, %v2576
    %v2985 = vpack.c.b16 %v2585, %v2577
    %v2986 = vpack.c.b16 %v2594, %v2586
    %v2987 = vpack.c.b16 %v2595, %v2587
    %v2988 = vpack.c.b16 %v2596, %v2588
    %v2989 = vpack.c.b16 %v2597, %v2589
    %v2990 = vpack.c.b16 %v2598, %v2590
    %v2991 = vpack.c.b16 %v2599, %v2591
    %v2992 = vpack.c.b16 %v2600, %v2592
    %v2993 = vpack.c.b16 %v2601, %v2593
    %v2994 = vpack.c.b16 %v2610, %v2602
    %v2995 = vpack.c.b16 %v2611, %v2603
    %v2996 = vpack.c.b16 %v2612, %v2604
    %v2997 = vpack.c.b16 %v2613, %v2605
    %v2998 = vpack.c.b16 %v2614, %v2606
    %v2999 = vpack.c.b16 %v2615, %v2607
    %v3000 = vpack.c.b16 %v2616, %v2608
    %v3001 = vpack.c.b16 %v2617, %v2609
    %v3002 = vpack.c.b16 %v2626, %v2618
    %v3003 = vpack.c.b16 %v2627, %v2619
    %v3004 = vpack.c.b16 %v2628, %v2620
    %v3005 = vpack.c.b16 %v2629, %v2621
    %v3006 = vpack.c.b16 %v2630, %v2622
    %v3007 = vpack.c.b16 %v2631, %v2623
    %v3008 = vpack.c.b16 %v2632, %v2624
    %v3009 = vpack.c.b16 %v2633, %v2625
    %v3010 = vpack.c.b16 %v2642, %v2634
    %v3011 = vpack.c.b16 %v2643, %v2635
    %v3012 = vpack.c.b16 %v2644, %v2636
    %v3013 = vpack.c.b16 %v2645, %v2637
    %v3014 = vpack.c.b16 %v2646, %v2638
    %v3015 = vpack.c.b16 %v2647, %v2639
    %v3016 = vpack.c.b16 %v2648, %v2640
    %v3017 = vpack.c.b16 %v2649, %v2641
    %v3018 = vpack.c.b16 %v2658, %v2650
    %v3019 = vpack.c.b16 %v2659, %v2651
    %v3020 = vpack.c.b16 %v2660, %v2652
    %v3021 = vpack.c.b16 %v2661, %v2653
    %v3022 = vpack.c.b16 %v2662, %v2654
    %v3023 = vpack.c.b16 %v2663, %v2655
    %v3024 = vpack.c.b16 %v2664, %v2656
    %v3025 = vpack.c.b16 %v2665, %v2657
    %v3026 = vpack.c.b16 %v2674, %v2666
    %v3027 = vpack.c.b16 %v2675, %v2667
    %v3028 = vpack.c.b16 %v2676, %v2668
    %v3029 = vpack.c.b16 %v2677, %v2669
    %v3030 = vpack.c.b16 %v2678, %v2670
    %v3031 = vpack.c.b16 %v2679, %v2671
    %v3032 = vpack.c.b16 %v2680, %v2672
    %v3033 = vpack.c.b16 %v2681, %v2673
    %v3034 = vpack.c.b16 %v2690, %v2682
    %v3035 = vpack.c.b16 %v2691, %v2683
    %v3036 = vpack.c.b16 %v2692, %v2684
    %v3037 = vpack.c.b16 %v2693, %v2685
    %v3038 = vpack.c.b16 %v2694, %v2686
    %v3039 = vpack.c.b16 %v2695, %v2687
    %v3040 = vpack.c.b16 %v2696, %v2688
    %v3041 = vpack.c.b16 %v2697, %v2689
    %v3042 = vpack.c.b16 %v2706, %v2698
    %v3043 = vpack.c.b16 %v2707, %v2699
    %v3044 = vpack.c.b16 %v2708, %v2700
    %v3045 = vpack.c.b16 %v2709, %v2701
    %v3046 = vpack.c.b16 %v2710, %v2702
    %v3047 = vpack.c.b16 %v2711, %v2703
    %v3048 = vpack.c.b16 %v2712, %v2704
    %v3049 = vpack.c.b16 %v2713, %v2705
    %v3050 = vpack.c.b16 %v2722, %v2714
    %v3051 = vpack.c.b16 %v2723, %v2715
    %v3052 = vpack.c.b16 %v2724, %v2716
    %v3053 = vpack.c.b16 %v2725, %v2717
    %v3054 = vpack.c.b16 %v2726, %v2718
    %v3055 = vpack.c.b16 %v2727, %v2719
    %v3056 = vpack.c.b16 %v2728, %v2720
    %v3057 = vpack.c.b16 %v2729, %v2721
    %v3058 = vpack.c.b16 %v2738, %v2730
    %v3059 = vpack.c.b16 %v2739, %v2731
    %v3060 = vpack.c.b16 %v2740, %v2732
    %v3061 = vpack.c.b16 %v2741, %v2733
    %v3062 = vpack.c.b16 %v2742, %v2734
    %v3063 = vpack.c.b16 %v2743, %v2735
    %v3064 = vpack.c.b16 %v2744, %v2736
    %v3065 = vpack.c.b16 %v2745, %v2737
    %v3066 = vpack.c.b16 %v2754, %v2746
    %v3067 = vpack.c.b16 %v2755, %v2747
    %v3068 = vpack.c.b16 %v2756, %v2748
    %v3069 = vpack.c.b16 %v2757, %v2749
    %v3070 = vpack.c.b16 %v2758, %v2750
    %v3071 = vpack.c.b16 %v2759, %v2751
    %v3072 = vpack.c.b16 %v2760, %v2752
    %v3073 = vpack.c.b16 %v2761, %v2753
    %v3074 = vpack.c.b16 %v2770, %v2762
    %v3075 = vpack.c.b16 %v2771, %v2763
    %v3076 = vpack.c.b16 %v2772, %v2764
    %v3077 = vpack.c.b16 %v2773, %v2765
    %v3078 = vpack.c.b16 %v2774, %v2766
    %v3079 = vpack.c.b16 %v2775, %v2767
    %v3080 = vpack.c.b16 %v2776, %v2768
    %v3081 = vpack.c.b16 %v2777, %v2769
    %v3082 = vpack.c.b16 %v2786, %v2778
    %v3083 = vpack.c.b16 %v2787, %v2779
    %v3084 = vpack.c.b16 %v2788, %v2780
    %v3085 = vpack.c.b16 %v2789, %v2781
    %v3086 = vpack.c.b16 %v2790, %v2782
    %v3087 = vpack.c.b16 %v2791, %v2783
    %v3088 = vpack.c.b16 %v2792, %v2784
    %v3089 = vpack.c.b16 %v2793, %v2785
    %v3090 = vpack.c.b16 %v2802, %v2794
    %v3091 = vpack.c.b16 %v2803, %v2795
    %v3092 = vpack.c.b16 %v2804, %v2796
    %v3093 = vpack.c.b16 %v2805, %v2797
    %v3094 = vpack.c.b16 %v2806, %v2798
    %v3095 = vpack.c.b16 %v2807, %v2799
    %v3096 = vpack.c.b16 %v2808, %v2800
    %v3097 = vpack.c.b16 %v2809, %v2801
    %v3098 = vpack.c.b16 %v2818, %v2810
    %v3099 = vpack.c.b16 %v2819, %v2811
    %v3100 = vpack.c.b16 %v2820, %v2812
    %v3101 = vpack.c.b16 %v2821, %v2813
    %v3102 = vpack.c.b16 %v2822, %v2814
    %v3103 = vpack.c.b16 %v2823, %v2815
    %v3104 = vpack.c.b16 %v2824, %v2816
    %v3105 = vpack.c.b16 %v2825, %v2817
    %v3106 = vpack.c.b16 %v2834, %v2826
    %v3107 = vpack.c.b16 %v2835, %v2827
    %v3108 = vpack.c.b16 %v2836, %v2828
    %v3109 = vpack.c.b16 %v2837, %v2829
    %v3110 = vpack.c.b16 %v2838, %v2830
    %v3111 = vpack.c.b16 %v2839, %v2831
    %v3112 = vpack.c.b16 %v2840, %v2832
    %v3113 = vpack.c.b16 %v2841, %v2833
    %v3114 = vpack.c.b16 %v2850, %v2842
    %v3115 = vpack.c.b16 %v2851, %v2843
    %v3116 = vpack.c.b16 %v2852, %v2844
    %v3117 = vpack.c.b16 %v2853, %v2845
    %v3118 = vpack.c.b16 %v2854, %v2846
    %v3119 = vpack.c.b16 %v2855, %v2847
    %v3120 = vpack.c.b16 %v2856, %v2848
    %v3121 = vpack.c.b16 %v2857, %v2849
    %v3122 = vpack.c.b16 %v2866, %v2858
    %v3123 = vpack.c.b16 %v2867, %v2859
    %v3124 = vpack.c.b16 %v2868, %v2860
    %v3125 = vpack.c.b16 %v2869, %v2861
    %v3126 = vpack.c.b16 %v2870, %v2862
    %v3127 = vpack.c.b16 %v2871, %v2863
    %v3128 = vpack.c.b16 %v2872, %v2864
    %v3129 = vpack.c.b16 %v2873, %v2865
    %3386 = vmatprep.subr.bf16.mxu0 %v2931
    %3387 = vmatpush1.bf16.msra.mxu0 %v2930
    %3388 = vmatprep.subr.bf16.mxu0 %v2923
    %3389 = vmatpush1.bf16.msra.mxu0 %v2922
    %3390 = vmatprep.subr.bf16.mxu0 %v2915
    %3391 = vmatpush1.bf16.msra.mxu0 %v2914
    %3392 = vmatprep.subr.bf16.mxu0 %v2907
    %3393 = vmatpush1.bf16.msra.mxu0 %v2906
    %3394 = vmatprep.subr.bf16.mxu0 %v2899
    %3395 = vmatpush1.bf16.msra.mxu0 %v2898
    %3396 = vmatprep.subr.bf16.mxu0 %v2891
    %3397 = vmatpush1.bf16.msra.mxu0 %v2890
    %3398 = vmatprep.subr.bf16.mxu0 %v2883
    %3399 = vmatpush1.bf16.msra.mxu0 %v2882
    %3400 = vmatprep.subr.bf16.mxu0 %v2875
    %3401 = vmatpush1.bf16.msra.mxu0 %v2874
    %3402 = vmatprep.subr.bf16.mxu0 %v2995
    %3403 = vmatpush2.bf16.msra.mxu0 %v2994
    %3404 = vmatprep.subr.bf16.mxu0 %v2987
    %3405 = vmatpush2.bf16.msra.mxu0 %v2986
    %3406 = vmatprep.subr.bf16.mxu0 %v2979
    %3407 = vmatpush2.bf16.msra.mxu0 %v2978
    %3408 = vmatprep.subr.bf16.mxu0 %v2971
    %3409 = vmatpush2.bf16.msra.mxu0 %v2970
    %3410 = vmatprep.subr.bf16.mxu0 %v2963
    %3411 = vmatpush2.bf16.msra.mxu0 %v2962
    %3412 = vmatprep.subr.bf16.mxu0 %v2955
    %3413 = vmatpush2.bf16.msra.mxu0 %v2954
    %3414 = vmatprep.subr.bf16.mxu0 %v2947
    %3415 = vmatpush2.bf16.msra.mxu0 %v2946
    %3416 = vmatprep.subr.bf16.mxu0 %v2939
    %3417 = vmatpush2.bf16.msra.mxu0 %v2938
    %3418 = vmatprep.mubr.bf16.mxu0 %v1843
    %3419 = vmatmul.mubr.bf16.gmra.mxu0 %v1842
    %v3420 = vpop.f32.mrf.mxu0
    %v3421 = vadd.f32 0.0, %v3420
    %v3422 = vpop.f32.mrf.mxu0
    %v3423 = vadd.f32 0.0, %v3422
    %v3424 = vpop.f32.mrf.mxu0
    %v3425 = vadd.f32 0.0, %v3424
    %v3426 = vpop.f32.mrf.mxu0
    %v3427 = vadd.f32 0.0, %v3426
    %3428 = vmatprep.mubr.bf16.mxu0 %v1847
    %3429 = vmatmul.mubr.bf16.gmra.mxu0 %v1846
    %v3430 = vpop.f32.mrf.mxu0
    %v3431 = vadd.f32 0.0, %v3430
    %v3432 = vpop.f32.mrf.mxu0
    %v3433 = vadd.f32 0.0, %v3432
    %v3434 = vpop.f32.mrf.mxu0
    %v3435 = vadd.f32 0.0, %v3434
    %v3436 = vpop.f32.mrf.mxu0
    %v3437 = vadd.f32 0.0, %v3436
    %3438 = vdwg.mxu0
    %3439 = vmatprep.subr.bf16.mxu0 %v3059
    %3440 = vmatpush1.bf16.msra.mxu0 %v3058
    %3441 = vmatprep.subr.bf16.mxu0 %v3051
    %3442 = vmatpush1.bf16.msra.mxu0 %v3050
    %3443 = vmatprep.subr.bf16.mxu0 %v3043
    %3444 = vmatpush1.bf16.msra.mxu0 %v3042
    %3445 = vmatprep.subr.bf16.mxu0 %v3035
    %3446 = vmatpush1.bf16.msra.mxu0 %v3034
    %3447 = vmatprep.subr.bf16.mxu0 %v3027
    %3448 = vmatpush1.bf16.msra.mxu0 %v3026
    %3449 = vmatprep.subr.bf16.mxu0 %v3019
    %3450 = vmatpush1.bf16.msra.mxu0 %v3018
    %3451 = vmatprep.subr.bf16.mxu0 %v3011
    %3452 = vmatpush1.bf16.msra.mxu0 %v3010
    %3453 = vmatprep.subr.bf16.mxu0 %v3003
    %3454 = vmatpush1.bf16.msra.mxu0 %v3002
    %3455 = vmatprep.subr.bf16.mxu0 %v3123
    %3456 = vmatpush2.bf16.msra.mxu0 %v3122
    %3457 = vmatprep.subr.bf16.mxu0 %v3115
    %3458 = vmatpush2.bf16.msra.mxu0 %v3114
    %3459 = vmatprep.subr.bf16.mxu0 %v3107
    %3460 = vmatpush2.bf16.msra.mxu0 %v3106
    %3461 = vmatprep.subr.bf16.mxu0 %v3099
    %3462 = vmatpush2.bf16.msra.mxu0 %v3098
    %3463 = vmatprep.subr.bf16.mxu0 %v3091
    %3464 = vmatpush2.bf16.msra.mxu0 %v3090
    %3465 = vmatprep.subr.bf16.mxu0 %v3083
    %3466 = vmatpush2.bf16.msra.mxu0 %v3082
    %3467 = vmatprep.subr.bf16.mxu0 %v3075
    %3468 = vmatpush2.bf16.msra.mxu0 %v3074
    %3469 = vmatprep.subr.bf16.mxu0 %v3067
    %3470 = vmatpush2.bf16.msra.mxu0 %v3066
    %3471 = vmatprep.mubr.bf16.mxu0 %v1845
    %3472 = vmatmul.mubr.bf16.gmra.mxu0 %v1844
    %v3473 = vpop.f32.mrf.mxu0
    %v3474 = vadd.f32 %v3421, %v3473
    %v3475 = vpop.f32.mrf.mxu0
    %v3476 = vadd.f32 %v3423, %v3475
    %v3477 = vpop.f32.mrf.mxu0
    %v3478 = vadd.f32 %v3425, %v3477
    %v3479 = vpop.f32.mrf.mxu0
    %v3480 = vadd.f32 %v3427, %v3479
    %3481 = vmatprep.mubr.bf16.mxu0 %v1849
    %3482 = vmatmul.mubr.bf16.gmra.mxu0 %v1848
    %v3483 = vpop.f32.mrf.mxu0
    %v3484 = vadd.f32 %v3431, %v3483
    %v3485 = vpop.f32.mrf.mxu0
    %v3486 = vadd.f32 %v3433, %v3485
    %v3487 = vpop.f32.mrf.mxu0
    %v3488 = vadd.f32 %v3435, %v3487
    %v3489 = vpop.f32.mrf.mxu0
    %v3490 = vadd.f32 %v3437, %v3489
    %3491 = vdwg.mxu0
    %3492 = vmatprep.subr.bf16.mxu0 %v2933
    %3493 = vmatpush1.bf16.msra.mxu0 %v2932
    %3494 = vmatprep.subr.bf16.mxu0 %v2925
    %3495 = vmatpush1.bf16.msra.mxu0 %v2924
    %3496 = vmatprep.subr.bf16.mxu0 %v2917
    %3497 = vmatpush1.bf16.msra.mxu0 %v2916
    %3498 = vmatprep.subr.bf16.mxu0 %v2909
    %3499 = vmatpush1.bf16.msra.mxu0 %v2908
    %3500 = vmatprep.subr.bf16.mxu0 %v2901
    %3501 = vmatpush1.bf16.msra.mxu0 %v2900
    %3502 = vmatprep.subr.bf16.mxu0 %v2893
    %3503 = vmatpush1.bf16.msra.mxu0 %v2892
    %3504 = vmatprep.subr.bf16.mxu0 %v2885
    %3505 = vmatpush1.bf16.msra.mxu0 %v2884
    %3506 = vmatprep.subr.bf16.mxu0 %v2877
    %3507 = vmatpush1.bf16.msra.mxu0 %v2876
    %3508 = vmatprep.subr.bf16.mxu0 %v2997
    %3509 = vmatpush2.bf16.msra.mxu0 %v2996
    %3510 = vmatprep.subr.bf16.mxu0 %v2989
    %3511 = vmatpush2.bf16.msra.mxu0 %v2988
    %3512 = vmatprep.subr.bf16.mxu0 %v2981
    %3513 = vmatpush2.bf16.msra.mxu0 %v2980
    %3514 = vmatprep.subr.bf16.mxu0 %v2973
    %3515 = vmatpush2.bf16.msra.mxu0 %v2972
    %3516 = vmatprep.subr.bf16.mxu0 %v2965
    %3517 = vmatpush2.bf16.msra.mxu0 %v2964
    %3518 = vmatprep.subr.bf16.mxu0 %v2957
    %3519 = vmatpush2.bf16.msra.mxu0 %v2956
    %3520 = vmatprep.subr.bf16.mxu0 %v2949
    %3521 = vmatpush2.bf16.msra.mxu0 %v2948
    %3522 = vmatprep.subr.bf16.mxu0 %v2941
    %3523 = vmatpush2.bf16.msra.mxu0 %v2940
    %3524 = vmatprep.mubr.bf16.mxu0 %v1843
    %3525 = vmatmul.mubr.bf16.gmra.mxu0 %v1842
    %v3526 = vpop.f32.mrf.mxu0
    %v3527 = vadd.f32 0.0, %v3526
    %v3528 = vpop.f32.mrf.mxu0
    %v3529 = vadd.f32 0.0, %v3528
    %v3530 = vpop.f32.mrf.mxu0
    %v3531 = vadd.f32 0.0, %v3530
    %v3532 = vpop.f32.mrf.mxu0
    %v3533 = vadd.f32 0.0, %v3532
    %3534 = vmatprep.mubr.bf16.mxu0 %v1847
    %3535 = vmatmul.mubr.bf16.gmra.mxu0 %v1846
    %v3536 = vpop.f32.mrf.mxu0
    %v3537 = vadd.f32 0.0, %v3536
    %v3538 = vpop.f32.mrf.mxu0
    %v3539 = vadd.f32 0.0, %v3538
    %v3540 = vpop.f32.mrf.mxu0
    %v3541 = vadd.f32 0.0, %v3540
    %v3542 = vpop.f32.mrf.mxu0
    %v3543 = vadd.f32 0.0, %v3542
    %3544 = vdwg.mxu0
    %3545 = vmatprep.subr.bf16.mxu0 %v3061
    %3546 = vmatpush1.bf16.msra.mxu0 %v3060
    %3547 = vmatprep.subr.bf16.mxu0 %v3053
    %3548 = vmatpush1.bf16.msra.mxu0 %v3052
    %3549 = vmatprep.subr.bf16.mxu0 %v3045
    %3550 = vmatpush1.bf16.msra.mxu0 %v3044
    %3551 = vmatprep.subr.bf16.mxu0 %v3037
    %3552 = vmatpush1.bf16.msra.mxu0 %v3036
    %3553 = vmatprep.subr.bf16.mxu0 %v3029
    %3554 = vmatpush1.bf16.msra.mxu0 %v3028
    %3555 = vmatprep.subr.bf16.mxu0 %v3021
    %3556 = vmatpush1.bf16.msra.mxu0 %v3020
    %3557 = vmatprep.subr.bf16.mxu0 %v3013
    %3558 = vmatpush1.bf16.msra.mxu0 %v3012
    %3559 = vmatprep.subr.bf16.mxu0 %v3005
    %3560 = vmatpush1.bf16.msra.mxu0 %v3004
    %3561 = vmatprep.subr.bf16.mxu0 %v3125
    %3562 = vmatpush2.bf16.msra.mxu0 %v3124
    %3563 = vmatprep.subr.bf16.mxu0 %v3117
    %3564 = vmatpush2.bf16.msra.mxu0 %v3116
    %3565 = vmatprep.subr.bf16.mxu0 %v3109
    %3566 = vmatpush2.bf16.msra.mxu0 %v3108
    %3567 = vmatprep.subr.bf16.mxu0 %v3101
    %3568 = vmatpush2.bf16.msra.mxu0 %v3100
    %3569 = vmatprep.subr.bf16.mxu0 %v3093
    %3570 = vmatpush2.bf16.msra.mxu0 %v3092
    %3571 = vmatprep.subr.bf16.mxu0 %v3085
    %3572 = vmatpush2.bf16.msra.mxu0 %v3084
    %3573 = vmatprep.subr.bf16.mxu0 %v3077
    %3574 = vmatpush2.bf16.msra.mxu0 %v3076
    %3575 = vmatprep.subr.bf16.mxu0 %v3069
    %3576 = vmatpush2.bf16.msra.mxu0 %v3068
    %3577 = vmatprep.mubr.bf16.mxu0 %v1845
    %3578 = vmatmul.mubr.bf16.gmra.mxu0 %v1844
    %v3579 = vpop.f32.mrf.mxu0
    %v3580 = vadd.f32 %v3527, %v3579
    %v3581 = vpop.f32.mrf.mxu0
    %v3582 = vadd.f32 %v3529, %v3581
    %v3583 = vpop.f32.mrf.mxu0
    %v3584 = vadd.f32 %v3531, %v3583
    %v3585 = vpop.f32.mrf.mxu0
    %v3586 = vadd.f32 %v3533, %v3585
    %3587 = vmatprep.mubr.bf16.mxu0 %v1849
    %3588 = vmatmul.mubr.bf16.gmra.mxu0 %v1848
    %v3589 = vpop.f32.mrf.mxu0
    %v3590 = vadd.f32 %v3537, %v3589
    %v3591 = vpop.f32.mrf.mxu0
    %v3592 = vadd.f32 %v3539, %v3591
    %v3593 = vpop.f32.mrf.mxu0
    %v3594 = vadd.f32 %v3541, %v3593
    %v3595 = vpop.f32.mrf.mxu0
    %v3596 = vadd.f32 %v3543, %v3595
    %3597 = vdwg.mxu0
    %3598 = vmatprep.subr.bf16.mxu0 %v2935
    %3599 = vmatpush1.bf16.msra.mxu0 %v2934
    %3600 = vmatprep.subr.bf16.mxu0 %v2927
    %3601 = vmatpush1.bf16.msra.mxu0 %v2926
    %3602 = vmatprep.subr.bf16.mxu0 %v2919
    %3603 = vmatpush1.bf16.msra.mxu0 %v2918
    %3604 = vmatprep.subr.bf16.mxu0 %v2911
    %3605 = vmatpush1.bf16.msra.mxu0 %v2910
    %3606 = vmatprep.subr.bf16.mxu0 %v2903
    %3607 = vmatpush1.bf16.msra.mxu0 %v2902
    %3608 = vmatprep.subr.bf16.mxu0 %v2895
    %3609 = vmatpush1.bf16.msra.mxu0 %v2894
    %3610 = vmatprep.subr.bf16.mxu0 %v2887
    %3611 = vmatpush1.bf16.msra.mxu0 %v2886
    %3612 = vmatprep.subr.bf16.mxu0 %v2879
    %3613 = vmatpush1.bf16.msra.mxu0 %v2878
    %3614 = vmatprep.subr.bf16.mxu0 %v2999
    %3615 = vmatpush2.bf16.msra.mxu0 %v2998
    %3616 = vmatprep.subr.bf16.mxu0 %v2991
    %3617 = vmatpush2.bf16.msra.mxu0 %v2990
    %3618 = vmatprep.subr.bf16.mxu0 %v2983
    %3619 = vmatpush2.bf16.msra.mxu0 %v2982
    %3620 = vmatprep.subr.bf16.mxu0 %v2975
    %3621 = vmatpush2.bf16.msra.mxu0 %v2974
    %3622 = vmatprep.subr.bf16.mxu0 %v2967
    %3623 = vmatpush2.bf16.msra.mxu0 %v2966
    %3624 = vmatprep.subr.bf16.mxu0 %v2959
    %3625 = vmatpush2.bf16.msra.mxu0 %v2958
    %3626 = vmatprep.subr.bf16.mxu0 %v2951
    %3627 = vmatpush2.bf16.msra.mxu0 %v2950
    %3628 = vmatprep.subr.bf16.mxu0 %v2943
    %3629 = vmatpush2.bf16.msra.mxu0 %v2942
    %3630 = vmatprep.mubr.bf16.mxu0 %v1843
    %3631 = vmatmul.mubr.bf16.gmra.mxu0 %v1842
    %v3632 = vpop.f32.mrf.mxu0
    %v3633 = vadd.f32 0.0, %v3632
    %v3634 = vpop.f32.mrf.mxu0
    %v3635 = vadd.f32 0.0, %v3634
    %v3636 = vpop.f32.mrf.mxu0
    %v3637 = vadd.f32 0.0, %v3636
    %v3638 = vpop.f32.mrf.mxu0
    %v3639 = vadd.f32 0.0, %v3638
    %3640 = vmatprep.mubr.bf16.mxu0 %v1847
    %3641 = vmatmul.mubr.bf16.gmra.mxu0 %v1846
    %v3642 = vpop.f32.mrf.mxu0
    %v3643 = vadd.f32 0.0, %v3642
    %v3644 = vpop.f32.mrf.mxu0
    %v3645 = vadd.f32 0.0, %v3644
    %v3646 = vpop.f32.mrf.mxu0
    %v3647 = vadd.f32 0.0, %v3646
    %v3648 = vpop.f32.mrf.mxu0
    %v3649 = vadd.f32 0.0, %v3648
    %3650 = vdwg.mxu0
    %3651 = vmatprep.subr.bf16.mxu0 %v3063
    %3652 = vmatpush1.bf16.msra.mxu0 %v3062
    %3653 = vmatprep.subr.bf16.mxu0 %v3055
    %3654 = vmatpush1.bf16.msra.mxu0 %v3054
    %3655 = vmatprep.subr.bf16.mxu0 %v3047
    %3656 = vmatpush1.bf16.msra.mxu0 %v3046
    %3657 = vmatprep.subr.bf16.mxu0 %v3039
    %3658 = vmatpush1.bf16.msra.mxu0 %v3038
    %3659 = vmatprep.subr.bf16.mxu0 %v3031
    %3660 = vmatpush1.bf16.msra.mxu0 %v3030
    %3661 = vmatprep.subr.bf16.mxu0 %v3023
    %3662 = vmatpush1.bf16.msra.mxu0 %v3022
    %3663 = vmatprep.subr.bf16.mxu0 %v3015
    %3664 = vmatpush1.bf16.msra.mxu0 %v3014
    %3665 = vmatprep.subr.bf16.mxu0 %v3007
    %3666 = vmatpush1.bf16.msra.mxu0 %v3006
    %3667 = vmatprep.subr.bf16.mxu0 %v3127
    %3668 = vmatpush2.bf16.msra.mxu0 %v3126
    %3669 = vmatprep.subr.bf16.mxu0 %v3119
    %3670 = vmatpush2.bf16.msra.mxu0 %v3118
    %3671 = vmatprep.subr.bf16.mxu0 %v3111
    %3672 = vmatpush2.bf16.msra.mxu0 %v3110
    %3673 = vmatprep.subr.bf16.mxu0 %v3103
    %3674 = vmatpush2.bf16.msra.mxu0 %v3102
    %3675 = vmatprep.subr.bf16.mxu0 %v3095
    %3676 = vmatpush2.bf16.msra.mxu0 %v3094
    %3677 = vmatprep.subr.bf16.mxu0 %v3087
    %3678 = vmatpush2.bf16.msra.mxu0 %v3086
    %3679 = vmatprep.subr.bf16.mxu0 %v3079
    %3680 = vmatpush2.bf16.msra.mxu0 %v3078
    %3681 = vmatprep.subr.bf16.mxu0 %v3071
    %3682 = vmatpush2.bf16.msra.mxu0 %v3070
    %3683 = vmatprep.mubr.bf16.mxu0 %v1845
    %3684 = vmatmul.mubr.bf16.gmra.mxu0 %v1844
    %v3685 = vpop.f32.mrf.mxu0
    %v3686 = vadd.f32 %v3633, %v3685
    %v3687 = vpop.f32.mrf.mxu0
    %v3688 = vadd.f32 %v3635, %v3687
    %v3689 = vpop.f32.mrf.mxu0
    %v3690 = vadd.f32 %v3637, %v3689
    %v3691 = vpop.f32.mrf.mxu0
    %v3692 = vadd.f32 %v3639, %v3691
    %3693 = vmatprep.mubr.bf16.mxu0 %v1849
    %3694 = vmatmul.mubr.bf16.gmra.mxu0 %v1848
    %v3695 = vpop.f32.mrf.mxu0
    %v3696 = vadd.f32 %v3643, %v3695
    %v3697 = vpop.f32.mrf.mxu0
    %v3698 = vadd.f32 %v3645, %v3697
    %v3699 = vpop.f32.mrf.mxu0
    %v3700 = vadd.f32 %v3647, %v3699
    %v3701 = vpop.f32.mrf.mxu0
    %v3702 = vadd.f32 %v3649, %v3701
    %3703 = vdwg.mxu0
    %3704 = vmatprep.subr.bf16.mxu0 %v2937
    %3705 = vmatpush1.bf16.msra.mxu0 %v2936
    %3706 = vmatprep.subr.bf16.mxu0 %v2929
    %3707 = vmatpush1.bf16.msra.mxu0 %v2928
    %3708 = vmatprep.subr.bf16.mxu0 %v2921
    %3709 = vmatpush1.bf16.msra.mxu0 %v2920
    %3710 = vmatprep.subr.bf16.mxu0 %v2913
    %3711 = vmatpush1.bf16.msra.mxu0 %v2912
    %3712 = vmatprep.subr.bf16.mxu0 %v2905
    %3713 = vmatpush1.bf16.msra.mxu0 %v2904
    %3714 = vmatprep.subr.bf16.mxu0 %v2897
    %3715 = vmatpush1.bf16.msra.mxu0 %v2896
    %3716 = vmatprep.subr.bf16.mxu0 %v2889
    %3717 = vmatpush1.bf16.msra.mxu0 %v2888
    %3718 = vmatprep.subr.bf16.mxu0 %v2881
    %3719 = vmatpush1.bf16.msra.mxu0 %v2880
    %3720 = vmatprep.subr.bf16.mxu0 %v3001
    %3721 = vmatpush2.bf16.msra.mxu0 %v3000
    %3722 = vmatprep.subr.bf16.mxu0 %v2993
    %3723 = vmatpush2.bf16.msra.mxu0 %v2992
    %3724 = vmatprep.subr.bf16.mxu0 %v2985
    %3725 = vmatpush2.bf16.msra.mxu0 %v2984
    %3726 = vmatprep.subr.bf16.mxu0 %v2977
    %3727 = vmatpush2.bf16.msra.mxu0 %v2976
    %3728 = vmatprep.subr.bf16.mxu0 %v2969
    %3729 = vmatpush2.bf16.msra.mxu0 %v2968
    %3730 = vmatprep.subr.bf16.mxu0 %v2961
    %3731 = vmatpush2.bf16.msra.mxu0 %v2960
    %3732 = vmatprep.subr.bf16.mxu0 %v2953
    %3733 = vmatpush2.bf16.msra.mxu0 %v2952
    %3734 = vmatprep.subr.bf16.mxu0 %v2945
    %3735 = vmatpush2.bf16.msra.mxu0 %v2944
    %3736 = vmatprep.mubr.bf16.mxu0 %v1843
    %3737 = vmatmul.mubr.bf16.gmra.mxu0 %v1842
    %v3738 = vpop.f32.mrf.mxu0
    %v3739 = vadd.f32 0.0, %v3738
    %v3740 = vpop.f32.mrf.mxu0
    %v3741 = vadd.f32 0.0, %v3740
    %v3742 = vpop.f32.mrf.mxu0
    %v3743 = vadd.f32 0.0, %v3742
    %v3744 = vpop.f32.mrf.mxu0
    %v3745 = vadd.f32 0.0, %v3744
    %3746 = vmatprep.mubr.bf16.mxu0 %v1847
    %3747 = vmatmul.mubr.bf16.gmra.mxu0 %v1846
    %v3748 = vpop.f32.mrf.mxu0
    %v3749 = vadd.f32 0.0, %v3748
    %v3750 = vpop.f32.mrf.mxu0
    %v3751 = vadd.f32 0.0, %v3750
    %v3752 = vpop.f32.mrf.mxu0
    %v3753 = vadd.f32 0.0, %v3752
    %v3754 = vpop.f32.mrf.mxu0
    %v3755 = vadd.f32 0.0, %v3754
    %3756 = vdwg.mxu0
    %3757 = vmatprep.subr.bf16.mxu0 %v3065
    %3758 = vmatpush1.bf16.msra.mxu0 %v3064
    %3759 = vmatprep.subr.bf16.mxu0 %v3057
    %3760 = vmatpush1.bf16.msra.mxu0 %v3056
    %3761 = vmatprep.subr.bf16.mxu0 %v3049
    %3762 = vmatpush1.bf16.msra.mxu0 %v3048
    %3763 = vmatprep.subr.bf16.mxu0 %v3041
    %3764 = vmatpush1.bf16.msra.mxu0 %v3040
    %3765 = vmatprep.subr.bf16.mxu0 %v3033
    %3766 = vmatpush1.bf16.msra.mxu0 %v3032
    %3767 = vmatprep.subr.bf16.mxu0 %v3025
    %3768 = vmatpush1.bf16.msra.mxu0 %v3024
    %3769 = vmatprep.subr.bf16.mxu0 %v3017
    %3770 = vmatpush1.bf16.msra.mxu0 %v3016
    %3771 = vmatprep.subr.bf16.mxu0 %v3009
    %3772 = vmatpush1.bf16.msra.mxu0 %v3008
    %3773 = vmatprep.subr.bf16.mxu0 %v3129
    %3774 = vmatpush2.bf16.msra.mxu0 %v3128
    %3775 = vmatprep.subr.bf16.mxu0 %v3121
    %3776 = vmatpush2.bf16.msra.mxu0 %v3120
    %3777 = vmatprep.subr.bf16.mxu0 %v3113
    %3778 = vmatpush2.bf16.msra.mxu0 %v3112
    %3779 = vmatprep.subr.bf16.mxu0 %v3105
    %3780 = vmatpush2.bf16.msra.mxu0 %v3104
    %3781 = vmatprep.subr.bf16.mxu0 %v3097
    %3782 = vmatpush2.bf16.msra.mxu0 %v3096
    %3783 = vmatprep.subr.bf16.mxu0 %v3089
    %3784 = vmatpush2.bf16.msra.mxu0 %v3088
    %3785 = vmatprep.subr.bf16.mxu0 %v3081
    %3786 = vmatpush2.bf16.msra.mxu0 %v3080
    %3787 = vmatprep.subr.bf16.mxu0 %v3073
    %3788 = vmatpush2.bf16.msra.mxu0 %v3072
    %3789 = vmatprep.mubr.bf16.mxu0 %v1845
    %3790 = vmatmul.mubr.bf16.gmra.mxu0 %v1844
    %v3791 = vpop.f32.mrf.mxu0
    %v3792 = vadd.f32 %v3739, %v3791
    %v3793 = vpop.f32.mrf.mxu0
    %v3794 = vadd.f32 %v3741, %v3793
    %v3795 = vpop.f32.mrf.mxu0
    %v3796 = vadd.f32 %v3743, %v3795
    %v3797 = vpop.f32.mrf.mxu0
    %v3798 = vadd.f32 %v3745, %v3797
    %3799 = vmatprep.mubr.bf16.mxu0 %v1849
    %3800 = vmatmul.mubr.bf16.gmra.mxu0 %v1848
    %v3801 = vpop.f32.mrf.mxu0
    %v3802 = vadd.f32 %v3749, %v3801
    %v3803 = vpop.f32.mrf.mxu0
    %v3804 = vadd.f32 %v3751, %v3803
    %v3805 = vpop.f32.mrf.mxu0
    %v3806 = vadd.f32 %v3753, %v3805
    %v3807 = vpop.f32.mrf.mxu0
    %v3808 = vadd.f32 %v3755, %v3807
    %3809 = vdwg.mxu0
    %v3810 = vadd.f32 %v3474, %v3478
    %v3811 = vadd.f32 %v3810, %v3484
    %v3812 = vadd.f32 %v3811, %v3488
    %v3813 = vrot.slane %v3812, 4
    %v3814 = vadd.f32 %v3812, %v3813
    %v3815 = vrot.slane %v3814, 2
    %v3816 = vadd.f32 %v3814, %v3815
    %v3817 = vrot.slane %v3816, 1
    %v3818 = vadd.f32 %v3816, %v3817
    %v3819 = vadd.f32 %v3476, %v3480
    %v3820 = vadd.f32 %v3819, %v3486
    %v3821 = vadd.f32 %v3820, %v3490
    %v3822 = vrot.slane %v3821, 4
    %v3823 = vadd.f32 %v3821, %v3822
    %v3824 = vrot.slane %v3823, 2
    %v3825 = vadd.f32 %v3823, %v3824
    %v3826 = vrot.slane %v3825, 1
    %v3827 = vadd.f32 %v3825, %v3826
    %v3828 = vadd.f32 %v3580, %v3584
    %v3829 = vadd.f32 %v3828, %v3590
    %v3830 = vadd.f32 %v3829, %v3594
    %v3831 = vrot.slane %v3830, 4
    %v3832 = vadd.f32 %v3830, %v3831
    %v3833 = vrot.slane %v3832, 2
    %v3834 = vadd.f32 %v3832, %v3833
    %v3835 = vrot.slane %v3834, 1
    %v3836 = vadd.f32 %v3834, %v3835
    %v3837 = vadd.f32 %v3582, %v3586
    %v3838 = vadd.f32 %v3837, %v3592
    %v3839 = vadd.f32 %v3838, %v3596
    %v3840 = vrot.slane %v3839, 4
    %v3841 = vadd.f32 %v3839, %v3840
    %v3842 = vrot.slane %v3841, 2
    %v3843 = vadd.f32 %v3841, %v3842
    %v3844 = vrot.slane %v3843, 1
    %v3845 = vadd.f32 %v3843, %v3844
    %v3846 = vadd.f32 %v3686, %v3690
    %v3847 = vadd.f32 %v3846, %v3696
    %v3848 = vadd.f32 %v3847, %v3700
    %v3849 = vrot.slane %v3848, 4
    %v3850 = vadd.f32 %v3848, %v3849
    %v3851 = vrot.slane %v3850, 2
    %v3852 = vadd.f32 %v3850, %v3851
    %v3853 = vrot.slane %v3852, 1
    %v3854 = vadd.f32 %v3852, %v3853
    %v3855 = vadd.f32 %v3688, %v3692
    %v3856 = vadd.f32 %v3855, %v3698
    %v3857 = vadd.f32 %v3856, %v3702
    %v3858 = vrot.slane %v3857, 4
    %v3859 = vadd.f32 %v3857, %v3858
    %v3860 = vrot.slane %v3859, 2
    %v3861 = vadd.f32 %v3859, %v3860
    %v3862 = vrot.slane %v3861, 1
    %v3863 = vadd.f32 %v3861, %v3862
    %v3864 = vadd.f32 %v3792, %v3796
    %v3865 = vadd.f32 %v3864, %v3802
    %v3866 = vadd.f32 %v3865, %v3806
    %v3867 = vrot.slane %v3866, 4
    %v3868 = vadd.f32 %v3866, %v3867
    %v3869 = vrot.slane %v3868, 2
    %v3870 = vadd.f32 %v3868, %v3869
    %v3871 = vrot.slane %v3870, 1
    %v3872 = vadd.f32 %v3870, %v3871
    %v3873 = vadd.f32 %v3794, %v3798
    %v3874 = vadd.f32 %v3873, %v3804
    %v3875 = vadd.f32 %v3874, %v3808
    %v3876 = vrot.slane %v3875, 4
    %v3877 = vadd.f32 %v3875, %v3876
    %v3878 = vrot.slane %v3877, 2
    %v3879 = vadd.f32 %v3877, %v3878
    %v3880 = vrot.slane %v3879, 1
    %v3881 = vadd.f32 %v3879, %v3880
    %v3882 = vmul.f32 %v3818, %v325
    %v3883 = vmul.f32 %v3827, %v325
    %v3884 = vmul.f32 %v3836, %v325
    %v3885 = vmul.f32 %v3845, %v325
    %v3886 = vmul.f32 %v3854, %v325
    %v3887 = vmul.f32 %v3863, %v325
    %v3888 = vmul.f32 %v3872, %v325
    %v3889 = vmul.f32 %v3881, %v325
    %v3890 = vmul.f32 %v3474, %v3474
    %v3891 = vmul.f32 %v3476, %v3476
    %v3892 = vmul.f32 %v3580, %v3580
    %v3893 = vmul.f32 %v3582, %v3582
    %v3894 = vmul.f32 %v3686, %v3686
    %v3895 = vmul.f32 %v3688, %v3688
    %v3896 = vmul.f32 %v3792, %v3792
    %v3897 = vmul.f32 %v3794, %v3794
    %v3898 = vmul.f32 %v3478, %v3478
    %v3899 = vmul.f32 %v3480, %v3480
    %v3900 = vmul.f32 %v3584, %v3584
    %v3901 = vmul.f32 %v3586, %v3586
    %v3902 = vmul.f32 %v3690, %v3690
    %v3903 = vmul.f32 %v3692, %v3692
    %v3904 = vmul.f32 %v3796, %v3796
    %v3905 = vmul.f32 %v3798, %v3798
    %v3906 = vmul.f32 %v3484, %v3484
    %v3907 = vmul.f32 %v3486, %v3486
    %v3908 = vmul.f32 %v3590, %v3590
    %v3909 = vmul.f32 %v3592, %v3592
    %v3910 = vmul.f32 %v3696, %v3696
    %v3911 = vmul.f32 %v3698, %v3698
    %v3912 = vmul.f32 %v3802, %v3802
    %v3913 = vmul.f32 %v3804, %v3804
    %v3914 = vmul.f32 %v3488, %v3488
    %v3915 = vmul.f32 %v3490, %v3490
    %v3916 = vmul.f32 %v3594, %v3594
    %v3917 = vmul.f32 %v3596, %v3596
    %v3918 = vmul.f32 %v3700, %v3700
    %v3919 = vmul.f32 %v3702, %v3702
    %v3920 = vmul.f32 %v3806, %v3806
    %v3921 = vmul.f32 %v3808, %v3808
    %v3922 = vadd.f32 %v3890, %v3898
    %v3923 = vadd.f32 %v3922, %v3906
    %v3924 = vadd.f32 %v3923, %v3914
    %v3925 = vrot.slane %v3924, 4
    %v3926 = vadd.f32 %v3924, %v3925
    %v3927 = vrot.slane %v3926, 2
    %v3928 = vadd.f32 %v3926, %v3927
    %v3929 = vrot.slane %v3928, 1
    %v3930 = vadd.f32 %v3928, %v3929
    %v3931 = vadd.f32 %v3891, %v3899
    %v3932 = vadd.f32 %v3931, %v3907
    %v3933 = vadd.f32 %v3932, %v3915
    %v3934 = vrot.slane %v3933, 4
    %v3935 = vadd.f32 %v3933, %v3934
    %v3936 = vrot.slane %v3935, 2
    %v3937 = vadd.f32 %v3935, %v3936
    %v3938 = vrot.slane %v3937, 1
    %v3939 = vadd.f32 %v3937, %v3938
    %v3940 = vadd.f32 %v3892, %v3900
    %v3941 = vadd.f32 %v3940, %v3908
    %v3942 = vadd.f32 %v3941, %v3916
    %v3943 = vrot.slane %v3942, 4
    %v3944 = vadd.f32 %v3942, %v3943
    %v3945 = vrot.slane %v3944, 2
    %v3946 = vadd.f32 %v3944, %v3945
    %v3947 = vrot.slane %v3946, 1
    %v3948 = vadd.f32 %v3946, %v3947
    %v3949 = vadd.f32 %v3893, %v3901
    %v3950 = vadd.f32 %v3949, %v3909
    %v3951 = vadd.f32 %v3950, %v3917
    %v3952 = vrot.slane %v3951, 4
    %v3953 = vadd.f32 %v3951, %v3952
    %v3954 = vrot.slane %v3953, 2
    %v3955 = vadd.f32 %v3953, %v3954
    %v3956 = vrot.slane %v3955, 1
    %v3957 = vadd.f32 %v3955, %v3956
    %v3958 = vadd.f32 %v3894, %v3902
    %v3959 = vadd.f32 %v3958, %v3910
    %v3960 = vadd.f32 %v3959, %v3918
    %v3961 = vrot.slane %v3960, 4
    %v3962 = vadd.f32 %v3960, %v3961
    %v3963 = vrot.slane %v3962, 2
    %v3964 = vadd.f32 %v3962, %v3963
    %v3965 = vrot.slane %v3964, 1
    %v3966 = vadd.f32 %v3964, %v3965
    %v3967 = vadd.f32 %v3895, %v3903
    %v3968 = vadd.f32 %v3967, %v3911
    %v3969 = vadd.f32 %v3968, %v3919
    %v3970 = vrot.slane %v3969, 4
    %v3971 = vadd.f32 %v3969, %v3970
    %v3972 = vrot.slane %v3971, 2
    %v3973 = vadd.f32 %v3971, %v3972
    %v3974 = vrot.slane %v3973, 1
    %v3975 = vadd.f32 %v3973, %v3974
    %v3976 = vadd.f32 %v3896, %v3904
    %v3977 = vadd.f32 %v3976, %v3912
    %v3978 = vadd.f32 %v3977, %v3920
    %v3979 = vrot.slane %v3978, 4
    %v3980 = vadd.f32 %v3978, %v3979
    %v3981 = vrot.slane %v3980, 2
    %v3982 = vadd.f32 %v3980, %v3981
    %v3983 = vrot.slane %v3982, 1
    %v3984 = vadd.f32 %v3982, %v3983
    %v3985 = vadd.f32 %v3897, %v3905
    %v3986 = vadd.f32 %v3985, %v3913
    %v3987 = vadd.f32 %v3986, %v3921
    %v3988 = vrot.slane %v3987, 4
    %v3989 = vadd.f32 %v3987, %v3988
    %v3990 = vrot.slane %v3989, 2
    %v3991 = vadd.f32 %v3989, %v3990
    %v3992 = vrot.slane %v3991, 1
    %v3993 = vadd.f32 %v3991, %v3992
    %v3994 = vmul.f32 %v3930, %v325
    %v3995 = vmul.f32 %v3939, %v325
    %v3996 = vmul.f32 %v3948, %v325
    %v3997 = vmul.f32 %v3957, %v325
    %v3998 = vmul.f32 %v3966, %v325
    %v3999 = vmul.f32 %v3975, %v325
    %v4000 = vmul.f32 %v3984, %v325
    %v4001 = vmul.f32 %v3993, %v325
    %v4002 = vmul.f32 %v3882, %v3882
    %v4003 = vmul.f32 %v3883, %v3883
    %v4004 = vmul.f32 %v3884, %v3884
    %v4005 = vmul.f32 %v3885, %v3885
    %v4006 = vmul.f32 %v3886, %v3886
    %v4007 = vmul.f32 %v3887, %v3887
    %v4008 = vmul.f32 %v3888, %v3888
    %v4009 = vmul.f32 %v3889, %v3889
    %v4010 = vsub.f32 %v3994, %v4002
    %v4011 = vsub.f32 %v3995, %v4003
    %v4012 = vsub.f32 %v3996, %v4004
    %v4013 = vsub.f32 %v3997, %v4005
    %v4014 = vsub.f32 %v3998, %v4006
    %v4015 = vsub.f32 %v3999, %v4007
    %v4016 = vsub.f32 %v4000, %v4008
    %v4017 = vsub.f32 %v4001, %v4009
    %v4018 = vmax.f32 %v4010, 0.0
    %v4019 = vmax.f32 %v4011, 0.0
    %v4020 = vmax.f32 %v4012, 0.0
    %v4021 = vmax.f32 %v4013, 0.0
    %v4022 = vmax.f32 %v4014, 0.0
    %v4023 = vmax.f32 %v4015, 0.0
    %v4024 = vmax.f32 %v4016, 0.0
    %v4025 = vmax.f32 %v4017, 0.0
    %v4026 = vld [vmem:[%s17] sm:$0xff]
    %v4027 = vadd.f32 %v4018, 1e-05
    %v4028 = vadd.f32 %v4019, 1e-05
    %v4029 = vadd.f32 %v4020, 1e-05
    %v4030 = vadd.f32 %v4021, 1e-05
    %v4031 = vadd.f32 %v4022, 1e-05
    %v4032 = vadd.f32 %v4023, 1e-05
    %v4033 = vadd.f32 %v4024, 1e-05
    %v4034 = vadd.f32 %v4025, 1e-05
    %v4035 = vrsqrt.pop %v4027
    %v4036 = vrsqrt.pop %v4028
    %v4037 = vrsqrt.pop %v4029
    %v4038 = vrsqrt.pop %v4030
    %v4039 = vrsqrt.pop %v4031
    %v4040 = vrsqrt.pop %v4032
    %v4041 = vrsqrt.pop %v4033
    %v4042 = vrsqrt.pop %v4034
    %v4051 = vcombine.low %v4035, %v4036
    %v4052 = vcombine.low %v4037, %v4038
    %v4053 = vcombine.low %v4039, %v4040
    %v4054 = vcombine.low %v4041, %v4042
    %v4056 = vunpack.c.l.s4 1966171168
    %v4057 = vunpack.c.0.s8 %v4056
    %v4058 = vlaneseq
    %v4059 = vshrl.u32 %v4058, 7
    %v4060 = vsub.s32 %v4057, %v4059
    %v4061 = vrot.slane %v4051, %v4060
    %v4063 = vunpack.c.l.s4 1966171168
    %v4064 = vunpack.c.0.s8 %v4063
    %v4065 = vlaneseq
    %v4066 = vshrl.u32 %v4065, 7
    %v4067 = vsub.s32 %v4064, %v4066
    %v4068 = vrot.slane %v4052, %v4067
    %v4070 = vunpack.c.l.s4 1966171168
    %v4071 = vunpack.c.0.s8 %v4070
    %v4072 = vlaneseq
    %v4073 = vshrl.u32 %v4072, 7
    %v4074 = vsub.s32 %v4071, %v4073
    %v4075 = vrot.slane %v4053, %v4074
    %v4077 = vunpack.c.l.s4 1966171168
    %v4078 = vunpack.c.0.s8 %v4077
    %v4079 = vlaneseq
    %v4080 = vshrl.u32 %v4079, 7
    %v4081 = vsub.s32 %v4078, %v4080
    %v4082 = vrot.slane %v4054, %v4081
    %v4083 = vcombine.low %v4061, %v4068
    %v4084 = vcombine.low %v4075, %v4082
    %v4086 = vunpack.c.l.s4 1966171168
    %v4087 = vunpack.c.0.s8 %v4086
    %v4088 = vlaneseq
    %v4089 = vshrl.u32 %v4088, 7
    %v4090 = vsub.s32 %v4087, %v4089
    %v4091 = vrot.slane %v4083, %v4090
    %v4093 = vunpack.c.l.s4 1966171168
    %v4094 = vunpack.c.0.s8 %v4093
    %v4095 = vlaneseq
    %v4096 = vshrl.u32 %v4095, 7
    %v4097 = vsub.s32 %v4094, %v4096
    %v4098 = vrot.slane %v4084, %v4097
    %v4099 = vcombine.low %v4091, %v4098
    %v4101 = vmul.f32 %v4026, %v4099
    %v4102 = vld [vmem:[%s18] sm:$0xff]
    %v4104 = vlaneseq
    %v4105 = vshrl.u32 %v4104, 7
    %v4106 = vsub.s32 0, %v4105
    %v4107 = vrot.slane %v4101, %v4106
    %v4108 = vlaneseq
    %v4109 = vshrl.u32 %v4108, 7
    %v4110 = vsub.s32 1, %v4109
    %v4111 = vrot.slane %v4101, %v4110
    %v4112 = vlaneseq
    %v4113 = vshrl.u32 %v4112, 7
    %v4114 = vsub.s32 2, %v4113
    %v4115 = vrot.slane %v4101, %v4114
    %v4116 = vlaneseq
    %v4117 = vshrl.u32 %v4116, 7
    %v4118 = vsub.s32 3, %v4117
    %v4119 = vrot.slane %v4101, %v4118
    %v4120 = vlaneseq
    %v4121 = vshrl.u32 %v4120, 7
    %v4122 = vsub.s32 4, %v4121
    %v4123 = vrot.slane %v4101, %v4122
    %v4124 = vlaneseq
    %v4125 = vshrl.u32 %v4124, 7
    %v4126 = vsub.s32 5, %v4125
    %v4127 = vrot.slane %v4101, %v4126
    %v4128 = vlaneseq
    %v4129 = vshrl.u32 %v4128, 7
    %v4130 = vsub.s32 6, %v4129
    %v4131 = vrot.slane %v4101, %v4130
    %v4132 = vlaneseq
    %v4133 = vshrl.u32 %v4132, 7
    %v4134 = vsub.s32 7, %v4133
    %v4135 = vrot.slane %v4101, %v4134
    %v4144 = vmul.f32 %v3882, %v4107
    %v4145 = vmul.f32 %v3883, %v4111
    %v4146 = vmul.f32 %v3884, %v4115
    %v4147 = vmul.f32 %v3885, %v4119
    %v4148 = vmul.f32 %v3886, %v4123
    %v4149 = vmul.f32 %v3887, %v4127
    %v4150 = vmul.f32 %v3888, %v4131
    %v4151 = vmul.f32 %v3889, %v4135
    %v4160 = vcombine.low %v4144, %v4145
    %v4161 = vcombine.low %v4146, %v4147
    %v4162 = vcombine.low %v4148, %v4149
    %v4163 = vcombine.low %v4150, %v4151
    %v4165 = vunpack.c.l.s4 1966171168
    %v4166 = vunpack.c.0.s8 %v4165
    %v4167 = vlaneseq
    %v4168 = vshrl.u32 %v4167, 7
    %v4169 = vsub.s32 %v4166, %v4168
    %v4170 = vrot.slane %v4160, %v4169
    %v4172 = vunpack.c.l.s4 1966171168
    %v4173 = vunpack.c.0.s8 %v4172
    %v4174 = vlaneseq
    %v4175 = vshrl.u32 %v4174, 7
    %v4176 = vsub.s32 %v4173, %v4175
    %v4177 = vrot.slane %v4161, %v4176
    %v4179 = vunpack.c.l.s4 1966171168
    %v4180 = vunpack.c.0.s8 %v4179
    %v4181 = vlaneseq
    %v4182 = vshrl.u32 %v4181, 7
    %v4183 = vsub.s32 %v4180, %v4182
    %v4184 = vrot.slane %v4162, %v4183
    %v4186 = vunpack.c.l.s4 1966171168
    %v4187 = vunpack.c.0.s8 %v4186
    %v4188 = vlaneseq
    %v4189 = vshrl.u32 %v4188, 7
    %v4190 = vsub.s32 %v4187, %v4189
    %v4191 = vrot.slane %v4163, %v4190
    %v4192 = vcombine.low %v4170, %v4177
    %v4193 = vcombine.low %v4184, %v4191
    %v4195 = vunpack.c.l.s4 1966171168
    %v4196 = vunpack.c.0.s8 %v4195
    %v4197 = vlaneseq
    %v4198 = vshrl.u32 %v4197, 7
    %v4199 = vsub.s32 %v4196, %v4198
    %v4200 = vrot.slane %v4192, %v4199
    %v4202 = vunpack.c.l.s4 1966171168
    %v4203 = vunpack.c.0.s8 %v4202
    %v4204 = vlaneseq
    %v4205 = vshrl.u32 %v4204, 7
    %v4206 = vsub.s32 %v4203, %v4205
    %v4207 = vrot.slane %v4193, %v4206
    %v4208 = vcombine.low %v4200, %v4207
    %v4210 = vsub.f32 %v4102, %v4208
    %v4211 = vmul.f32 %v3474, %v4107
    %v4212 = vmul.f32 %v3476, %v4111
    %v4213 = vmul.f32 %v3580, %v4115
    %v4214 = vmul.f32 %v3582, %v4119
    %v4215 = vmul.f32 %v3686, %v4123
    %v4216 = vmul.f32 %v3688, %v4127
    %v4217 = vmul.f32 %v3792, %v4131
    %v4218 = vmul.f32 %v3794, %v4135
    %v4219 = vmul.f32 %v3478, %v4107
    %v4220 = vmul.f32 %v3480, %v4111
    %v4221 = vmul.f32 %v3584, %v4115
    %v4222 = vmul.f32 %v3586, %v4119
    %v4223 = vmul.f32 %v3690, %v4123
    %v4224 = vmul.f32 %v3692, %v4127
    %v4225 = vmul.f32 %v3796, %v4131
    %v4226 = vmul.f32 %v3798, %v4135
    %v4227 = vmul.f32 %v3484, %v4107
    %v4228 = vmul.f32 %v3486, %v4111
    %v4229 = vmul.f32 %v3590, %v4115
    %v4230 = vmul.f32 %v3592, %v4119
    %v4231 = vmul.f32 %v3696, %v4123
    %v4232 = vmul.f32 %v3698, %v4127
    %v4233 = vmul.f32 %v3802, %v4131
    %v4234 = vmul.f32 %v3804, %v4135
    %v4235 = vmul.f32 %v3488, %v4107
    %v4236 = vmul.f32 %v3490, %v4111
    %v4237 = vmul.f32 %v3594, %v4115
    %v4238 = vmul.f32 %v3596, %v4119
    %v4239 = vmul.f32 %v3700, %v4123
    %v4240 = vmul.f32 %v3702, %v4127
    %v4241 = vmul.f32 %v3806, %v4131
    %v4242 = vmul.f32 %v3808, %v4135
    %v4244 = vlaneseq
    %v4245 = vshrl.u32 %v4244, 7
    %v4246 = vsub.s32 0, %v4245
    %v4247 = vrot.slane %v4210, %v4246
    %v4248 = vlaneseq
    %v4249 = vshrl.u32 %v4248, 7
    %v4250 = vsub.s32 1, %v4249
    %v4251 = vrot.slane %v4210, %v4250
    %v4252 = vlaneseq
    %v4253 = vshrl.u32 %v4252, 7
    %v4254 = vsub.s32 2, %v4253
    %v4255 = vrot.slane %v4210, %v4254
    %v4256 = vlaneseq
    %v4257 = vshrl.u32 %v4256, 7
    %v4258 = vsub.s32 3, %v4257
    %v4259 = vrot.slane %v4210, %v4258
    %v4260 = vlaneseq
    %v4261 = vshrl.u32 %v4260, 7
    %v4262 = vsub.s32 4, %v4261
    %v4263 = vrot.slane %v4210, %v4262
    %v4264 = vlaneseq
    %v4265 = vshrl.u32 %v4264, 7
    %v4266 = vsub.s32 5, %v4265
    %v4267 = vrot.slane %v4210, %v4266
    %v4268 = vlaneseq
    %v4269 = vshrl.u32 %v4268, 7
    %v4270 = vsub.s32 6, %v4269
    %v4271 = vrot.slane %v4210, %v4270
    %v4272 = vlaneseq
    %v4273 = vshrl.u32 %v4272, 7
    %v4274 = vsub.s32 7, %v4273
    %v4275 = vrot.slane %v4210, %v4274
    %v4284 = vadd.f32 %v4211, %v4247
    %v4285 = vadd.f32 %v4212, %v4251
    %v4286 = vadd.f32 %v4213, %v4255
    %v4287 = vadd.f32 %v4214, %v4259
    %v4288 = vadd.f32 %v4215, %v4263
    %v4289 = vadd.f32 %v4216, %v4267
    %v4290 = vadd.f32 %v4217, %v4271
    %v4291 = vadd.f32 %v4218, %v4275
    %v4292 = vadd.f32 %v4219, %v4247
    %v4293 = vadd.f32 %v4220, %v4251
    %v4294 = vadd.f32 %v4221, %v4255
    %v4295 = vadd.f32 %v4222, %v4259
    %v4296 = vadd.f32 %v4223, %v4263
    %v4297 = vadd.f32 %v4224, %v4267
    %v4298 = vadd.f32 %v4225, %v4271
    %v4299 = vadd.f32 %v4226, %v4275
    %v4300 = vadd.f32 %v4227, %v4247
    %v4301 = vadd.f32 %v4228, %v4251
    %v4302 = vadd.f32 %v4229, %v4255
    %v4303 = vadd.f32 %v4230, %v4259
    %v4304 = vadd.f32 %v4231, %v4263
    %v4305 = vadd.f32 %v4232, %v4267
    %v4306 = vadd.f32 %v4233, %v4271
    %v4307 = vadd.f32 %v4234, %v4275
    %v4308 = vadd.f32 %v4235, %v4247
    %v4309 = vadd.f32 %v4236, %v4251
    %v4310 = vadd.f32 %v4237, %v4255
    %v4311 = vadd.f32 %v4238, %v4259
    %v4312 = vadd.f32 %v4239, %v4263
    %v4313 = vadd.f32 %v4240, %v4267
    %v4314 = vadd.f32 %v4241, %v4271
    %v4315 = vadd.f32 %v4242, %v4275
    %v4316 = vmax.f32 %v4284, 0.0
    %v4317 = vmax.f32 %v4285, 0.0
    %v4318 = vmax.f32 %v4286, 0.0
    %v4319 = vmax.f32 %v4287, 0.0
    %v4320 = vmax.f32 %v4288, 0.0
    %v4321 = vmax.f32 %v4289, 0.0
    %v4322 = vmax.f32 %v4290, 0.0
    %v4323 = vmax.f32 %v4291, 0.0
    %v4324 = vmax.f32 %v4292, 0.0
    %v4325 = vmax.f32 %v4293, 0.0
    %v4326 = vmax.f32 %v4294, 0.0
    %v4327 = vmax.f32 %v4295, 0.0
    %v4328 = vmax.f32 %v4296, 0.0
    %v4329 = vmax.f32 %v4297, 0.0
    %v4330 = vmax.f32 %v4298, 0.0
    %v4331 = vmax.f32 %v4299, 0.0
    %v4332 = vmax.f32 %v4300, 0.0
    %v4333 = vmax.f32 %v4301, 0.0
    %v4334 = vmax.f32 %v4302, 0.0
    %v4335 = vmax.f32 %v4303, 0.0
    %v4336 = vmax.f32 %v4304, 0.0
    %v4337 = vmax.f32 %v4305, 0.0
    %v4338 = vmax.f32 %v4306, 0.0
    %v4339 = vmax.f32 %v4307, 0.0
    %v4340 = vmax.f32 %v4308, 0.0
    %v4341 = vmax.f32 %v4309, 0.0
    %v4342 = vmax.f32 %v4310, 0.0
    %v4343 = vmax.f32 %v4311, 0.0
    %v4344 = vmax.f32 %v4312, 0.0
    %v4345 = vmax.f32 %v4313, 0.0
    %v4346 = vmax.f32 %v4314, 0.0
    %v4347 = vmax.f32 %v4315, 0.0
    %v4348 = vmax.f32 %v4316, %v4324
    %v4349 = vrot.slane %v4348, 4
    %v4350 = vmax.f32 %v4348, %v4349
    %v4351 = vrot.slane %v4350, 2
    %v4352 = vmax.f32 %v4350, %v4351
    %v4353 = vrot.slane %v4352, 1
    %v4354 = vmax.f32 %v4352, %v4353
    %v4355 = vmax.f32 %v4317, %v4325
    %v4356 = vrot.slane %v4355, 4
    %v4357 = vmax.f32 %v4355, %v4356
    %v4358 = vrot.slane %v4357, 2
    %v4359 = vmax.f32 %v4357, %v4358
    %v4360 = vrot.slane %v4359, 1
    %v4361 = vmax.f32 %v4359, %v4360
    %v4362 = vmax.f32 %v4318, %v4326
    %v4363 = vrot.slane %v4362, 4
    %v4364 = vmax.f32 %v4362, %v4363
    %v4365 = vrot.slane %v4364, 2
    %v4366 = vmax.f32 %v4364, %v4365
    %v4367 = vrot.slane %v4366, 1
    %v4368 = vmax.f32 %v4366, %v4367
    %v4369 = vmax.f32 %v4319, %v4327
    %v4370 = vrot.slane %v4369, 4
    %v4371 = vmax.f32 %v4369, %v4370
    %v4372 = vrot.slane %v4371, 2
    %v4373 = vmax.f32 %v4371, %v4372
    %v4374 = vrot.slane %v4373, 1
    %v4375 = vmax.f32 %v4373, %v4374
    %v4376 = vmax.f32 %v4320, %v4328
    %v4377 = vrot.slane %v4376, 4
    %v4378 = vmax.f32 %v4376, %v4377
    %v4379 = vrot.slane %v4378, 2
    %v4380 = vmax.f32 %v4378, %v4379
    %v4381 = vrot.slane %v4380, 1
    %v4382 = vmax.f32 %v4380, %v4381
    %v4383 = vmax.f32 %v4321, %v4329
    %v4384 = vrot.slane %v4383, 4
    %v4385 = vmax.f32 %v4383, %v4384
    %v4386 = vrot.slane %v4385, 2
    %v4387 = vmax.f32 %v4385, %v4386
    %v4388 = vrot.slane %v4387, 1
    %v4389 = vmax.f32 %v4387, %v4388
    %v4390 = vmax.f32 %v4322, %v4330
    %v4391 = vrot.slane %v4390, 4
    %v4392 = vmax.f32 %v4390, %v4391
    %v4393 = vrot.slane %v4392, 2
    %v4394 = vmax.f32 %v4392, %v4393
    %v4395 = vrot.slane %v4394, 1
    %v4396 = vmax.f32 %v4394, %v4395
    %v4397 = vmax.f32 %v4323, %v4331
    %v4398 = vrot.slane %v4397, 4
    %v4399 = vmax.f32 %v4397, %v4398
    %v4400 = vrot.slane %v4399, 2
    %v4401 = vmax.f32 %v4399, %v4400
    %v4402 = vrot.slane %v4401, 1
    %v4403 = vmax.f32 %v4401, %v4402
    %v4404 = vmax.f32 %v4332, %v4340
    %v4405 = vrot.slane %v4404, 4
    %v4406 = vmax.f32 %v4404, %v4405
    %v4407 = vrot.slane %v4406, 2
    %v4408 = vmax.f32 %v4406, %v4407
    %v4409 = vrot.slane %v4408, 1
    %v4410 = vmax.f32 %v4408, %v4409
    %v4411 = vmax.f32 %v4333, %v4341
    %v4412 = vrot.slane %v4411, 4
    %v4413 = vmax.f32 %v4411, %v4412
    %v4414 = vrot.slane %v4413, 2
    %v4415 = vmax.f32 %v4413, %v4414
    %v4416 = vrot.slane %v4415, 1
    %v4417 = vmax.f32 %v4415, %v4416
    %v4418 = vmax.f32 %v4334, %v4342
    %v4419 = vrot.slane %v4418, 4
    %v4420 = vmax.f32 %v4418, %v4419
    %v4421 = vrot.slane %v4420, 2
    %v4422 = vmax.f32 %v4420, %v4421
    %v4423 = vrot.slane %v4422, 1
    %v4424 = vmax.f32 %v4422, %v4423
    %v4425 = vmax.f32 %v4335, %v4343
    %v4426 = vrot.slane %v4425, 4
    %v4427 = vmax.f32 %v4425, %v4426
    %v4428 = vrot.slane %v4427, 2
    %v4429 = vmax.f32 %v4427, %v4428
    %v4430 = vrot.slane %v4429, 1
    %v4431 = vmax.f32 %v4429, %v4430
    %v4432 = vmax.f32 %v4336, %v4344
    %v4433 = vrot.slane %v4432, 4
    %v4434 = vmax.f32 %v4432, %v4433
    %v4435 = vrot.slane %v4434, 2
    %v4436 = vmax.f32 %v4434, %v4435
    %v4437 = vrot.slane %v4436, 1
    %v4438 = vmax.f32 %v4436, %v4437
    %v4439 = vmax.f32 %v4337, %v4345
    %v4440 = vrot.slane %v4439, 4
    %v4441 = vmax.f32 %v4439, %v4440
    %v4442 = vrot.slane %v4441, 2
    %v4443 = vmax.f32 %v4441, %v4442
    %v4444 = vrot.slane %v4443, 1
    %v4445 = vmax.f32 %v4443, %v4444
    %v4446 = vmax.f32 %v4338, %v4346
    %v4447 = vrot.slane %v4446, 4
    %v4448 = vmax.f32 %v4446, %v4447
    %v4449 = vrot.slane %v4448, 2
    %v4450 = vmax.f32 %v4448, %v4449
    %v4451 = vrot.slane %v4450, 1
    %v4452 = vmax.f32 %v4450, %v4451
    %v4453 = vmax.f32 %v4339, %v4347
    %v4454 = vrot.slane %v4453, 4
    %v4455 = vmax.f32 %v4453, %v4454
    %v4456 = vrot.slane %v4455, 2
    %v4457 = vmax.f32 %v4455, %v4456
    %v4458 = vrot.slane %v4457, 1
    %v4459 = vmax.f32 %v4457, %v4458
    %vm4476 = vcmask 1041409
    %v4477 = vsel %vm4476, %v4410, %v4354
    %v4478 = vsel %vm4476, %v4417, %v4361
    %v4479 = vsel %vm4476, %v4424, %v4368
    %v4480 = vsel %vm4476, %v4431, %v4375
    %v4481 = vsel %vm4476, %v4438, %v4382
    %v4482 = vsel %vm4476, %v4445, %v4389
    %v4483 = vsel %vm4476, %v4452, %v4396
    %v4484 = vsel %vm4476, %v4459, %v4403
    %v4493 = vsel %vm4476, %v1820, %v1792
    %v4494 = vsel %vm4476, %v1827, %v1799
    %v4495 = vsel %vm4476, %v1834, %v1806
    %v4496 = vsel %vm4476, %v1841, %v1813
    %v4501 = vsel %vm4476, %v1012, %v998
    %v4502 = vsel %vm4476, %v1019, %v1005
    %v4505 = vsel %vm4476, %v694, %v687
    %v4506 = vcombine.low %v4477, %v4478
    %v4507 = vcombine.low %v4479, %v4480
    %v4509 = vunpack.c.l.s4 1983009808
    %v4510 = vunpack.c.0.s8 %v4509
    %v4511 = vlaneseq
    %v4512 = vshrl.u32 %v4511, 7
    %v4513 = vsub.s32 %v4510, %v4512
    %v4514 = vrot.slane %v4506, %v4513
    %v4516 = vunpack.c.l.s4 1983009808
    %v4517 = vunpack.c.0.s8 %v4516
    %v4518 = vlaneseq
    %v4519 = vshrl.u32 %v4518, 7
    %v4520 = vsub.s32 %v4517, %v4519
    %v4521 = vrot.slane %v4507, %v4520
    %v4522 = vcombine.low %v4514, %v4521
    %v4523 = vcombine.low %v4481, %v4482
    %v4524 = vcombine.low %v4483, %v4484
    %v4526 = vunpack.c.l.s4 1983009808
    %v4527 = vunpack.c.0.s8 %v4526
    %v4528 = vlaneseq
    %v4529 = vshrl.u32 %v4528, 7
    %v4530 = vsub.s32 %v4527, %v4529
    %v4531 = vrot.slane %v4523, %v4530
    %v4533 = vunpack.c.l.s4 1983009808
    %v4534 = vunpack.c.0.s8 %v4533
    %v4535 = vlaneseq
    %v4536 = vshrl.u32 %v4535, 7
    %v4537 = vsub.s32 %v4534, %v4536
    %v4538 = vrot.slane %v4524, %v4537
    %v4539 = vcombine.low %v4531, %v4538
    %v4540 = vcombine.low %v4493, %v4494
    %v4541 = vcombine.low %v4495, %v4496
    %v4543 = vunpack.c.l.s4 1983009808
    %v4544 = vunpack.c.0.s8 %v4543
    %v4545 = vlaneseq
    %v4546 = vshrl.u32 %v4545, 7
    %v4547 = vsub.s32 %v4544, %v4546
    %v4548 = vrot.slane %v4540, %v4547
    %v4550 = vunpack.c.l.s4 1983009808
    %v4551 = vunpack.c.0.s8 %v4550
    %v4552 = vlaneseq
    %v4553 = vshrl.u32 %v4552, 7
    %v4554 = vsub.s32 %v4551, %v4553
    %v4555 = vrot.slane %v4541, %v4554
    %v4556 = vcombine.low %v4548, %v4555
    %v4557 = vcombine.low %v4501, %v4502
    %v4559 = vunpack.c.l.s4 1983009808
    %v4560 = vunpack.c.0.s8 %v4559
    %v4561 = vlaneseq
    %v4562 = vshrl.u32 %v4561, 7
    %v4563 = vsub.s32 %v4560, %v4562
    %v4564 = vrot.slane %v4557, %v4563
    %v4566 = vunpack.c.l.s4 1983009808
    %v4567 = vunpack.c.0.s8 %v4566
    %v4568 = vlaneseq
    %v4569 = vshrl.u32 %v4568, 7
    %v4570 = vsub.s32 %v4567, %v4569
    %v4571 = vrot.slane %v4505, %v4570
    %v4572 = vcombine.low %v4564, %v4571
    %4577 = vst [vmem:[#allocation23] sm:$0xff] %v4522
    %4578 = vst [vmem:[#allocation23 + $0x8] sm:$0xff] %v4539
    %4579 = vst [vmem:[#allocation23 + $0x10] sm:$0xff] %v4556
    %4580 = vst [vmem:[#allocation23 + $0x18] sm:$0x3f] %v4572
    // Predicated region
    $region130: #{tpu_custom_call.1} parent=1 // pred_check
      _
    $region131: #{tpu_custom_call.1} parent=1 // pred_check_branch
      %4582 = sbr.rel (0) target = $region133
    $region132: #{tpu_custom_call.1} parent=1 // pred_region
      %s4584 = ssub.s32 480, 480
      %4585 = vsyncadd [#allocation4], %s4584
      %s4587 = sshll.u32 [#allocation23], 4
      %s4588 = int_to_ptr.vmem [resolvable:$true] %s4587
      %4590 = dma.vmem_to_hbm [thread:$0]  %s4588, 480, %s19, [#allocation4]
    $region133: #{tpu_custom_call.1} parent=1 // pred_fallthru
      _
    // Predicated region
    $region134: #{tpu_custom_call.1} parent=1 // pred_check
      _
    $region135: #{tpu_custom_call.1} parent=1 // pred_check_branch
      %4592 = sbr.rel (0) target = $region137
    $region136: #{tpu_custom_call.1} parent=1 // pred_region
      %4593 = dma.done [#allocation4], 480
    $region137: #{tpu_custom_call.1} parent=1 // pred_fallthru
      _
    %4594 = vsyncpa [#allocation3], 1
    %4595 = vsyncpa [#allocation6], 1
    %4596 = vsyncpa [#allocation9], 1
    %4597 = vsyncpa [#allocation12], 1
    %4598 = vsyncpa [#allocation15], 1
    %4599 = vsyncpa [#allocation18], 1
    %4600 = vsyncpa [#allocation21], 1
    %4601 = vsyncpa [#allocation4], 1

</llo_original>
